<compile_context>
chip_gen: v7x
topology: tpu7x:2x2x1
jax: 0.10.0
libtpu: 0.0.40
codegen_flags: <defaults>
</compile_context>

<pallas_src>
import jax
import jax.numpy as jnp
from jax.experimental import pallas as pl
from jax.experimental.pallas import tpu as pltpu


# ----------------------------------------------------------------------------
# Fused kernel: one (batch n, row-tile t) output block per grid step.
# ----------------------------------------------------------------------------
def _bottleneck_kernel(x_ref, w1_ref, b1_ref, w2_ref, b2_ref, w3_ref, b3_ref,
                       o_ref, y1p_ref):
    # x_ref  : (1, H, W, Cin) f32    -- full image for batch n
    # w1_ref : (Cin, Cmid) bf16      -- BN1 scale pre-folded
    # w2_ref : (9*Cmid, Cmid) bf16   -- 3x3 weights (ky,kx,cin)-major, BN2 folded
    # w3_ref : (Cmid, Cout) bf16     -- BN3 scale pre-folded
    # b*_ref : (1, C) f32 biases
    # o_ref  : (1, th, W, Cout) f32 output row tile
    # y1p_ref: (th+2, W+2, Cmid) bf16 scratch (conv1 output, zero-padded border)
    H, W, Cin = x_ref.shape[1], x_ref.shape[2], x_ref.shape[3]
    Cmid = w1_ref.shape[1]
    th = o_ref.shape[1]
    cdt = y1p_ref.dtype  # bf16 MXU-input dtype

    t = pl.program_id(1)
    row0 = pl.multiple_of(t * th, th)

    # ---- stage 1: conv1 (1x1, scale folded) + bias + relu as ONE matmul over
    # th + 2 rows; the halo rows are clamped reads (zeroed below if outside).
    top = x_ref[0, pl.ds(jnp.maximum(row0 - 1, 0), 1)]          # (1,  W, Cin)
    mid = x_ref[0, pl.ds(row0, th)]                             # (th, W, Cin)
    bot = x_ref[0, pl.ds(jnp.minimum(row0 + th, H - 1), 1)]     # (1,  W, Cin)
    slab = jnp.concatenate([top, mid, bot], axis=0)             # (th+2, W, Cin) f32

    y1 = jnp.dot(slab.reshape((th + 2) * W, Cin).astype(cdt), w1_ref[...],
                 preferred_element_type=jnp.float32)
    y1 = jnp.maximum(y1 + b1_ref[...], 0.0).astype(cdt).reshape(th + 2, W, Cmid)

    # ---- write the zero-padded scratch: border columns and out-of-image halo
    # rows are zero (= conv2's zero padding of *its* input).
    zcol = jnp.zeros((th + 2, 1, Cmid), cdt)
    y1p_ref[pl.ds(0, th + 2), pl.ds(0, 1)] = zcol
    y1p_ref[pl.ds(0, th + 2), pl.ds(W + 1, 1)] = zcol
    y1p_ref[pl.ds(0, 1), pl.ds(1, W)] = y1[0:1] * (row0 > 0).astype(cdt)
    y1p_ref[pl.ds(1, th), pl.ds(1, W)] = y1[1:th + 1]
    y1p_ref[pl.ds(th + 1, 1), pl.ds(1, W)] = (
        y1[th + 1:th + 2] * (row0 + th < H).astype(cdt))

    # ---- stage 2: conv2 (3x3, pad=1, scale folded) as a single im2col matmul.
    # 9 static taps of the padded scratch, concatenated on the channel axis in
    # (ky, kx, cin) order to match the (9*Cmid, Cmid) weight layout.
    taps = [y1p_ref[pl.ds(ky, th), pl.ds(kx, W)]
            for ky in range(3) for kx in range(3)]               # each (th, W, Cmid)
    lhs = jnp.concatenate(taps, axis=-1).reshape(th * W, 9 * Cmid)
    y2 = jnp.dot(lhs, w2_ref[...], preferred_element_type=jnp.float32)
    y2 = jnp.maximum(y2 + b2_ref[...], 0.0).astype(cdt)

    # ---- stage 3: conv3 (1x1, scale folded) + bias + residual add + relu.
    z = jnp.dot(y2, w3_ref[...], preferred_element_type=jnp.float32)
    z = z + b3_ref[...] + slab[1:th + 1].reshape(th * W, Cin)    # Cin == Cout
    o_ref[...] = jnp.maximum(z, 0.0).reshape(o_ref.shape).astype(o_ref.dtype)


# ----------------------------------------------------------------------------
# Wrapper (accepts the PyTorch NCHW layout).
# ----------------------------------------------------------------------------
def bottleneck_forward(x_nchw, params, th=None):
    """x_nchw: (N, inplanes, H, W) f32; returns (N, 4*planes, H, W) f32."""
    w1, s1, b1, w2, s2, b2, w3, s3, b3 = params
    # NCHW -> NHWC at the module boundary (channels on the TPU lane axis).
    # TODO(synk): keep the surrounding network NHWC end-to-end to drop these
    #             two boundary transposes entirely.
    x = jnp.transpose(x_nchw, (0, 2, 3, 1)).astype(jnp.float32)
    N, H, W, Cin = x.shape
    Cmid = w1.shape[1]
    Cout = w3.shape[1]
    assert Cin == Cout, "identity path requires inplanes == 4*planes (downsample=None)"
    assert w2.shape == (3, 3, Cmid, Cmid)

    bf16, f32 = jnp.bfloat16, jnp.float32
    # Fold the BN scales into the conv weights (in f32, before the bf16 cast);
    # the kernel only does bias-add + ReLU per stage.
    w1f = (w1 * s1[None, :]).astype(bf16)
    w2f = (w2 * s2[None, None, None, :]).reshape(9 * Cmid, Cmid).astype(bf16)
    w3f = (w3 * s3[None, :]).astype(bf16)
    b1f = b1.reshape(1, Cmid).astype(f32)
    b2f = b2.reshape(1, Cmid).astype(f32)
    b3f = b3.reshape(1, Cout).astype(f32)

    def need_bytes(th_):  # rough per-step VMEM estimate (double-buffered I/O)
        xb = H * W * Cin * 4 * 2
        ob = th_ * W * Cout * 4 * 2
        scr = (th_ + 2) * (W + 2) * Cmid * 2
        im2 = th_ * W * 9 * Cmid * 2 * 2
        wts = (Cin * Cmid + 9 * Cmid * Cmid + Cmid * Cout) * 2 * 2
        return xb + ob + scr + im2 + wts + (1 << 20)

    try:
        vmem_cap = int(pltpu.get_tpu_info().vmem_capacity_bytes)
    except Exception:
        vmem_cap = 64 << 20  # conservative (v7x per-TC)
    budget = int(vmem_cap * 0.55)

    if th is None:
        # Largest divisor of H whose working set fits the VMEM budget
        # (on 128 MiB parts this is usually th == H: no halo recompute).
        divisors = [d for d in range(H, 0, -1) if H % d == 0]
        th = divisors[-1]
        for d in divisors:
            if need_bytes(d) <= budget:
                th = d
                break
    assert H % th == 0, "row tile must divide H"
    # TODO(synk): ragged H (H % th != 0) would need a masked tail row tile.

    vmem_limit = int(min(max(2 * need_bytes(th), 32 << 20), vmem_cap - (8 << 20)))

    out = pl.pallas_call(
        _bottleneck_kernel,
        out_shape=jax.ShapeDtypeStruct((N, H, W, Cout), jnp.float32),
        grid=(N, H // th),
        in_specs=[
            pl.BlockSpec((1, H, W, Cin),   lambda n, t: (n, 0, 0, 0)),
            pl.BlockSpec((Cin, Cmid),      lambda n, t: (0, 0)),
            pl.BlockSpec((1, Cmid),        lambda n, t: (0, 0)),
            pl.BlockSpec((9 * Cmid, Cmid), lambda n, t: (0, 0)),
            pl.BlockSpec((1, Cmid),        lambda n, t: (0, 0)),
            pl.BlockSpec((Cmid, Cout),     lambda n, t: (0, 0)),
            pl.BlockSpec((1, Cout),        lambda n, t: (0, 0)),
        ],
        out_specs=pl.BlockSpec((1, th, W, Cout), lambda n, t: (n, t, 0, 0)),
        scratch_shapes=[pltpu.VMEM((th + 2, W + 2, Cmid), jnp.bfloat16)],
        compiler_params=pltpu.CompilerParams(
            # batch axis "parallel" (sharded across v7x's 2 TCs), row tiles
            # "arbitrary" so both cores never fetch the same full image.
            dimension_semantics=("parallel", "arbitrary"),
            vmem_limit_bytes=vmem_limit),
    )(x, w1f, b1f, w2f, b2f, w3f, b3f)
    return jnp.transpose(out, (0, 3, 1, 2))  # -> NCHW


# ----------------------------------------------------------------------------
# Pure-JAX reference (mirrors the kernel's folded-BN / bf16 MXU-input math).
# ----------------------------------------------------------------------------
def bottleneck_reference(x_nchw, params):
    w1, s1, b1, w2, s2, b2, w3, s3, b3 = params
    x = jnp.transpose(x_nchw, (0, 2, 3, 1)).astype(jnp.float32)
    bf = lambda a: a.astype(jnp.bfloat16).astype(jnp.float32)
    hi = jax.lax.Precision.HIGHEST
    w1f = bf(w1 * s1[None, :])
    w2f = bf(w2 * s2[None, None, None, :])
    w3f = bf(w3 * s3[None, :])
    y = jnp.einsum('nhwc,ck->nhwk', bf(x), w1f, precision=hi) + b1
    y = jnp.maximum(y, 0.0)
    y = jax.lax.conv_general_dilated(
        bf(y), w2f, window_strides=(1, 1), padding='SAME',
        dimension_numbers=('NHWC', 'HWIO', 'NHWC'), precision=hi) + b2
    y = jnp.maximum(y, 0.0)
    y = jnp.einsum('nhwc,ck->nhwk', bf(y), w3f, precision=hi) + b3 + x
    y = jnp.maximum(y, 0.0)
    return jnp.transpose(y, (0, 3, 1, 2))


def fold_bn(gamma, beta, mean, var, eps=1e-5):
    scale = gamma / jnp.sqrt(var + eps)
    bias = beta - mean * scale
    return scale, bias


if __name__ == "__main__":
    # Shapes consistent with the module: identity add (downsample=None)
    # requires inplanes == 4 * planes; width = planes (base_width=64, groups=1).
    N, H, W = 2, 16, 16
    planes = 32
    inplanes = 4 * planes        # 128  (lane-dense input/output channels)
    width = planes               # 32
    cout = 4 * planes            # 128

    key = jax.random.PRNGKey(0)
    ks = jax.random.split(key, 8)

    x = jax.random.normal(ks[0], (N, inplanes, H, W), jnp.float32)

    # Conv weights in kernel layout:
    #   w1: (Cin, Cmid)         == torch conv1.weight[O,I,1,1] transposed
    #   w2: (3, 3, Cin, Cout)   == torch conv2.weight permuted to HWIO
    #   w3: (Cmid, Cout)
    w1 = jax.random.normal(ks[1], (inplanes, width), jnp.float32) * 0.05
    w2 = jax.random.normal(ks[2], (3, 3, width, width), jnp.float32) * 0.05
    w3 = jax.random.normal(ks[3], (width, cout), jnp.float32) * 0.05

    # Deterministic inference-mode BatchNorm params, folded to scale/bias.
    def bn_params(k, c):
        k1, k2, k3, k4 = jax.random.split(k, 4)
        gamma = 1.0 + 0.1 * jax.random.normal(k1, (c,), jnp.float32)
        beta = 0.1 * jax.random.normal(k2, (c,), jnp.float32)
        mean = 0.1 * jax.random.normal(k3, (c,), jnp.float32)
        var = 1.0 + 0.1 * jax.random.uniform(k4, (c,), jnp.float32)
        return fold_bn(gamma, beta, mean, var)

    s1, b1 = bn_params(ks[4], width)
    s2, b2 = bn_params(ks[5], width)
    s3, b3 = bn_params(ks[6], cout)

    params = (w1, s1, b1, w2, s2, b2, w3, s3, b3)

    ref = jax.block_until_ready(bottleneck_reference(x, params))

    # Default (VMEM-aware) row tile -- typically th == H here (no halo work).
    out = jax.block_until_ready(bottleneck_forward(x, params))
    assert out.shape == (N, cout, H, W), out.shape
    err = float(jnp.max(jnp.abs(out - ref)))
    assert jnp.allclose(out, ref, atol=2e-2, rtol=2e-2), err

    # Forced smaller tile to exercise the in-kernel halo / boundary masking.
    out8 = jax.block_until_ready(bottleneck_forward(x, params, th=8))
    err8 = float(jnp.max(jnp.abs(out8 - ref)))
    assert jnp.allclose(out8, ref, atol=2e-2, rtol=2e-2), err8

    print("KERNEL_OK")
</pallas_src>

<mosaic_0001>
module attributes {stable_mosaic.version = 11 : i64} {
  func.func @_bottleneck_kernel(%arg0: i32, %arg1: i32, %arg2: memref<1x16x16x128xf32, #tpu.memory_space<vmem>>, %arg3: memref<128x32xbf16, #tpu.memory_space<vmem>>, %arg4: memref<1x32xf32, #tpu.memory_space<vmem>>, %arg5: memref<288x32xbf16, #tpu.memory_space<vmem>>, %arg6: memref<1x32xf32, #tpu.memory_space<vmem>>, %arg7: memref<32x128xbf16, #tpu.memory_space<vmem>>, %arg8: memref<1x128xf32, #tpu.memory_space<vmem>>, %arg9: memref<1x16x16x128xf32, #tpu.memory_space<vmem>>, %arg10: memref<18x18x32xbf16, #tpu.memory_space<vmem>>) attributes {dimension_semantics = [#tpu.dimension_semantics<parallel>, #tpu.dimension_semantics<arbitrary>], iteration_bounds = array<i64: 2, 1>, scalar_prefetch = 0 : i64, scratch_operands = 1 : i64, tpu.core_type = #tpu.core_type<tc>, window_params = [{transform_indices = @transform_0, window_bounds = array<i64: 1, 16, 16, 128>}, {pipeline_mode = #tpu.pipeline_mode<synchronous>, transform_indices = @transform_1, window_bounds = array<i64: 128, 32>}, {pipeline_mode = #tpu.pipeline_mode<synchronous>, transform_indices = @transform_2, window_bounds = array<i64: 1, 32>}, {pipeline_mode = #tpu.pipeline_mode<synchronous>, transform_indices = @transform_3, window_bounds = array<i64: 288, 32>}, {pipeline_mode = #tpu.pipeline_mode<synchronous>, transform_indices = @transform_4, window_bounds = array<i64: 1, 32>}, {pipeline_mode = #tpu.pipeline_mode<synchronous>, transform_indices = @transform_5, window_bounds = array<i64: 32, 128>}, {pipeline_mode = #tpu.pipeline_mode<synchronous>, transform_indices = @transform_6, window_bounds = array<i64: 1, 128>}, {transform_indices = @transform_7, window_bounds = array<i64: 1, 16, 16, 128>}]} {
    %c16_i32 = arith.constant 16 : i32
    %0 = arith.muli %arg1, %c16_i32 : i32
    %1 = tpu.assume_multiple %0, 16 : i32
    %c1_i32 = arith.constant 1 : i32
    %2 = arith.subi %1, %c1_i32 : i32
    %c0_i32 = arith.constant 0 : i32
    %3 = arith.maxsi %2, %c0_i32 : i32
    %c0 = arith.constant 0 : index
    %4 = arith.index_cast %3 : i32 to index
    %c0_0 = arith.constant 0 : index
    %c0_1 = arith.constant 0 : index
    %5 = vector.load %arg2[%c0, %4, %c0_0, %c0_1] : memref<1x16x16x128xf32, #tpu.memory_space<vmem>>, vector<1x1x16x128xf32>
    %6 = vector.shape_cast %5 : vector<1x1x16x128xf32> to vector<1x16x128xf32>
    %c0_2 = arith.constant 0 : index
    %7 = arith.index_cast %1 : i32 to index
    %c0_3 = arith.constant 0 : index
    %c0_4 = arith.constant 0 : index
    %8 = vector.load %arg2[%c0_2, %7, %c0_3, %c0_4] : memref<1x16x16x128xf32, #tpu.memory_space<vmem>>, vector<1x16x16x128xf32>
    %9 = vector.shape_cast %8 : vector<1x16x16x128xf32> to vector<16x16x128xf32>
    %c16_i32_5 = arith.constant 16 : i32
    %10 = arith.addi %1, %c16_i32_5 : i32
    %c15_i32 = arith.constant 15 : i32
    %11 = arith.minsi %10, %c15_i32 : i32
    %c0_6 = arith.constant 0 : index
    %12 = arith.index_cast %11 : i32 to index
    %c0_7 = arith.constant 0 : index
    %c0_8 = arith.constant 0 : index
    %13 = vector.load %arg2[%c0_6, %12, %c0_7, %c0_8] : memref<1x16x16x128xf32, #tpu.memory_space<vmem>>, vector<1x1x16x128xf32>
    %14 = vector.shape_cast %13 : vector<1x1x16x128xf32> to vector<1x16x128xf32>
    %15 = tpu.concatenate %6, %9, %14 in 0 : vector<1x16x128xf32>, vector<16x16x128xf32>, vector<1x16x128xf32> -> vector<18x16x128xf32>
    %16 = vector.shape_cast %15 : vector<18x16x128xf32> to vector<288x128xf32>
    %17 = arith.truncf %16 : vector<288x128xf32> to vector<288x128xbf16>
    %c0_9 = arith.constant 0 : index
    %c0_10 = arith.constant 0 : index
    %18 = vector.load %arg3[%c0_9, %c0_10] : memref<128x32xbf16, #tpu.memory_space<vmem>>, vector<128x32xbf16>
    %cst = arith.constant dense<0.000000e+00> : vector<288x32xf32>
    %19 = tpu.matmul %17, %18, %cst {dimension_numbers = #tpu.dot_dimension_numbers<[1], [0], [0], [1], [0, 0, 1, 1], [], []>} : vector<288x128xbf16>, vector<128x32xbf16>, vector<288x32xf32> -> vector<288x32xf32>
    %c0_11 = arith.constant 0 : index
    %c0_12 = arith.constant 0 : index
    %20 = vector.load %arg4[%c0_11, %c0_12] : memref<1x32xf32, #tpu.memory_space<vmem>>, vector<1x32xf32>
    %21 = vector.broadcast %20 : vector<1x32xf32> to vector<288x32xf32>
    %22 = arith.addf %19, %21 : vector<288x32xf32>
    %cst_13 = arith.constant 0.000000e+00 : f32
    %23 = vector.broadcast %cst_13 : f32 to vector<288x32xf32>
    %24 = arith.maximumf %22, %23 : vector<288x32xf32>
    %25 = arith.truncf %24 : vector<288x32xf32> to vector<288x32xbf16>
    %26 = vector.shape_cast %25 : vector<288x32xbf16> to vector<18x16x32xbf16>
    %cst_14 = arith.constant 0.000000e+00 : bf16
    %27 = vector.broadcast %cst_14 : bf16 to vector<18x1x32xbf16>
    %c0_15 = arith.constant 0 : index
    %c0_16 = arith.constant 0 : index
    %c0_17 = arith.constant 0 : index
    %28 = vector.load %arg10[%c0_15, %c0_16, %c0_17] : memref<18x18x32xbf16, #tpu.memory_space<vmem>>, vector<18x1x32xbf16>
    tpu.vector_store %arg10[%c0_15, %c0_16, %c0_17], %27 {strides = array<i32>} : memref<18x18x32xbf16, #tpu.memory_space<vmem>>, vector<18x1x32xbf16>,
    %c0_18 = arith.constant 0 : index
    %c17 = arith.constant 17 : index
    %c0_19 = arith.constant 0 : index
    %29 = vector.load %arg10[%c0_18, %c17, %c0_19] : memref<18x18x32xbf16, #tpu.memory_space<vmem>>, vector<18x1x32xbf16>
    tpu.vector_store %arg10[%c0_18, %c17, %c0_19], %27 {strides = array<i32>} : memref<18x18x32xbf16, #tpu.memory_space<vmem>>, vector<18x1x32xbf16>,
    %30 = vector.extract_strided_slice %26 {offsets = [0, 0, 0], sizes = [1, 16, 32], strides = [1, 1, 1]} : vector<18x16x32xbf16> to vector<1x16x32xbf16>
    %c0_i32_20 = arith.constant 0 : i32
    %31 = arith.cmpi sgt, %1, %c0_i32_20 : i32
    %32 = arith.extui %31 : i1 to i32
    %33 = arith.sitofp %32 : i32 to f32
    %34 = arith.truncf %33 : f32 to bf16
    %35 = vector.broadcast %34 : bf16 to vector<1x16x32xbf16>
    %36 = arith.mulf %30, %35 : vector<1x16x32xbf16>
    %c0_21 = arith.constant 0 : index
    %c1 = arith.constant 1 : index
    %c0_22 = arith.constant 0 : index
    %37 = vector.load %arg10[%c0_21, %c1, %c0_22] : memref<18x18x32xbf16, #tpu.memory_space<vmem>>, vector<1x16x32xbf16>
    tpu.vector_store %arg10[%c0_21, %c1, %c0_22], %36 {strides = array<i32>} : memref<18x18x32xbf16, #tpu.memory_space<vmem>>, vector<1x16x32xbf16>,
    %38 = vector.extract_strided_slice %26 {offsets = [1, 0, 0], sizes = [16, 16, 32], strides = [1, 1, 1]} : vector<18x16x32xbf16> to vector<16x16x32xbf16>
    %c1_23 = arith.constant 1 : index
    %c1_24 = arith.constant 1 : index
    %c0_25 = arith.constant 0 : index
    %39 = vector.load %arg10[%c1_23, %c1_24, %c0_25] : memref<18x18x32xbf16, #tpu.memory_space<vmem>>, vector<16x16x32xbf16>
    tpu.vector_store %arg10[%c1_23, %c1_24, %c0_25], %38 {strides = array<i32>} : memref<18x18x32xbf16, #tpu.memory_space<vmem>>, vector<16x16x32xbf16>,
    %40 = vector.extract_strided_slice %26 {offsets = [17, 0, 0], sizes = [1, 16, 32], strides = [1, 1, 1]} : vector<18x16x32xbf16> to vector<1x16x32xbf16>
    %c16_i32_26 = arith.constant 16 : i32
    %41 = arith.addi %1, %c16_i32_26 : i32
    %c16_i32_27 = arith.constant 16 : i32
    %42 = arith.cmpi slt, %41, %c16_i32_27 : i32
    %43 = arith.extui %42 : i1 to i32
    %44 = arith.sitofp %43 : i32 to f32
    %45 = arith.truncf %44 : f32 to bf16
    %46 = vector.broadcast %45 : bf16 to vector<1x16x32xbf16>
    %47 = arith.mulf %40, %46 : vector<1x16x32xbf16>
    %c17_28 = arith.constant 17 : index
    %c1_29 = arith.constant 1 : index
    %c0_30 = arith.constant 0 : index
    %48 = vector.load %arg10[%c17_28, %c1_29, %c0_30] : memref<18x18x32xbf16, #tpu.memory_space<vmem>>, vector<1x16x32xbf16>
    tpu.vector_store %arg10[%c17_28, %c1_29, %c0_30], %47 {strides = array<i32>} : memref<18x18x32xbf16, #tpu.memory_space<vmem>>, vector<1x16x32xbf16>,
    %c0_31 = arith.constant 0 : index
    %c0_32 = arith.constant 0 : index
    %c0_33 = arith.constant 0 : index
    %49 = vector.load %arg10[%c0_31, %c0_32, %c0_33] : memref<18x18x32xbf16, #tpu.memory_space<vmem>>, vector<16x16x32xbf16>
    %c0_34 = arith.constant 0 : index
    %c1_35 = arith.constant 1 : index
    %c0_36 = arith.constant 0 : index
    %50 = vector.load %arg10[%c0_34, %c1_35, %c0_36] : memref<18x18x32xbf16, #tpu.memory_space<vmem>>, vector<16x16x32xbf16>
    %c0_37 = arith.constant 0 : index
    %c2 = arith.constant 2 : index
    %c0_38 = arith.constant 0 : index
    %51 = vector.load %arg10[%c0_37, %c2, %c0_38] : memref<18x18x32xbf16, #tpu.memory_space<vmem>>, vector<16x16x32xbf16>
    %c1_39 = arith.constant 1 : index
    %c0_40 = arith.constant 0 : index
    %c0_41 = arith.constant 0 : index
    %52 = vector.load %arg10[%c1_39, %c0_40, %c0_41] : memref<18x18x32xbf16, #tpu.memory_space<vmem>>, vector<16x16x32xbf16>
    %c1_42 = arith.constant 1 : index
    %c1_43 = arith.constant 1 : index
    %c0_44 = arith.constant 0 : index
    %53 = vector.load %arg10[%c1_42, %c1_43, %c0_44] : memref<18x18x32xbf16, #tpu.memory_space<vmem>>, vector<16x16x32xbf16>
    %c1_45 = arith.constant 1 : index
    %c2_46 = arith.constant 2 : index
    %c0_47 = arith.constant 0 : index
    %54 = vector.load %arg10[%c1_45, %c2_46, %c0_47] : memref<18x18x32xbf16, #tpu.memory_space<vmem>>, vector<16x16x32xbf16>
    %c2_48 = arith.constant 2 : index
    %c0_49 = arith.constant 0 : index
    %c0_50 = arith.constant 0 : index
    %55 = vector.load %arg10[%c2_48, %c0_49, %c0_50] : memref<18x18x32xbf16, #tpu.memory_space<vmem>>, vector<16x16x32xbf16>
    %c2_51 = arith.constant 2 : index
    %c1_52 = arith.constant 1 : index
    %c0_53 = arith.constant 0 : index
    %56 = vector.load %arg10[%c2_51, %c1_52, %c0_53] : memref<18x18x32xbf16, #tpu.memory_space<vmem>>, vector<16x16x32xbf16>
    %c2_54 = arith.constant 2 : index
    %c2_55 = arith.constant 2 : index
    %c0_56 = arith.constant 0 : index
    %57 = vector.load %arg10[%c2_54, %c2_55, %c0_56] : memref<18x18x32xbf16, #tpu.memory_space<vmem>>, vector<16x16x32xbf16>
    %58 = tpu.concatenate %49, %50, %51, %52, %53, %54, %55, %56, %57 in 2 : vector<16x16x32xbf16>, vector<16x16x32xbf16>, vector<16x16x32xbf16>, vector<16x16x32xbf16>, vector<16x16x32xbf16>, vector<16x16x32xbf16>, vector<16x16x32xbf16>, vector<16x16x32xbf16>, vector<16x16x32xbf16> -> vector<16x16x288xbf16>
    %59 = vector.shape_cast %58 : vector<16x16x288xbf16> to vector<256x288xbf16>
    %c0_57 = arith.constant 0 : index
    %c0_58 = arith.constant 0 : index
    %60 = vector.load %arg5[%c0_57, %c0_58] : memref<288x32xbf16, #tpu.memory_space<vmem>>, vector<288x32xbf16>
    %cst_59 = arith.constant dense<0.000000e+00> : vector<256x32xf32>
    %61 = tpu.matmul %59, %60, %cst_59 {dimension_numbers = #tpu.dot_dimension_numbers<[1], [0], [0], [1], [0, 0, 1, 1], [], []>} : vector<256x288xbf16>, vector<288x32xbf16>, vector<256x32xf32> -> vector<256x32xf32>
    %c0_60 = arith.constant 0 : index
    %c0_61 = arith.constant 0 : index
    %62 = vector.load %arg6[%c0_60, %c0_61] : memref<1x32xf32, #tpu.memory_space<vmem>>, vector<1x32xf32>
    %63 = vector.broadcast %62 : vector<1x32xf32> to vector<256x32xf32>
    %64 = arith.addf %61, %63 : vector<256x32xf32>
    %cst_62 = arith.constant 0.000000e+00 : f32
    %65 = vector.broadcast %cst_62 : f32 to vector<256x32xf32>
    %66 = arith.maximumf %64, %65 : vector<256x32xf32>
    %67 = arith.truncf %66 : vector<256x32xf32> to vector<256x32xbf16>
    %c0_63 = arith.constant 0 : index
    %c0_64 = arith.constant 0 : index
    %68 = vector.load %arg7[%c0_63, %c0_64] : memref<32x128xbf16, #tpu.memory_space<vmem>>, vector<32x128xbf16>
    %cst_65 = arith.constant dense<0.000000e+00> : vector<256x128xf32>
    %69 = tpu.matmul %67, %68, %cst_65 {dimension_numbers = #tpu.dot_dimension_numbers<[1], [0], [0], [1], [0, 0, 1, 1], [], []>} : vector<256x32xbf16>, vector<32x128xbf16>, vector<256x128xf32> -> vector<256x128xf32>
    %c0_66 = arith.constant 0 : index
    %c0_67 = arith.constant 0 : index
    %70 = vector.load %arg8[%c0_66, %c0_67] : memref<1x128xf32, #tpu.memory_space<vmem>>, vector<1x128xf32>
    %71 = vector.broadcast %70 : vector<1x128xf32> to vector<256x128xf32>
    %72 = arith.addf %69, %71 : vector<256x128xf32>
    %73 = vector.extract_strided_slice %15 {offsets = [1, 0, 0], sizes = [16, 16, 128], strides = [1, 1, 1]} : vector<18x16x128xf32> to vector<16x16x128xf32>
    %74 = vector.shape_cast %73 : vector<16x16x128xf32> to vector<256x128xf32>
    %75 = arith.addf %72, %74 : vector<256x128xf32>
    %cst_68 = arith.constant 0.000000e+00 : f32
    %76 = vector.broadcast %cst_68 : f32 to vector<256x128xf32>
    %77 = arith.maximumf %75, %76 : vector<256x128xf32>
    %78 = vector.shape_cast %77 : vector<256x128xf32> to vector<1x16x16x128xf32>
    %c0_69 = arith.constant 0 : index
    %c0_70 = arith.constant 0 : index
    %c0_71 = arith.constant 0 : index
    %c0_72 = arith.constant 0 : index
    %79 = vector.load %arg9[%c0_69, %c0_70, %c0_71, %c0_72] : memref<1x16x16x128xf32, #tpu.memory_space<vmem>>, vector<1x16x16x128xf32>
    tpu.vector_store %arg9[%c0_69, %c0_70, %c0_71, %c0_72], %78 {strides = array<i32>} : memref<1x16x16x128xf32, #tpu.memory_space<vmem>>, vector<1x16x16x128xf32>,
    return
  }
  func.func @transform_0(%arg0: i32, %arg1: i32) -> (i32, i32, i32, i32) {
    %c0_i32 = arith.constant 0 : i32
    %c0_i32_0 = arith.constant 0 : i32
    %c0_i32_1 = arith.constant 0 : i32
    %c0_i32_2 = arith.constant 0 : i32
    return %arg0, %c0_i32, %c0_i32_0, %c0_i32_1 : i32, i32, i32, i32
  }
  func.func @transform_1(%arg0: i32, %arg1: i32) -> (i32, i32) {
    %c0_i32 = arith.constant 0 : i32
    %c0_i32_0 = arith.constant 0 : i32
    %c0_i32_1 = arith.constant 0 : i32
    return %c0_i32, %c0_i32_0 : i32, i32
  }
  func.func @transform_2(%arg0: i32, %arg1: i32) -> (i32, i32) {
    %c0_i32 = arith.constant 0 : i32
    %c0_i32_0 = arith.constant 0 : i32
    %c0_i32_1 = arith.constant 0 : i32
    return %c0_i32, %c0_i32_0 : i32, i32
  }
  func.func @transform_3(%arg0: i32, %arg1: i32) -> (i32, i32) {
    %c0_i32 = arith.constant 0 : i32
    %c0_i32_0 = arith.constant 0 : i32
    %c0_i32_1 = arith.constant 0 : i32
    return %c0_i32, %c0_i32_0 : i32, i32
  }
  func.func @transform_4(%arg0: i32, %arg1: i32) -> (i32, i32) {
    %c0_i32 = arith.constant 0 : i32
    %c0_i32_0 = arith.constant 0 : i32
    %c0_i32_1 = arith.constant 0 : i32
    return %c0_i32, %c0_i32_0 : i32, i32
  }
  func.func @transform_5(%arg0: i32, %arg1: i32) -> (i32, i32) {
    %c0_i32 = arith.constant 0 : i32
    %c0_i32_0 = arith.constant 0 : i32
    %c0_i32_1 = arith.constant 0 : i32
    return %c0_i32, %c0_i32_0 : i32, i32
  }
  func.func @transform_6(%arg0: i32, %arg1: i32) -> (i32, i32) {
    %c0_i32 = arith.constant 0 : i32
    %c0_i32_0 = arith.constant 0 : i32
    %c0_i32_1 = arith.constant 0 : i32
    return %c0_i32, %c0_i32_0 : i32, i32
  }
  func.func @transform_7(%arg0: i32, %arg1: i32) -> (i32, i32, i32, i32) {
    %c0_i32 = arith.constant 0 : i32
    %c0_i32_0 = arith.constant 0 : i32
    %c0_i32_1 = arith.constant 0 : i32
    return %arg0, %arg1, %c0_i32, %c0_i32_0 : i32, i32, i32, i32
  }
}

</mosaic_0001>

<llo_original>
// kernel: tpu_custom_call.1
$region0: #{tpu_custom_call.1}
  #allocation0 [shape = 'u32[]', space=smem, size = 0x4, offset = 0x4, fixed_abs, tag = 'smem constant byte address 0x4 - core index']
  #allocation1 [shape = 'u32[144,128]{1,0:T(1,128)}', space=vmem, size = 0x12000, scoped, tag = 'internal scratch']
  #allocation2 [shape = 'bf16[18,18,32]{2,1,0:T(8,128)(2,1)}', space=vmem, size = 0x1b000, scoped, tag = 'scratch operand']
  %s0 = inlined_call_operand.hbm [shape: f32[2,16,16,128], index: 0, kind: input, shape index: {}]
  %s1 = inlined_call_operand.vmem [shape: bf16[128,32], index: 1, kind: input, shape index: {}]
  %s2 = inlined_call_operand.vmem [shape: f32[1,32], index: 2, kind: input, shape index: {}]
  %s3 = inlined_call_operand.vmem [shape: bf16[288,32], index: 3, kind: input, shape index: {}]
  %s4 = inlined_call_operand.vmem [shape: f32[1,32], index: 4, kind: input, shape index: {}]
  %s5 = inlined_call_operand.vmem [shape: bf16[32,128], index: 5, kind: input, shape index: {}]
  %s6 = inlined_call_operand.vmem [shape: f32[1,128], index: 6, kind: input, shape index: {}]
  %s7 = inlined_call_operand.hbm [shape: f32[2,16,16,128], index: 7, kind: output, shape index: {}]
  %s8 = sld [smem:[#allocation0]]
  $region65: #{tpu_custom_call.1} parent=0
    _
  %s10 = ssub.s32 1, %s8
  %s11 = scalar_select 0, %s10, %s8
  $region1: #{tpu_custom_call.1} parent=0
    #allocation3 [shape = 'u8[262144]{0}', space=vmem, size = 0x40000, scoped, tag = 'input window, operand 0']
    #allocation4 [shape = 's32[2]{0}', space=sflag, size = 0x8, scoped, tag = 'scoped memory for tpu_custom_call.1']
    #allocation5 [shape = 's32[2]{0}', space=sflag, size = 0x8, scoped, tag = 'scoped memory for tpu_custom_call.1']
    #allocation6 [shape = 'u8[262144]{0}', space=vmem, size = 0x40000, scoped, tag = 'output window, operand 0']
    %12 = vsyncpa [#allocation4], 0
    %s13 = scalar_lea.sflag [#allocation4], 1
    %14 = vsyncpa %s13, 0
    %15 = vsyncpa [#allocation5], 0
    %s16 = scalar_lea.sflag [#allocation5], 1
    %17 = vsyncpa %s16, 0
    loop: start=0, step=1, limit=4
    $region2: #{tpu_custom_call.1} parent=1 // loop_pre_header
      _
    $region3: #{tpu_custom_call.1} parent=1 // loop_header
      %s19 = sphi 0, %s23
      %p20 = scmp.ge.s32.totalorder %s19, 4
      %s26 = sphi 0, %s38
      %s27 = sphi 0, %s34
      %s28 = sphi 0, %s26
      %s29 = sphi 0, %s27
      %s30 = sphi 0, %s28
      %s31 = sphi 0, %s29
      %s41 = sphi 0, %s43
      %s44 = sphi 0, %s41
      %s45 = sphi 0, %s44
      %s61 = sphi 0, %s45
      %s65 = sphi 0, %s65
      %s67 = sphi 0, %s65
      %s68 = sphi 0, %s67
      %s82 = sphi 0, %s68
      %s86 = sphi 0, %s86
      %s88 = sphi 0, %s86
      %s89 = sphi 0, %s88
      %s103 = sphi 0, %s89
      %s107 = sphi 0, %s107
      %s109 = sphi 0, %s107
      %s110 = sphi 0, %s109
      %s124 = sphi 0, %s110
      %s128 = sphi 0, %s128
      %s130 = sphi 0, %s128
      %s131 = sphi 0, %s130
      %s145 = sphi 0, %s131
      %s149 = sphi 0, %s149
      %s151 = sphi 0, %s149
      %s152 = sphi 0, %s151
      %s166 = sphi 0, %s152
      %s170 = sphi 0, %s170
      %s172 = sphi 0, %s170
      %s173 = sphi 0, %s172
      %s187 = sphi 0, %s173
      %s195 = sphi 0, %s197
      %s198 = sphi 0, %s195
      %s199 = sphi 0, %s198
      %s215 = sphi 0, %s199
    $region4: #{tpu_custom_call.1} parent=1 // loop_header_branch
      %22 = sbr.rel (%p20) target = $region8
    $region5: #{tpu_custom_call.1} parent=1 // loop_body
      %s24 = ssub.s32 %s19, 1
      %s25 = ssub.s32 %s19, 2
      %s32 = sadd.s32 1, %s27
      %p33 = scmp.ge.s32.totalorder %s32, 1
      %s34 = scalar_select %p33, 0, %s32
      %s35 = sadd.s32 1, %s26
      %s36 = scalar_select %p33, %s35, %s26
      %p37 = scmp.ge.s32.totalorder %s36, 2
      %s38 = scalar_select %p37, 0, %s36
      %s39 = ssub.s32 %s26, %s38
      %p40 = scmp.eq.s32.totalorder %s39, 0
      %s42 = sadd.s32 %s41, 1
      %s43 = scalar_select %p40, %s41, %s42
      %p46 = pneg %p40
      %p47 = scmp.eq.s32.totalorder %s19, 1
      %p48 = por %p46, %p47
      %p49 = scmp.ne.s32.totalorder %s41, %s44
      %p50 = scmp.eq.s32.totalorder %s19, 0
      %p51 = por %p49, %p50
      %p52 = scmp.ne.s32.totalorder %s41, %s44
      %p53 = scmp.eq.s32.totalorder %s24, 1
      %p54 = por %p52, %p53
      %p55 = scmp.ne.s32.totalorder %s44, %s45
      %p56 = scmp.eq.s32.totalorder %s24, 0
      %p57 = por %p55, %p56
      %p58 = scmp.ne.s32.totalorder %s44, %s45
      %p59 = scmp.eq.s32.totalorder %s25, 1
      %p60 = por %p58, %p59
      %p62 = scmp.ne.s32.totalorder %s45, %s61
      %p63 = scmp.eq.s32.totalorder %s25, 0
      %p64 = por %p62, %p63
      %s66 = sadd.s32 %s65, 1
      %p69 = scmp.eq.s32.totalorder %s19, 1
      %p70 = scmp.ne.s32.totalorder %s65, %s67
      %p71 = scmp.eq.s32.totalorder %s19, 0
      %p72 = por %p70, %p71
      %p73 = scmp.ne.s32.totalorder %s65, %s67
      %p74 = scmp.eq.s32.totalorder %s24, 1
      %p75 = por %p73, %p74
      %p76 = scmp.ne.s32.totalorder %s67, %s68
      %p77 = scmp.eq.s32.totalorder %s24, 0
      %p78 = por %p76, %p77
      %p79 = scmp.ne.s32.totalorder %s67, %s68
      %p80 = scmp.eq.s32.totalorder %s25, 1
      %p81 = por %p79, %p80
      %p83 = scmp.ne.s32.totalorder %s68, %s82
      %p84 = scmp.eq.s32.totalorder %s25, 0
      %p85 = por %p83, %p84
      %s87 = sadd.s32 %s86, 1
      %p90 = scmp.eq.s32.totalorder %s19, 1
      %p91 = scmp.ne.s32.totalorder %s86, %s88
      %p92 = scmp.eq.s32.totalorder %s19, 0
      %p93 = por %p91, %p92
      %p94 = scmp.ne.s32.totalorder %s86, %s88
      %p95 = scmp.eq.s32.totalorder %s24, 1
      %p96 = por %p94, %p95
      %p97 = scmp.ne.s32.totalorder %s88, %s89
      %p98 = scmp.eq.s32.totalorder %s24, 0
      %p99 = por %p97, %p98
      %p100 = scmp.ne.s32.totalorder %s88, %s89
      %p101 = scmp.eq.s32.totalorder %s25, 1
      %p102 = por %p100, %p101
      %p104 = scmp.ne.s32.totalorder %s89, %s103
      %p105 = scmp.eq.s32.totalorder %s25, 0
      %p106 = por %p104, %p105
      %s108 = sadd.s32 %s107, 1
      %p111 = scmp.eq.s32.totalorder %s19, 1
      %p112 = scmp.ne.s32.totalorder %s107, %s109
      %p113 = scmp.eq.s32.totalorder %s19, 0
      %p114 = por %p112, %p113
      %p115 = scmp.ne.s32.totalorder %s107, %s109
      %p116 = scmp.eq.s32.totalorder %s24, 1
      %p117 = por %p115, %p116
      %p118 = scmp.ne.s32.totalorder %s109, %s110
      %p119 = scmp.eq.s32.totalorder %s24, 0
      %p120 = por %p118, %p119
      %p121 = scmp.ne.s32.totalorder %s109, %s110
      %p122 = scmp.eq.s32.totalorder %s25, 1
      %p123 = por %p121, %p122
      %p125 = scmp.ne.s32.totalorder %s110, %s124
      %p126 = scmp.eq.s32.totalorder %s25, 0
      %p127 = por %p125, %p126
      %s129 = sadd.s32 %s128, 1
      %p132 = scmp.eq.s32.totalorder %s19, 1
      %p133 = scmp.ne.s32.totalorder %s128, %s130
      %p134 = scmp.eq.s32.totalorder %s19, 0
      %p135 = por %p133, %p134
      %p136 = scmp.ne.s32.totalorder %s128, %s130
      %p137 = scmp.eq.s32.totalorder %s24, 1
      %p138 = por %p136, %p137
      %p139 = scmp.ne.s32.totalorder %s130, %s131
      %p140 = scmp.eq.s32.totalorder %s24, 0
      %p141 = por %p139, %p140
      %p142 = scmp.ne.s32.totalorder %s130, %s131
      %p143 = scmp.eq.s32.totalorder %s25, 1
      %p144 = por %p142, %p143
      %p146 = scmp.ne.s32.totalorder %s131, %s145
      %p147 = scmp.eq.s32.totalorder %s25, 0
      %p148 = por %p146, %p147
      %s150 = sadd.s32 %s149, 1
      %p153 = scmp.eq.s32.totalorder %s19, 1
      %p154 = scmp.ne.s32.totalorder %s149, %s151
      %p155 = scmp.eq.s32.totalorder %s19, 0
      %p156 = por %p154, %p155
      %p157 = scmp.ne.s32.totalorder %s149, %s151
      %p158 = scmp.eq.s32.totalorder %s24, 1
      %p159 = por %p157, %p158
      %p160 = scmp.ne.s32.totalorder %s151, %s152
      %p161 = scmp.eq.s32.totalorder %s24, 0
      %p162 = por %p160, %p161
      %p163 = scmp.ne.s32.totalorder %s151, %s152
      %p164 = scmp.eq.s32.totalorder %s25, 1
      %p165 = por %p163, %p164
      %p167 = scmp.ne.s32.totalorder %s152, %s166
      %p168 = scmp.eq.s32.totalorder %s25, 0
      %p169 = por %p167, %p168
      %s171 = sadd.s32 %s170, 1
      %p174 = scmp.eq.s32.totalorder %s19, 1
      %p175 = scmp.ne.s32.totalorder %s170, %s172
      %p176 = scmp.eq.s32.totalorder %s19, 0
      %p177 = por %p175, %p176
      %p178 = scmp.ne.s32.totalorder %s170, %s172
      %p179 = scmp.eq.s32.totalorder %s24, 1
      %p180 = por %p178, %p179
      %p181 = scmp.ne.s32.totalorder %s172, %s173
      %p182 = scmp.eq.s32.totalorder %s24, 0
      %p183 = por %p181, %p182
      %p184 = scmp.ne.s32.totalorder %s172, %s173
      %p185 = scmp.eq.s32.totalorder %s25, 1
      %p186 = por %p184, %p185
      %p188 = scmp.ne.s32.totalorder %s173, %s187
      %p189 = scmp.eq.s32.totalorder %s25, 0
      %p190 = por %p188, %p189
      %s191 = ssub.s32 %s26, %s38
      %s192 = ssub.s32 %s27, %s34
      %s193 = sor.u32 %s191, %s192
      %p194 = scmp.eq.s32.totalorder %s193, 0
      %s196 = sadd.s32 %s195, 1
      %s197 = scalar_select %p194, %s195, %s196
      %p200 = pneg %p194
      %p201 = scmp.eq.s32.totalorder %s19, 1
      %p202 = por %p200, %p201
      %p203 = scmp.ne.s32.totalorder %s195, %s198
      %p204 = scmp.eq.s32.totalorder %s19, 0
      %p205 = por %p203, %p204
      %p206 = scmp.ne.s32.totalorder %s195, %s198
      %p207 = scmp.eq.s32.totalorder %s24, 1
      %p208 = por %p206, %p207
      %p209 = scmp.ne.s32.totalorder %s198, %s199
      %p210 = scmp.eq.s32.totalorder %s24, 0
      %p211 = por %p209, %p210
      %p212 = scmp.ne.s32.totalorder %s198, %s199
      %p213 = scmp.eq.s32.totalorder %s25, 1
      %p214 = por %p212, %p213
      %p216 = scmp.ne.s32.totalorder %s199, %s215
      %p217 = scmp.eq.s32.totalorder %s25, 0
      %p218 = por %p216, %p217
      %p219 = scmp.le.s32.totalorder 1, %s19
      %p220 = scmp.lt.s32.totalorder %s19, 3
      %p221 = pnand %p219, %p220
      %p222 = pneg %p221
      // Predicated region
      $region9: #{tpu_custom_call.1} parent=5 // pred_check
        _
      $region10: #{tpu_custom_call.1} parent=5 // pred_check_branch
        %224 = sbr.rel (%p221) target = $region12
      $region11: #{tpu_custom_call.1} parent=5 // pred_region
        %s225 = ssub.s32 %s19, 1
        // Predicated region
        $region13: #{tpu_custom_call.1} parent=11 // pred_check
          %p226 = pneg %p78
        $region14: #{tpu_custom_call.1} parent=11 // pred_check_branch
          %228 = sbr.rel (%p226) target = $region16
        $region15: #{tpu_custom_call.1} parent=11 // pred_region
          _
        $region16: #{tpu_custom_call.1} parent=11 // pred_fallthru
          _
        // Predicated region
        $region17: #{tpu_custom_call.1} parent=11 // pred_check
          %p229 = pneg %p99
        $region18: #{tpu_custom_call.1} parent=11 // pred_check_branch
          %231 = sbr.rel (%p229) target = $region20
        $region19: #{tpu_custom_call.1} parent=11 // pred_region
          _
        $region20: #{tpu_custom_call.1} parent=11 // pred_fallthru
          _
        // Predicated region
        $region21: #{tpu_custom_call.1} parent=11 // pred_check
          %p232 = pneg %p120
        $region22: #{tpu_custom_call.1} parent=11 // pred_check_branch
          %234 = sbr.rel (%p232) target = $region24
        $region23: #{tpu_custom_call.1} parent=11 // pred_region
          _
        $region24: #{tpu_custom_call.1} parent=11 // pred_fallthru
          _
        // Predicated region
        $region25: #{tpu_custom_call.1} parent=11 // pred_check
          %p235 = pneg %p141
        $region26: #{tpu_custom_call.1} parent=11 // pred_check_branch
          %237 = sbr.rel (%p235) target = $region28
        $region27: #{tpu_custom_call.1} parent=11 // pred_region
          _
        $region28: #{tpu_custom_call.1} parent=11 // pred_fallthru
          _
        // Predicated region
        $region29: #{tpu_custom_call.1} parent=11 // pred_check
          %p238 = pneg %p162
        $region30: #{tpu_custom_call.1} parent=11 // pred_check_branch
          %240 = sbr.rel (%p238) target = $region32
        $region31: #{tpu_custom_call.1} parent=11 // pred_region
          _
        $region32: #{tpu_custom_call.1} parent=11 // pred_fallthru
          _
        // Predicated region
        $region33: #{tpu_custom_call.1} parent=11 // pred_check
          %p241 = pneg %p183
        $region34: #{tpu_custom_call.1} parent=11 // pred_check_branch
          %243 = sbr.rel (%p241) target = $region36
        $region35: #{tpu_custom_call.1} parent=11 // pred_region
          _
        $region36: #{tpu_custom_call.1} parent=11 // pred_fallthru
          _
      $region12: #{tpu_custom_call.1} parent=5 // pred_fallthru
        _
      %p244 = scmp.lt.s32.totalorder %s19, 2
      // Predicated region
      $region37: #{tpu_custom_call.1} parent=5 // pred_check
        %p245 = pneg %p244
      $region38: #{tpu_custom_call.1} parent=5 // pred_check_branch
        %247 = sbr.rel (%p245) target = $region40
      $region39: #{tpu_custom_call.1} parent=5 // pred_region
        // Predicated region
        $region41: #{tpu_custom_call.1} parent=39 // pred_check
          %p248 = pneg %p51
        $region42: #{tpu_custom_call.1} parent=39 // pred_check_branch
          %250 = sbr.rel (%p248) target = $region44
        $region43: #{tpu_custom_call.1} parent=39 // pred_region
          %s251 = sand.u32 %s41, 1
          %s252 = scalar_lea.sflag [#allocation4], %s251
          %s253 = sand.u32 %s41, 1
          %s254 = smul.addr %s253, 256
          %s255 = scalar_lea.vmem [#allocation3], %s254
          %s257 = ssub.s32 4096, 4096
          %258 = vsyncadd %s252, %s257
          %s259 = smul.addr %s26, 32
          %s260 = smul.addr %s259, 128
          %s261 = scalar_lea.hbm %s0, %s260
          %s262 = sshll.u32 %s255, 4
          %s263 = int_to_ptr.vmem [resolvable:$true] %s262
          %268 = dma.hbm_to_vmem [thread:$0]  %s261, 4096, %s263, %s252, 128, 128, 8
        $region44: #{tpu_custom_call.1} parent=39 // pred_fallthru
          _
      $region40: #{tpu_custom_call.1} parent=5 // pred_fallthru
        _
      %p269 = scmp.le.s32.totalorder 1, %s19
      %p270 = scmp.lt.s32.totalorder %s19, 3
      %p271 = pnand %p269, %p270
      %p272 = pneg %p271
      // Predicated region
      $region45: #{tpu_custom_call.1} parent=5 // pred_check
        _
      $region46: #{tpu_custom_call.1} parent=5 // pred_check_branch
        %274 = sbr.rel (%p271) target = $region48
      $region47: #{tpu_custom_call.1} parent=5 // pred_region
        %s275 = ssub.s32 %s19, 1
        %s276 = sand.u32 %s44, 1
        %s277 = scalar_lea.sflag [#allocation4], %s276
        %s278 = sand.u32 %s44, 1
        %s279 = smul.addr %s278, 256
        %s280 = scalar_lea.vmem [#allocation3], %s279
        // Predicated region
        $region49: #{tpu_custom_call.1} parent=47 // pred_check
          %p281 = pneg %p57
        $region50: #{tpu_custom_call.1} parent=47 // pred_check_branch
          %283 = sbr.rel (%p281) target = $region52
        $region51: #{tpu_custom_call.1} parent=47 // pred_region
          %284 = dma.done %s277, 4096
        $region52: #{tpu_custom_call.1} parent=47 // pred_fallthru
          _
        %s285 = sand.u32 %s44, 1
        %s286 = scalar_lea.sflag [#allocation4], %s285
        %s287 = sand.u32 %s44, 1
        %s288 = smul.addr %s287, 256
        %s289 = scalar_lea.vmem [#allocation3], %s288
        %p290 = pneg %p57
        %p291 = pneg %p54
        %p292 = pneg %p78
        %p293 = pneg %p75
        %p294 = pneg %p99
        %p295 = pneg %p96
        %p296 = pneg %p120
        %p297 = pneg %p117
        %p298 = pneg %p141
        %p299 = pneg %p138
        %p300 = pneg %p162
        %p301 = pneg %p159
        %p302 = pneg %p183
        %p303 = pneg %p180
        %p304 = pneg %p211
        %p305 = pneg %p208
        %s306 = sand.u32 %s198, 1
        %s307 = scalar_lea.sflag [#allocation5], %s306
        %s308 = sand.u32 %s198, 1
        %s309 = smul.addr %s308, 256
        %s310 = scalar_lea.vmem [#allocation6], %s309
        %s311 = smul.u32 16, %s29
        %s313 = smul.u32 %s29, 16
        %s314 = ssub.s32 %s313, 1
        %p315 = scmp.gt.s32.totalorder %s314, 0
        %s316 = scalar_select %p315, %s314, 0
        %s317 = smul.u32 %s316, 16
        %s318 = scalar_lea.vmem %s280, %s317 [#allocation3]
        %v319 = vld [vmem:[%s318] sm:$0xff]
        %v320 = vld [vmem:[%s318 + $0x8] sm:$0xff]
        %s321 = smul.u32 %s313, 16
        %s322 = scalar_lea.vmem %s280, %s321 [#allocation3]
        %v323 = vld [vmem:[%s322] sm:$0xff]
        %v324 = vld [vmem:[%s322 + $0x8] sm:$0xff]
        %v325 = vld [vmem:[%s322 + $0x10] sm:$0xff]
        %v326 = vld [vmem:[%s322 + $0x18] sm:$0xff]
        %v327 = vld [vmem:[%s322 + $0x20] sm:$0xff]
        %v328 = vld [vmem:[%s322 + $0x28] sm:$0xff]
        %v329 = vld [vmem:[%s322 + $0x30] sm:$0xff]
        %v330 = vld [vmem:[%s322 + $0x38] sm:$0xff]
        %v331 = vld [vmem:[%s322 + $0x40] sm:$0xff]
        %v332 = vld [vmem:[%s322 + $0x48] sm:$0xff]
        %v333 = vld [vmem:[%s322 + $0x50] sm:$0xff]
        %v334 = vld [vmem:[%s322 + $0x58] sm:$0xff]
        %v335 = vld [vmem:[%s322 + $0x60] sm:$0xff]
        %v336 = vld [vmem:[%s322 + $0x68] sm:$0xff]
        %v337 = vld [vmem:[%s322 + $0x70] sm:$0xff]
        %v338 = vld [vmem:[%s322 + $0x78] sm:$0xff]
        %v339 = vld [vmem:[%s322 + $0x80] sm:$0xff]
        %v340 = vld [vmem:[%s322 + $0x88] sm:$0xff]
        %v341 = vld [vmem:[%s322 + $0x90] sm:$0xff]
        %v342 = vld [vmem:[%s322 + $0x98] sm:$0xff]
        %v343 = vld [vmem:[%s322 + $0xa0] sm:$0xff]
        %v344 = vld [vmem:[%s322 + $0xa8] sm:$0xff]
        %v345 = vld [vmem:[%s322 + $0xb0] sm:$0xff]
        %v346 = vld [vmem:[%s322 + $0xb8] sm:$0xff]
        %v347 = vld [vmem:[%s322 + $0xc0] sm:$0xff]
        %v348 = vld [vmem:[%s322 + $0xc8] sm:$0xff]
        %v349 = vld [vmem:[%s322 + $0xd0] sm:$0xff]
        %v350 = vld [vmem:[%s322 + $0xd8] sm:$0xff]
        %v351 = vld [vmem:[%s322 + $0xe0] sm:$0xff]
        %v352 = vld [vmem:[%s322 + $0xe8] sm:$0xff]
        %v353 = vld [vmem:[%s322 + $0xf0] sm:$0xff]
        %v354 = vld [vmem:[%s322 + $0xf8] sm:$0xff]
        %s355 = sadd.s32 %s313, 16
        %p356 = scmp.lt.s32.totalorder %s355, 15
        %s357 = scalar_select %p356, %s355, 15
        %s358 = smul.u32 %s357, 16
        %s359 = scalar_lea.vmem %s280, %s358 [#allocation3]
        %v360 = vld [vmem:[%s359] sm:$0xff]
        %v361 = vld [vmem:[%s359 + $0x8] sm:$0xff]
        %v362 = vpack.c.bf16 %v320, %v319
        %v363 = vpack.c.bf16 %v324, %v323
        %v364 = vpack.c.bf16 %v326, %v325
        %v365 = vpack.c.bf16 %v328, %v327
        %v366 = vpack.c.bf16 %v330, %v329
        %v367 = vpack.c.bf16 %v332, %v331
        %v368 = vpack.c.bf16 %v334, %v333
        %v369 = vpack.c.bf16 %v336, %v335
        %v370 = vpack.c.bf16 %v338, %v337
        %v371 = vpack.c.bf16 %v340, %v339
        %v372 = vpack.c.bf16 %v342, %v341
        %v373 = vpack.c.bf16 %v344, %v343
        %v374 = vpack.c.bf16 %v346, %v345
        %v375 = vpack.c.bf16 %v348, %v347
        %v376 = vpack.c.bf16 %v350, %v349
        %v377 = vpack.c.bf16 %v352, %v351
        %v378 = vpack.c.bf16 %v354, %v353
        %v379 = vpack.c.bf16 %v361, %v360
        %v380 = vld [vmem:[%s1] sm:$0xf]
        %v381 = vld [vmem:[%s1 + $0x4] sm:$0xf]
        %v382 = vld [vmem:[%s1 + $0x8] sm:$0xf]
        %v383 = vld [vmem:[%s1 + $0xc] sm:$0xf]
        %v384 = vld [vmem:[%s1 + $0x10] sm:$0xf]
        %v385 = vld [vmem:[%s1 + $0x14] sm:$0xf]
        %v386 = vld [vmem:[%s1 + $0x18] sm:$0xf]
        %v387 = vld [vmem:[%s1 + $0x1c] sm:$0xf]
        %v388 = vld [vmem:[%s1 + $0x20] sm:$0xf]
        %v389 = vld [vmem:[%s1 + $0x24] sm:$0xf]
        %v390 = vld [vmem:[%s1 + $0x28] sm:$0xf]
        %v391 = vld [vmem:[%s1 + $0x2c] sm:$0xf]
        %v392 = vld [vmem:[%s1 + $0x30] sm:$0xf]
        %v393 = vld [vmem:[%s1 + $0x34] sm:$0xf]
        %v394 = vld [vmem:[%s1 + $0x38] sm:$0xf]
        %v395 = vld [vmem:[%s1 + $0x3c] sm:$0xf]
        %v396 = vld [vmem:[%s2] sm:$0x1]
        %v398 = vlaneseq
        %v399 = vshrl.u32 %v398, 7
        %v400 = vsub.s32 0, %v399
        %v401 = vrot.slane %v396, %v400
        %v419 = vunpack.c.l.b16 %v380
        %v420 = vunpack.c.l.b16 %v381
        %v421 = vunpack.c.l.b16 %v382
        %v422 = vunpack.c.l.b16 %v383
        %v423 = vunpack.c.l.b16 %v384
        %v424 = vunpack.c.l.b16 %v385
        %v425 = vunpack.c.l.b16 %v386
        %v426 = vunpack.c.l.b16 %v387
        %v427 = vunpack.c.l.b16 %v388
        %v428 = vunpack.c.l.b16 %v389
        %v429 = vunpack.c.l.b16 %v390
        %v430 = vunpack.c.l.b16 %v391
        %v431 = vunpack.c.l.b16 %v392
        %v432 = vunpack.c.l.b16 %v393
        %v433 = vunpack.c.l.b16 %v394
        %v434 = vunpack.c.l.b16 %v395
        %v435 = vpack.c.b16 %v420, %v419
        %v436 = vpack.c.b16 %v422, %v421
        %v437 = vpack.c.b16 %v424, %v423
        %v438 = vpack.c.b16 %v426, %v425
        %v439 = vpack.c.b16 %v428, %v427
        %v440 = vpack.c.b16 %v430, %v429
        %v441 = vpack.c.b16 %v432, %v431
        %v442 = vpack.c.b16 %v434, %v433
        %451 = vmatprep.subr.bf16.mxu0 0
        %452 = vmatpush1.bf16.msra.mxu0 %v435
        %453 = vmatprep.subr.bf16.mxu0 0
        %454 = vmatpush1.bf16.msra.mxu0 %v436
        %455 = vmatprep.subr.bf16.mxu0 0
        %456 = vmatpush1.bf16.msra.mxu0 %v437
        %457 = vmatprep.subr.bf16.mxu0 0
        %458 = vmatpush1.bf16.msra.mxu0 %v438
        %459 = vmatprep.subr.bf16.mxu0 0
        %460 = vmatpush1.bf16.msra.mxu0 %v439
        %461 = vmatprep.subr.bf16.mxu0 0
        %462 = vmatpush1.bf16.msra.mxu0 %v440
        %463 = vmatprep.subr.bf16.mxu0 0
        %464 = vmatpush1.bf16.msra.mxu0 %v441
        %465 = vmatprep.subr.bf16.mxu0 0
        %466 = vmatpush1.bf16.msra.mxu0 %v442
        %467 = vmatprep.subr.bf16.mxu0 0
        %468 = vmatpush1.bf16.msra.mxu0 0
        %469 = vmatprep.subr.bf16.mxu0 0
        %470 = vmatpush1.bf16.msra.mxu0 0
        %471 = vmatprep.subr.bf16.mxu0 0
        %472 = vmatpush1.bf16.msra.mxu0 0
        %473 = vmatprep.subr.bf16.mxu0 0
        %474 = vmatpush1.bf16.msra.mxu0 0
        %475 = vmatprep.subr.bf16.mxu0 0
        %476 = vmatpush1.bf16.msra.mxu0 0
        %477 = vmatprep.subr.bf16.mxu0 0
        %478 = vmatpush1.bf16.msra.mxu0 0
        %479 = vmatprep.subr.bf16.mxu0 0
        %480 = vmatpush1.bf16.msra.mxu0 0
        %481 = vmatprep.subr.bf16.mxu0 0
        %482 = vmatpush1.bf16.msra.mxu0 0
        %483 = vmatprep.mubr.bf16.mxu0 0
        %484 = vmatmul.mubr.bf16.gmra.mrb[0].mxu0 %v362
        %v485 = vpop.f32.mrb[0].mxu0
        %v486 = vadd.f32 %v401, %v485
        %v487 = vpop.f32.mrb[0].mxu0
        %v488 = vpop.f32.mrb[0].mxu0
        %v489 = vadd.f32 %v401, %v488
        %v490 = vpop.f32.mrb[0].mxu0
        %491 = vmatprep.mubr.bf16.mxu0 0
        %492 = vmatmul.mubr.bf16.gmra.mrb[0].mxu0 %v363
        %v493 = vpop.f32.mrb[0].mxu0
        %v494 = vadd.f32 %v401, %v493
        %v495 = vpop.f32.mrb[0].mxu0
        %v496 = vpop.f32.mrb[0].mxu0
        %v497 = vadd.f32 %v401, %v496
        %v498 = vpop.f32.mrb[0].mxu0
        %499 = vmatprep.mubr.bf16.mxu0 0
        %500 = vmatmul.mubr.bf16.gmra.mrb[0].mxu0 %v364
        %v501 = vpop.f32.mrb[0].mxu0
        %v502 = vadd.f32 %v401, %v501
        %v503 = vpop.f32.mrb[0].mxu0
        %v504 = vpop.f32.mrb[0].mxu0
        %v505 = vadd.f32 %v401, %v504
        %v506 = vpop.f32.mrb[0].mxu0
        %507 = vmatprep.mubr.bf16.mxu0 0
        %508 = vmatmul.mubr.bf16.gmra.mrb[0].mxu0 %v365
        %v509 = vpop.f32.mrb[0].mxu0
        %v510 = vadd.f32 %v401, %v509
        %v511 = vpop.f32.mrb[0].mxu0
        %v512 = vpop.f32.mrb[0].mxu0
        %v513 = vadd.f32 %v401, %v512
        %v514 = vpop.f32.mrb[0].mxu0
        %515 = vmatprep.mubr.bf16.mxu0 0
        %516 = vmatmul.mubr.bf16.gmra.mrb[0].mxu0 %v366
        %v517 = vpop.f32.mrb[0].mxu0
        %v518 = vadd.f32 %v401, %v517
        %v519 = vpop.f32.mrb[0].mxu0
        %v520 = vpop.f32.mrb[0].mxu0
        %v521 = vadd.f32 %v401, %v520
        %v522 = vpop.f32.mrb[0].mxu0
        %523 = vmatprep.mubr.bf16.mxu0 0
        %524 = vmatmul.mubr.bf16.gmra.mrb[0].mxu0 %v367
        %v525 = vpop.f32.mrb[0].mxu0
        %v526 = vadd.f32 %v401, %v525
        %v527 = vpop.f32.mrb[0].mxu0
        %v528 = vpop.f32.mrb[0].mxu0
        %v529 = vadd.f32 %v401, %v528
        %v530 = vpop.f32.mrb[0].mxu0
        %531 = vmatprep.mubr.bf16.mxu0 0
        %532 = vmatmul.mubr.bf16.gmra.mrb[0].mxu0 %v368
        %v533 = vpop.f32.mrb[0].mxu0
        %v534 = vadd.f32 %v401, %v533
        %v535 = vpop.f32.mrb[0].mxu0
        %v536 = vpop.f32.mrb[0].mxu0
        %v537 = vadd.f32 %v401, %v536
        %v538 = vpop.f32.mrb[0].mxu0
        %539 = vmatprep.mubr.bf16.mxu0 0
        %540 = vmatmul.mubr.bf16.gmra.mrb[0].mxu0 %v369
        %v541 = vpop.f32.mrb[0].mxu0
        %v542 = vadd.f32 %v401, %v541
        %v543 = vpop.f32.mrb[0].mxu0
        %v544 = vpop.f32.mrb[0].mxu0
        %v545 = vadd.f32 %v401, %v544
        %v546 = vpop.f32.mrb[0].mxu0
        %547 = vmatprep.mubr.bf16.mxu0 0
        %548 = vmatmul.mubr.bf16.gmra.mrb[0].mxu0 %v370
        %v549 = vpop.f32.mrb[0].mxu0
        %v550 = vadd.f32 %v401, %v549
        %v551 = vpop.f32.mrb[0].mxu0
        %v552 = vpop.f32.mrb[0].mxu0
        %v553 = vadd.f32 %v401, %v552
        %v554 = vpop.f32.mrb[0].mxu0
        %555 = vmatprep.mubr.bf16.mxu0 0
        %556 = vmatmul.mubr.bf16.gmra.mrb[0].mxu0 %v371
        %v557 = vpop.f32.mrb[0].mxu0
        %v558 = vadd.f32 %v401, %v557
        %v559 = vpop.f32.mrb[0].mxu0
        %v560 = vpop.f32.mrb[0].mxu0
        %v561 = vadd.f32 %v401, %v560
        %v562 = vpop.f32.mrb[0].mxu0
        %563 = vmatprep.mubr.bf16.mxu0 0
        %564 = vmatmul.mubr.bf16.gmra.mrb[0].mxu0 %v372
        %v565 = vpop.f32.mrb[0].mxu0
        %v566 = vadd.f32 %v401, %v565
        %v567 = vpop.f32.mrb[0].mxu0
        %v568 = vpop.f32.mrb[0].mxu0
        %v569 = vadd.f32 %v401, %v568
        %v570 = vpop.f32.mrb[0].mxu0
        %571 = vmatprep.mubr.bf16.mxu0 0
        %572 = vmatmul.mubr.bf16.gmra.mrb[0].mxu0 %v373
        %v573 = vpop.f32.mrb[0].mxu0
        %v574 = vadd.f32 %v401, %v573
        %v575 = vpop.f32.mrb[0].mxu0
        %v576 = vpop.f32.mrb[0].mxu0
        %v577 = vadd.f32 %v401, %v576
        %v578 = vpop.f32.mrb[0].mxu0
        %579 = vmatprep.mubr.bf16.mxu0 0
        %580 = vmatmul.mubr.bf16.gmra.mrb[0].mxu0 %v374
        %v581 = vpop.f32.mrb[0].mxu0
        %v582 = vadd.f32 %v401, %v581
        %v583 = vpop.f32.mrb[0].mxu0
        %v584 = vpop.f32.mrb[0].mxu0
        %v585 = vadd.f32 %v401, %v584
        %v586 = vpop.f32.mrb[0].mxu0
        %587 = vmatprep.mubr.bf16.mxu0 0
        %588 = vmatmul.mubr.bf16.gmra.mrb[0].mxu0 %v375
        %v589 = vpop.f32.mrb[0].mxu0
        %v590 = vadd.f32 %v401, %v589
        %v591 = vpop.f32.mrb[0].mxu0
        %v592 = vpop.f32.mrb[0].mxu0
        %v593 = vadd.f32 %v401, %v592
        %v594 = vpop.f32.mrb[0].mxu0
        %595 = vmatprep.mubr.bf16.mxu0 0
        %596 = vmatmul.mubr.bf16.gmra.mrb[0].mxu0 %v376
        %v597 = vpop.f32.mrb[0].mxu0
        %v598 = vadd.f32 %v401, %v597
        %v599 = vpop.f32.mrb[0].mxu0
        %v600 = vpop.f32.mrb[0].mxu0
        %v601 = vadd.f32 %v401, %v600
        %v602 = vpop.f32.mrb[0].mxu0
        %603 = vmatprep.mubr.bf16.mxu0 0
        %604 = vmatmul.mubr.bf16.gmra.mrb[0].mxu0 %v377
        %v605 = vpop.f32.mrb[0].mxu0
        %v606 = vadd.f32 %v401, %v605
        %v607 = vpop.f32.mrb[0].mxu0
        %v608 = vpop.f32.mrb[0].mxu0
        %v609 = vadd.f32 %v401, %v608
        %v610 = vpop.f32.mrb[0].mxu0
        %611 = vmatprep.mubr.bf16.mxu0 0
        %612 = vmatmul.mubr.bf16.gmra.mrb[0].mxu0 %v378
        %v613 = vpop.f32.mrb[0].mxu0
        %v614 = vadd.f32 %v401, %v613
        %v615 = vpop.f32.mrb[0].mxu0
        %v616 = vpop.f32.mrb[0].mxu0
        %v617 = vadd.f32 %v401, %v616
        %v618 = vpop.f32.mrb[0].mxu0
        %619 = vmatprep.mubr.bf16.mxu0 0
        %620 = vmatmul.mubr.bf16.gmra.mrb[0].mxu0 %v379
        %v621 = vpop.f32.mrb[0].mxu0
        %v622 = vadd.f32 %v401, %v621
        %v623 = vpop.f32.mrb[0].mxu0
        %v624 = vpop.f32.mrb[0].mxu0
        %v625 = vadd.f32 %v401, %v624
        %v626 = vpop.f32.mrb[0].mxu0
        %627 = vdwg.mxu0
        %v628 = vmax.f32 %v486, 0.0
        %v629 = vmax.f32 %v489, 0.0
        %v630 = vmax.f32 %v494, 0.0
        %v631 = vmax.f32 %v497, 0.0
        %v632 = vmax.f32 %v502, 0.0
        %v633 = vmax.f32 %v505, 0.0
        %v634 = vmax.f32 %v510, 0.0
        %v635 = vmax.f32 %v513, 0.0
        %v636 = vmax.f32 %v518, 0.0
        %v637 = vmax.f32 %v521, 0.0
        %v638 = vmax.f32 %v526, 0.0
        %v639 = vmax.f32 %v529, 0.0
        %v640 = vmax.f32 %v534, 0.0
        %v641 = vmax.f32 %v537, 0.0
        %v642 = vmax.f32 %v542, 0.0
        %v643 = vmax.f32 %v545, 0.0
        %v644 = vmax.f32 %v550, 0.0
        %v645 = vmax.f32 %v553, 0.0
        %v646 = vmax.f32 %v558, 0.0
        %v647 = vmax.f32 %v561, 0.0
        %v648 = vmax.f32 %v566, 0.0
        %v649 = vmax.f32 %v569, 0.0
        %v650 = vmax.f32 %v574, 0.0
        %v651 = vmax.f32 %v577, 0.0
        %v652 = vmax.f32 %v582, 0.0
        %v653 = vmax.f32 %v585, 0.0
        %v654 = vmax.f32 %v590, 0.0
        %v655 = vmax.f32 %v593, 0.0
        %v656 = vmax.f32 %v598, 0.0
        %v657 = vmax.f32 %v601, 0.0
        %v658 = vmax.f32 %v606, 0.0
        %v659 = vmax.f32 %v609, 0.0
        %v660 = vmax.f32 %v614, 0.0
        %v661 = vmax.f32 %v617, 0.0
        %v662 = vmax.f32 %v622, 0.0
        %v663 = vmax.f32 %v625, 0.0
        %v664 = vpack.c.bf16 %v629, %v628
        %v665 = vpack.c.bf16 %v631, %v630
        %v666 = vpack.c.bf16 %v633, %v632
        %v667 = vpack.c.bf16 %v635, %v634
        %v668 = vpack.c.bf16 %v637, %v636
        %v669 = vpack.c.bf16 %v639, %v638
        %v670 = vpack.c.bf16 %v641, %v640
        %v671 = vpack.c.bf16 %v643, %v642
        %v672 = vpack.c.bf16 %v645, %v644
        %v673 = vpack.c.bf16 %v647, %v646
        %v674 = vpack.c.bf16 %v649, %v648
        %v675 = vpack.c.bf16 %v651, %v650
        %v676 = vpack.c.bf16 %v653, %v652
        %v677 = vpack.c.bf16 %v655, %v654
        %v678 = vpack.c.bf16 %v657, %v656
        %v679 = vpack.c.bf16 %v659, %v658
        %v680 = vpack.c.bf16 %v661, %v660
        %v681 = vpack.c.bf16 %v663, %v662
        %vm682 = vcmask 253952
        %vm683 = vsmask.f32 256
        %vm684 = vmand %vm682, %vm683
        %v685 = vld [vmem:[#allocation2] sm:$0x1]
        %v686 = vsel %vm684, 0, %v685
        %687 = vst [vmem:[#allocation2] sm:$0x1] %v686
        %v688 = vld [vmem:[#allocation2 + $0xc] sm:$0x1]
        %v689 = vsel %vm684, 0, %v688
        %690 = vst [vmem:[#allocation2 + $0xc] sm:$0x1] %v689
        %v691 = vld [vmem:[#allocation2 + $0x18] sm:$0x1]
        %v692 = vsel %vm684, 0, %v691
        %693 = vst [vmem:[#allocation2 + $0x18] sm:$0x1] %v692
        %v694 = vld [vmem:[#allocation2 + $0x24] sm:$0x1]
        %v695 = vsel %vm684, 0, %v694
        %696 = vst [vmem:[#allocation2 + $0x24] sm:$0x1] %v695
        %v697 = vld [vmem:[#allocation2 + $0x30] sm:$0x1]
        %v698 = vsel %vm684, 0, %v697
        %699 = vst [vmem:[#allocation2 + $0x30] sm:$0x1] %v698
        %v700 = vld [vmem:[#allocation2 + $0x3c] sm:$0x1]
        %v701 = vsel %vm684, 0, %v700
        %702 = vst [vmem:[#allocation2 + $0x3c] sm:$0x1] %v701
        %v703 = vld [vmem:[#allocation2 + $0x48] sm:$0x1]
        %v704 = vsel %vm684, 0, %v703
        %705 = vst [vmem:[#allocation2 + $0x48] sm:$0x1] %v704
        %v706 = vld [vmem:[#allocation2 + $0x54] sm:$0x1]
        %v707 = vsel %vm684, 0, %v706
        %708 = vst [vmem:[#allocation2 + $0x54] sm:$0x1] %v707
        %v709 = vld [vmem:[#allocation2 + $0x60] sm:$0x1]
        %v710 = vsel %vm684, 0, %v709
        %711 = vst [vmem:[#allocation2 + $0x60] sm:$0x1] %v710
        %v712 = vld [vmem:[#allocation2 + $0x6c] sm:$0x1]
        %v713 = vsel %vm684, 0, %v712
        %714 = vst [vmem:[#allocation2 + $0x6c] sm:$0x1] %v713
        %v715 = vld [vmem:[#allocation2 + $0x78] sm:$0x1]
        %v716 = vsel %vm684, 0, %v715
        %717 = vst [vmem:[#allocation2 + $0x78] sm:$0x1] %v716
        %v718 = vld [vmem:[#allocation2 + $0x84] sm:$0x1]
        %v719 = vsel %vm684, 0, %v718
        %720 = vst [vmem:[#allocation2 + $0x84] sm:$0x1] %v719
        %v721 = vld [vmem:[#allocation2 + $0x90] sm:$0x1]
        %v722 = vsel %vm684, 0, %v721
        %723 = vst [vmem:[#allocation2 + $0x90] sm:$0x1] %v722
        %v724 = vld [vmem:[#allocation2 + $0x9c] sm:$0x1]
        %v725 = vsel %vm684, 0, %v724
        %726 = vst [vmem:[#allocation2 + $0x9c] sm:$0x1] %v725
        %v727 = vld [vmem:[#allocation2 + $0xa8] sm:$0x1]
        %v728 = vsel %vm684, 0, %v727
        %729 = vst [vmem:[#allocation2 + $0xa8] sm:$0x1] %v728
        %v730 = vld [vmem:[#allocation2 + $0xb4] sm:$0x1]
        %v731 = vsel %vm684, 0, %v730
        %732 = vst [vmem:[#allocation2 + $0xb4] sm:$0x1] %v731
        %v733 = vld [vmem:[#allocation2 + $0xc0] sm:$0x1]
        %v734 = vsel %vm684, 0, %v733
        %735 = vst [vmem:[#allocation2 + $0xc0] sm:$0x1] %v734
        %v736 = vld [vmem:[#allocation2 + $0xcc] sm:$0x1]
        %v737 = vsel %vm684, 0, %v736
        %738 = vst [vmem:[#allocation2 + $0xcc] sm:$0x1] %v737
        %vm739 = vsmask.f32 7938
        %vm740 = vmand %vm682, %vm739
        %v741 = vld [vmem:[#allocation2 + $0x8] sm:$0x1]
        %v742 = vsel %vm740, 0, %v741
        %743 = vst [vmem:[#allocation2 + $0x8] sm:$0x1] %v742
        %v744 = vld [vmem:[#allocation2 + $0x14] sm:$0x1]
        %v745 = vsel %vm740, 0, %v744
        %746 = vst [vmem:[#allocation2 + $0x14] sm:$0x1] %v745
        %v747 = vld [vmem:[#allocation2 + $0x20] sm:$0x1]
        %v748 = vsel %vm740, 0, %v747
        %749 = vst [vmem:[#allocation2 + $0x20] sm:$0x1] %v748
        %v750 = vld [vmem:[#allocation2 + $0x2c] sm:$0x1]
        %v751 = vsel %vm740, 0, %v750
        %752 = vst [vmem:[#allocation2 + $0x2c] sm:$0x1] %v751
        %v753 = vld [vmem:[#allocation2 + $0x38] sm:$0x1]
        %v754 = vsel %vm740, 0, %v753
        %755 = vst [vmem:[#allocation2 + $0x38] sm:$0x1] %v754
        %v756 = vld [vmem:[#allocation2 + $0x44] sm:$0x1]
        %v757 = vsel %vm740, 0, %v756
        %758 = vst [vmem:[#allocation2 + $0x44] sm:$0x1] %v757
        %v759 = vld [vmem:[#allocation2 + $0x50] sm:$0x1]
        %v760 = vsel %vm740, 0, %v759
        %761 = vst [vmem:[#allocation2 + $0x50] sm:$0x1] %v760
        %v762 = vld [vmem:[#allocation2 + $0x5c] sm:$0x1]
        %v763 = vsel %vm740, 0, %v762
        %764 = vst [vmem:[#allocation2 + $0x5c] sm:$0x1] %v763
        %v765 = vld [vmem:[#allocation2 + $0x68] sm:$0x1]
        %v766 = vsel %vm740, 0, %v765
        %767 = vst [vmem:[#allocation2 + $0x68] sm:$0x1] %v766
        %v768 = vld [vmem:[#allocation2 + $0x74] sm:$0x1]
        %v769 = vsel %vm740, 0, %v768
        %770 = vst [vmem:[#allocation2 + $0x74] sm:$0x1] %v769
        %v771 = vld [vmem:[#allocation2 + $0x80] sm:$0x1]
        %v772 = vsel %vm740, 0, %v771
        %773 = vst [vmem:[#allocation2 + $0x80] sm:$0x1] %v772
        %v774 = vld [vmem:[#allocation2 + $0x8c] sm:$0x1]
        %v775 = vsel %vm740, 0, %v774
        %776 = vst [vmem:[#allocation2 + $0x8c] sm:$0x1] %v775
        %v777 = vld [vmem:[#allocation2 + $0x98] sm:$0x1]
        %v778 = vsel %vm740, 0, %v777
        %779 = vst [vmem:[#allocation2 + $0x98] sm:$0x1] %v778
        %v780 = vld [vmem:[#allocation2 + $0xa4] sm:$0x1]
        %v781 = vsel %vm740, 0, %v780
        %782 = vst [vmem:[#allocation2 + $0xa4] sm:$0x1] %v781
        %v783 = vld [vmem:[#allocation2 + $0xb0] sm:$0x1]
        %v784 = vsel %vm740, 0, %v783
        %785 = vst [vmem:[#allocation2 + $0xb0] sm:$0x1] %v784
        %v786 = vld [vmem:[#allocation2 + $0xbc] sm:$0x1]
        %v787 = vsel %vm740, 0, %v786
        %788 = vst [vmem:[#allocation2 + $0xbc] sm:$0x1] %v787
        %v789 = vld [vmem:[#allocation2 + $0xc8] sm:$0x1]
        %v790 = vsel %vm740, 0, %v789
        %791 = vst [vmem:[#allocation2 + $0xc8] sm:$0x1] %v790
        %v792 = vld [vmem:[#allocation2 + $0xd4] sm:$0x1]
        %v793 = vsel %vm740, 0, %v792
        %794 = vst [vmem:[#allocation2 + $0xd4] sm:$0x1] %v793
        %p795 = scmp.gt.s32.totalorder %s313, 0
        %s796 = scalar_select %p795, 1, 0
        %s797 = scvt.s32.f32 %s796
        %p799 = scmp.ne.f32.partialorder %s797, %s797
        %s800 = sshrl.u32 %s797, 16
        %s801 = sand.u32 %s800, 1
        %s802 = sadd.s32 32767, %s801
        %s803 = sadd.s32 %s797, %s802
        %s804 = sand.u32 %s803, 4294901760
        %s805 = scalar_select %p799, 2143289344, %s804
        %s807 = sshrl.u32 %s805, 16
        %s808 = sshll.u32 %s807, 16
        %s809 = sor.u32 %s807, %s808
        %v810 = vstv %s809
        %v812 = vmul.bf16 %v664, %v810
        %v814 = vunpack.c.l.b16 %v812
        %v815 = vunpack.c.h.b16 %v812
        %v816 = vpack.c.b16 %v814, %v814
        %v817 = vpack.c.b16 %v815, %v815
        %vm818 = vsmask.f32 4368
        %vm819 = vmor %vm683, %vm818
        %v821 = vshrl.u32 %v816, 16
        %v823 = vrot.slane %v821, 7
        %v824 = vshll.u32 %v816, 16
        %v826 = vor.u32 %v823, %v824
        %v827 = vrot.slane %v823, 4
        %v829 = vshrl.u32 %v817, 16
        %v831 = vrot.slane %v829, 7
        %v832 = vshll.u32 %v817, 16
        %v834 = vor.u32 %v831, %v832
        %v835 = vsel %vm819, %v827, %v834
        %v836 = vrot.slane %v831, 4
        %vm840 = vcmask 257024
        %vm841 = vmand %vm840, %vm739
        %v842 = vld [vmem:[#allocation2] sm:$0xf]
        %v843 = vsel %vm841, %v826, %v842
        %844 = vst [vmem:[#allocation2] sm:$0xf] %v843
        %vm845 = vcmask 257024
        %846 = vst.msk [vmem:[#allocation2 + $0x4] sm:$0xf] %vm845, %v835
        %v847 = vld [vmem:[#allocation2 + $0x8] sm:$0x1]
        %v848 = vsel %vm684, %v836, %v847
        %849 = vst [vmem:[#allocation2 + $0x8] sm:$0x1] %v848
        %v866 = vunpack.c.l.b16 %v665
        %v867 = vunpack.c.h.b16 %v665
        %v868 = vunpack.c.l.b16 %v666
        %v869 = vunpack.c.h.b16 %v666
        %v870 = vunpack.c.l.b16 %v667
        %v871 = vunpack.c.h.b16 %v667
        %v872 = vunpack.c.l.b16 %v668
        %v873 = vunpack.c.h.b16 %v668
        %v874 = vunpack.c.l.b16 %v669
        %v875 = vunpack.c.h.b16 %v669
        %v876 = vunpack.c.l.b16 %v670
        %v877 = vunpack.c.h.b16 %v670
        %v878 = vunpack.c.l.b16 %v671
        %v879 = vunpack.c.h.b16 %v671
        %v880 = vunpack.c.l.b16 %v672
        %v881 = vunpack.c.h.b16 %v672
        %v882 = vunpack.c.l.b16 %v673
        %v883 = vunpack.c.h.b16 %v673
        %v884 = vunpack.c.l.b16 %v674
        %v885 = vunpack.c.h.b16 %v674
        %v886 = vunpack.c.l.b16 %v675
        %v887 = vunpack.c.h.b16 %v675
        %v888 = vunpack.c.l.b16 %v676
        %v889 = vunpack.c.h.b16 %v676
        %v890 = vunpack.c.l.b16 %v677
        %v891 = vunpack.c.h.b16 %v677
        %v892 = vunpack.c.l.b16 %v678
        %v893 = vunpack.c.h.b16 %v678
        %v894 = vunpack.c.l.b16 %v679
        %v895 = vunpack.c.h.b16 %v679
        %v896 = vunpack.c.l.b16 %v680
        %v897 = vunpack.c.h.b16 %v680
        %v898 = vpack.c.b16 %v866, %v866
        %v899 = vpack.c.b16 %v867, %v867
        %v900 = vpack.c.b16 %v868, %v868
        %v901 = vpack.c.b16 %v869, %v869
        %v902 = vpack.c.b16 %v870, %v870
        %v903 = vpack.c.b16 %v871, %v871
        %v904 = vpack.c.b16 %v872, %v872
        %v905 = vpack.c.b16 %v873, %v873
        %v906 = vpack.c.b16 %v874, %v874
        %v907 = vpack.c.b16 %v875, %v875
        %v908 = vpack.c.b16 %v876, %v876
        %v909 = vpack.c.b16 %v877, %v877
        %v910 = vpack.c.b16 %v878, %v878
        %v911 = vpack.c.b16 %v879, %v879
        %v912 = vpack.c.b16 %v880, %v880
        %v913 = vpack.c.b16 %v881, %v881
        %v914 = vpack.c.b16 %v882, %v882
        %v915 = vpack.c.b16 %v883, %v883
        %v916 = vpack.c.b16 %v884, %v884
        %v917 = vpack.c.b16 %v885, %v885
        %v918 = vpack.c.b16 %v886, %v886
        %v919 = vpack.c.b16 %v887, %v887
        %v920 = vpack.c.b16 %v888, %v888
        %v921 = vpack.c.b16 %v889, %v889
        %v922 = vpack.c.b16 %v890, %v890
        %v923 = vpack.c.b16 %v891, %v891
        %v924 = vpack.c.b16 %v892, %v892
        %v925 = vpack.c.b16 %v893, %v893
        %v926 = vpack.c.b16 %v894, %v894
        %v927 = vpack.c.b16 %v895, %v895
        %v928 = vpack.c.b16 %v896, %v896
        %v929 = vpack.c.b16 %v897, %v897
        %v931 = vshrl.u32 %v898, 16
        %v933 = vrot.slane %v931, 7
        %v934 = vshll.u32 %v898, 16
        %v936 = vor.u32 %v933, %v934
        %v937 = vrot.slane %v933, 4
        %v939 = vshrl.u32 %v899, 16
        %v941 = vrot.slane %v939, 7
        %v942 = vshll.u32 %v899, 16
        %v944 = vor.u32 %v941, %v942
        %v945 = vsel %vm819, %v937, %v944
        %v946 = vrot.slane %v941, 4
        %v948 = vshrl.u32 %v900, 16
        %v950 = vrot.slane %v948, 7
        %v951 = vshll.u32 %v900, 16
        %v953 = vor.u32 %v950, %v951
        %v954 = vrot.slane %v950, 4
        %v956 = vshrl.u32 %v901, 16
        %v958 = vrot.slane %v956, 7
        %v959 = vshll.u32 %v901, 16
        %v961 = vor.u32 %v958, %v959
        %v962 = vsel %vm819, %v954, %v961
        %v963 = vrot.slane %v958, 4
        %v965 = vshrl.u32 %v902, 16
        %v967 = vrot.slane %v965, 7
        %v968 = vshll.u32 %v902, 16
        %v970 = vor.u32 %v967, %v968
        %v971 = vrot.slane %v967, 4
        %v973 = vshrl.u32 %v903, 16
        %v975 = vrot.slane %v973, 7
        %v976 = vshll.u32 %v903, 16
        %v978 = vor.u32 %v975, %v976
        %v979 = vsel %vm819, %v971, %v978
        %v980 = vrot.slane %v975, 4
        %v982 = vshrl.u32 %v904, 16
        %v984 = vrot.slane %v982, 7
        %v985 = vshll.u32 %v904, 16
        %v987 = vor.u32 %v984, %v985
        %v988 = vrot.slane %v984, 4
        %v990 = vshrl.u32 %v905, 16
        %v992 = vrot.slane %v990, 7
        %v993 = vshll.u32 %v905, 16
        %v995 = vor.u32 %v992, %v993
        %v996 = vsel %vm819, %v988, %v995
        %v997 = vrot.slane %v992, 4
        %v999 = vshrl.u32 %v906, 16
        %v1001 = vrot.slane %v999, 7
        %v1002 = vshll.u32 %v906, 16
        %v1004 = vor.u32 %v1001, %v1002
        %v1005 = vrot.slane %v1001, 4
        %v1007 = vshrl.u32 %v907, 16
        %v1009 = vrot.slane %v1007, 7
        %v1010 = vshll.u32 %v907, 16
        %v1012 = vor.u32 %v1009, %v1010
        %v1013 = vsel %vm819, %v1005, %v1012
        %v1014 = vrot.slane %v1009, 4
        %v1016 = vshrl.u32 %v908, 16
        %v1018 = vrot.slane %v1016, 7
        %v1019 = vshll.u32 %v908, 16
        %v1021 = vor.u32 %v1018, %v1019
        %v1022 = vrot.slane %v1018, 4
        %v1024 = vshrl.u32 %v909, 16
        %v1026 = vrot.slane %v1024, 7
        %v1027 = vshll.u32 %v909, 16
        %v1029 = vor.u32 %v1026, %v1027
        %v1030 = vsel %vm819, %v1022, %v1029
        %v1031 = vrot.slane %v1026, 4
        %v1033 = vshrl.u32 %v910, 16
        %v1035 = vrot.slane %v1033, 7
        %v1036 = vshll.u32 %v910, 16
        %v1038 = vor.u32 %v1035, %v1036
        %v1039 = vrot.slane %v1035, 4
        %v1041 = vshrl.u32 %v911, 16
        %v1043 = vrot.slane %v1041, 7
        %v1044 = vshll.u32 %v911, 16
        %v1046 = vor.u32 %v1043, %v1044
        %v1047 = vsel %vm819, %v1039, %v1046
        %v1048 = vrot.slane %v1043, 4
        %v1050 = vshrl.u32 %v912, 16
        %v1052 = vrot.slane %v1050, 7
        %v1053 = vshll.u32 %v912, 16
        %v1055 = vor.u32 %v1052, %v1053
        %v1056 = vrot.slane %v1052, 4
        %v1058 = vshrl.u32 %v913, 16
        %v1060 = vrot.slane %v1058, 7
        %v1061 = vshll.u32 %v913, 16
        %v1063 = vor.u32 %v1060, %v1061
        %v1064 = vsel %vm819, %v1056, %v1063
        %v1065 = vrot.slane %v1060, 4
        %v1067 = vshrl.u32 %v914, 16
        %v1069 = vrot.slane %v1067, 7
        %v1070 = vshll.u32 %v914, 16
        %v1072 = vor.u32 %v1069, %v1070
        %v1073 = vrot.slane %v1069, 4
        %v1075 = vshrl.u32 %v915, 16
        %v1077 = vrot.slane %v1075, 7
        %v1078 = vshll.u32 %v915, 16
        %v1080 = vor.u32 %v1077, %v1078
        %v1081 = vsel %vm819, %v1073, %v1080
        %v1082 = vrot.slane %v1077, 4
        %v1084 = vshrl.u32 %v916, 16
        %v1086 = vrot.slane %v1084, 7
        %v1087 = vshll.u32 %v916, 16
        %v1089 = vor.u32 %v1086, %v1087
        %v1090 = vrot.slane %v1086, 4
        %v1092 = vshrl.u32 %v917, 16
        %v1094 = vrot.slane %v1092, 7
        %v1095 = vshll.u32 %v917, 16
        %v1097 = vor.u32 %v1094, %v1095
        %v1098 = vsel %vm819, %v1090, %v1097
        %v1099 = vrot.slane %v1094, 4
        %v1101 = vshrl.u32 %v918, 16
        %v1103 = vrot.slane %v1101, 7
        %v1104 = vshll.u32 %v918, 16
        %v1106 = vor.u32 %v1103, %v1104
        %v1107 = vrot.slane %v1103, 4
        %v1109 = vshrl.u32 %v919, 16
        %v1111 = vrot.slane %v1109, 7
        %v1112 = vshll.u32 %v919, 16
        %v1114 = vor.u32 %v1111, %v1112
        %v1115 = vsel %vm819, %v1107, %v1114
        %v1116 = vrot.slane %v1111, 4
        %v1118 = vshrl.u32 %v920, 16
        %v1120 = vrot.slane %v1118, 7
        %v1121 = vshll.u32 %v920, 16
        %v1123 = vor.u32 %v1120, %v1121
        %v1124 = vrot.slane %v1120, 4
        %v1126 = vshrl.u32 %v921, 16
        %v1128 = vrot.slane %v1126, 7
        %v1129 = vshll.u32 %v921, 16
        %v1131 = vor.u32 %v1128, %v1129
        %v1132 = vsel %vm819, %v1124, %v1131
        %v1133 = vrot.slane %v1128, 4
        %v1135 = vshrl.u32 %v922, 16
        %v1137 = vrot.slane %v1135, 7
        %v1138 = vshll.u32 %v922, 16
        %v1140 = vor.u32 %v1137, %v1138
        %v1141 = vrot.slane %v1137, 4
        %v1143 = vshrl.u32 %v923, 16
        %v1145 = vrot.slane %v1143, 7
        %v1146 = vshll.u32 %v923, 16
        %v1148 = vor.u32 %v1145, %v1146
        %v1149 = vsel %vm819, %v1141, %v1148
        %v1150 = vrot.slane %v1145, 4
        %v1152 = vshrl.u32 %v924, 16
        %v1154 = vrot.slane %v1152, 7
        %v1155 = vshll.u32 %v924, 16
        %v1157 = vor.u32 %v1154, %v1155
        %v1158 = vrot.slane %v1154, 4
        %v1160 = vshrl.u32 %v925, 16
        %v1162 = vrot.slane %v1160, 7
        %v1163 = vshll.u32 %v925, 16
        %v1165 = vor.u32 %v1162, %v1163
        %v1166 = vsel %vm819, %v1158, %v1165
        %v1167 = vrot.slane %v1162, 4
        %v1169 = vshrl.u32 %v926, 16
        %v1171 = vrot.slane %v1169, 7
        %v1172 = vshll.u32 %v926, 16
        %v1174 = vor.u32 %v1171, %v1172
        %v1175 = vrot.slane %v1171, 4
        %v1177 = vshrl.u32 %v927, 16
        %v1179 = vrot.slane %v1177, 7
        %v1180 = vshll.u32 %v927, 16
        %v1182 = vor.u32 %v1179, %v1180
        %v1183 = vsel %vm819, %v1175, %v1182
        %v1184 = vrot.slane %v1179, 4
        %v1186 = vshrl.u32 %v928, 16
        %v1188 = vrot.slane %v1186, 7
        %v1189 = vshll.u32 %v928, 16
        %v1191 = vor.u32 %v1188, %v1189
        %v1192 = vrot.slane %v1188, 4
        %v1194 = vshrl.u32 %v929, 16
        %v1196 = vrot.slane %v1194, 7
        %v1197 = vshll.u32 %v929, 16
        %v1199 = vor.u32 %v1196, %v1197
        %v1200 = vsel %vm819, %v1192, %v1199
        %v1201 = vrot.slane %v1196, 4
        %s1250 = scalar_lea.vmem [#allocation2], 12
        %v1251 = vld [vmem:[%s1250] sm:$0xf]
        %v1252 = vsel %vm841, %v936, %v1251
        %1253 = vst [vmem:[%s1250] sm:$0xf] %v1252
        %1254 = vst.msk [vmem:[%s1250 + $0x4] sm:$0xf] %vm845, %v945
        %v1255 = vld [vmem:[%s1250 + $0x8] sm:$0x1]
        %v1256 = vsel %vm684, %v946, %v1255
        %1257 = vst [vmem:[%s1250 + $0x8] sm:$0x1] %v1256
        %v1258 = vld [vmem:[%s1250 + $0xc] sm:$0xf]
        %v1259 = vsel %vm841, %v953, %v1258
        %1260 = vst [vmem:[%s1250 + $0xc] sm:$0xf] %v1259
        %1261 = vst.msk [vmem:[%s1250 + $0x10] sm:$0xf] %vm845, %v962
        %v1262 = vld [vmem:[%s1250 + $0x14] sm:$0x1]
        %v1263 = vsel %vm684, %v963, %v1262
        %1264 = vst [vmem:[%s1250 + $0x14] sm:$0x1] %v1263
        %v1265 = vld [vmem:[%s1250 + $0x18] sm:$0xf]
        %v1266 = vsel %vm841, %v970, %v1265
        %1267 = vst [vmem:[%s1250 + $0x18] sm:$0xf] %v1266
        %1268 = vst.msk [vmem:[%s1250 + $0x1c] sm:$0xf] %vm845, %v979
        %v1269 = vld [vmem:[%s1250 + $0x20] sm:$0x1]
        %v1270 = vsel %vm684, %v980, %v1269
        %1271 = vst [vmem:[%s1250 + $0x20] sm:$0x1] %v1270
        %v1272 = vld [vmem:[%s1250 + $0x24] sm:$0xf]
        %v1273 = vsel %vm841, %v987, %v1272
        %1274 = vst [vmem:[%s1250 + $0x24] sm:$0xf] %v1273
        %1275 = vst.msk [vmem:[%s1250 + $0x28] sm:$0xf] %vm845, %v996
        %v1276 = vld [vmem:[%s1250 + $0x2c] sm:$0x1]
        %v1277 = vsel %vm684, %v997, %v1276
        %1278 = vst [vmem:[%s1250 + $0x2c] sm:$0x1] %v1277
        %v1279 = vld [vmem:[%s1250 + $0x30] sm:$0xf]
        %v1280 = vsel %vm841, %v1004, %v1279
        %1281 = vst [vmem:[%s1250 + $0x30] sm:$0xf] %v1280
        %1282 = vst.msk [vmem:[%s1250 + $0x34] sm:$0xf] %vm845, %v1013
        %v1283 = vld [vmem:[%s1250 + $0x38] sm:$0x1]
        %v1284 = vsel %vm684, %v1014, %v1283
        %1285 = vst [vmem:[%s1250 + $0x38] sm:$0x1] %v1284
        %v1286 = vld [vmem:[%s1250 + $0x3c] sm:$0xf]
        %v1287 = vsel %vm841, %v1021, %v1286
        %1288 = vst [vmem:[%s1250 + $0x3c] sm:$0xf] %v1287
        %1289 = vst.msk [vmem:[%s1250 + $0x40] sm:$0xf] %vm845, %v1030
        %v1290 = vld [vmem:[%s1250 + $0x44] sm:$0x1]
        %v1291 = vsel %vm684, %v1031, %v1290
        %1292 = vst [vmem:[%s1250 + $0x44] sm:$0x1] %v1291
        %v1293 = vld [vmem:[%s1250 + $0x48] sm:$0xf]
        %v1294 = vsel %vm841, %v1038, %v1293
        %1295 = vst [vmem:[%s1250 + $0x48] sm:$0xf] %v1294
        %1296 = vst.msk [vmem:[%s1250 + $0x4c] sm:$0xf] %vm845, %v1047
        %v1297 = vld [vmem:[%s1250 + $0x50] sm:$0x1]
        %v1298 = vsel %vm684, %v1048, %v1297
        %1299 = vst [vmem:[%s1250 + $0x50] sm:$0x1] %v1298
        %v1300 = vld [vmem:[%s1250 + $0x54] sm:$0xf]
        %v1301 = vsel %vm841, %v1055, %v1300
        %1302 = vst [vmem:[%s1250 + $0x54] sm:$0xf] %v1301
        %1303 = vst.msk [vmem:[%s1250 + $0x58] sm:$0xf] %vm845, %v1064
        %v1304 = vld [vmem:[%s1250 + $0x5c] sm:$0x1]
        %v1305 = vsel %vm684, %v1065, %v1304
        %1306 = vst [vmem:[%s1250 + $0x5c] sm:$0x1] %v1305
        %v1307 = vld [vmem:[%s1250 + $0x60] sm:$0xf]
        %v1308 = vsel %vm841, %v1072, %v1307
        %1309 = vst [vmem:[%s1250 + $0x60] sm:$0xf] %v1308
        %1310 = vst.msk [vmem:[%s1250 + $0x64] sm:$0xf] %vm845, %v1081
        %v1311 = vld [vmem:[%s1250 + $0x68] sm:$0x1]
        %v1312 = vsel %vm684, %v1082, %v1311
        %1313 = vst [vmem:[%s1250 + $0x68] sm:$0x1] %v1312
        %v1314 = vld [vmem:[%s1250 + $0x6c] sm:$0xf]
        %v1315 = vsel %vm841, %v1089, %v1314
        %1316 = vst [vmem:[%s1250 + $0x6c] sm:$0xf] %v1315
        %1317 = vst.msk [vmem:[%s1250 + $0x70] sm:$0xf] %vm845, %v1098
        %v1318 = vld [vmem:[%s1250 + $0x74] sm:$0x1]
        %v1319 = vsel %vm684, %v1099, %v1318
        %1320 = vst [vmem:[%s1250 + $0x74] sm:$0x1] %v1319
        %v1321 = vld [vmem:[%s1250 + $0x78] sm:$0xf]
        %v1322 = vsel %vm841, %v1106, %v1321
        %1323 = vst [vmem:[%s1250 + $0x78] sm:$0xf] %v1322
        %1324 = vst.msk [vmem:[%s1250 + $0x7c] sm:$0xf] %vm845, %v1115
        %v1325 = vld [vmem:[%s1250 + $0x80] sm:$0x1]
        %v1326 = vsel %vm684, %v1116, %v1325
        %1327 = vst [vmem:[%s1250 + $0x80] sm:$0x1] %v1326
        %v1328 = vld [vmem:[%s1250 + $0x84] sm:$0xf]
        %v1329 = vsel %vm841, %v1123, %v1328
        %1330 = vst [vmem:[%s1250 + $0x84] sm:$0xf] %v1329
        %1331 = vst.msk [vmem:[%s1250 + $0x88] sm:$0xf] %vm845, %v1132
        %v1332 = vld [vmem:[%s1250 + $0x8c] sm:$0x1]
        %v1333 = vsel %vm684, %v1133, %v1332
        %1334 = vst [vmem:[%s1250 + $0x8c] sm:$0x1] %v1333
        %v1335 = vld [vmem:[%s1250 + $0x90] sm:$0xf]
        %v1336 = vsel %vm841, %v1140, %v1335
        %1337 = vst [vmem:[%s1250 + $0x90] sm:$0xf] %v1336
        %1338 = vst.msk [vmem:[%s1250 + $0x94] sm:$0xf] %vm845, %v1149
        %v1339 = vld [vmem:[%s1250 + $0x98] sm:$0x1]
        %v1340 = vsel %vm684, %v1150, %v1339
        %1341 = vst [vmem:[%s1250 + $0x98] sm:$0x1] %v1340
        %v1342 = vld [vmem:[%s1250 + $0x9c] sm:$0xf]
        %v1343 = vsel %vm841, %v1157, %v1342
        %1344 = vst [vmem:[%s1250 + $0x9c] sm:$0xf] %v1343
        %1345 = vst.msk [vmem:[%s1250 + $0xa0] sm:$0xf] %vm845, %v1166
        %v1346 = vld [vmem:[%s1250 + $0xa4] sm:$0x1]
        %v1347 = vsel %vm684, %v1167, %v1346
        %1348 = vst [vmem:[%s1250 + $0xa4] sm:$0x1] %v1347
        %v1349 = vld [vmem:[%s1250 + $0xa8] sm:$0xf]
        %v1350 = vsel %vm841, %v1174, %v1349
        %1351 = vst [vmem:[%s1250 + $0xa8] sm:$0xf] %v1350
        %1352 = vst.msk [vmem:[%s1250 + $0xac] sm:$0xf] %vm845, %v1183
        %v1353 = vld [vmem:[%s1250 + $0xb0] sm:$0x1]
        %v1354 = vsel %vm684, %v1184, %v1353
        %1355 = vst [vmem:[%s1250 + $0xb0] sm:$0x1] %v1354
        %v1356 = vld [vmem:[%s1250 + $0xb4] sm:$0xf]
        %v1357 = vsel %vm841, %v1191, %v1356
        %1358 = vst [vmem:[%s1250 + $0xb4] sm:$0xf] %v1357
        %1359 = vst.msk [vmem:[%s1250 + $0xb8] sm:$0xf] %vm845, %v1200
        %v1360 = vld [vmem:[%s1250 + $0xbc] sm:$0x1]
        %v1361 = vsel %vm684, %v1201, %v1360
        %1362 = vst [vmem:[%s1250 + $0xbc] sm:$0x1] %v1361
        %p1363 = scmp.lt.s32.totalorder %s355, 16
        %s1364 = scalar_select %p1363, 1, 0
        %s1365 = scvt.s32.f32 %s1364
        %p1367 = scmp.ne.f32.partialorder %s1365, %s1365
        %s1368 = sshrl.u32 %s1365, 16
        %s1369 = sand.u32 %s1368, 1
        %s1370 = sadd.s32 32767, %s1369
        %s1371 = sadd.s32 %s1365, %s1370
        %s1372 = sand.u32 %s1371, 4294901760
        %s1373 = scalar_select %p1367, 2143289344, %s1372
        %s1375 = sshrl.u32 %s1373, 16
        %s1376 = sshll.u32 %s1375, 16
        %s1377 = sor.u32 %s1375, %s1376
        %v1378 = vstv %s1377
        %v1380 = vmul.bf16 %v681, %v1378
        %v1382 = vunpack.c.l.b16 %v1380
        %v1383 = vunpack.c.h.b16 %v1380
        %v1384 = vpack.c.b16 %v1382, %v1382
        %v1385 = vpack.c.b16 %v1383, %v1383
        %v1387 = vshrl.u32 %v1384, 16
        %v1389 = vrot.slane %v1387, 7
        %v1390 = vshll.u32 %v1384, 16
        %v1392 = vor.u32 %v1389, %v1390
        %v1393 = vrot.slane %v1389, 4
        %v1395 = vshrl.u32 %v1385, 16
        %v1397 = vrot.slane %v1395, 7
        %v1398 = vshll.u32 %v1385, 16
        %v1400 = vor.u32 %v1397, %v1398
        %v1401 = vsel %vm819, %v1393, %v1400
        %v1402 = vrot.slane %v1397, 4
        %s1406 = scalar_lea.vmem [#allocation2], 204
        %v1407 = vld [vmem:[%s1406] sm:$0xf]
        %v1408 = vsel %vm841, %v1392, %v1407
        %1409 = vst [vmem:[%s1406] sm:$0xf] %v1408
        %1410 = vst.msk [vmem:[%s1406 + $0x4] sm:$0xf] %vm845, %v1401
        %v1411 = vld [vmem:[%s1406 + $0x8] sm:$0x1]
        %v1412 = vsel %vm684, %v1402, %v1411
        %1413 = vst [vmem:[%s1406 + $0x8] sm:$0x1] %v1412
        %v1414 = vld [vmem:[#allocation2] sm:$0xf]
        %v1415 = vld [vmem:[#allocation2 + $0x4] sm:$0xf]
        %v1416 = vld [vmem:[#allocation2 + $0xc] sm:$0xf]
        %v1417 = vld [vmem:[#allocation2 + $0x10] sm:$0xf]
        %v1418 = vld [vmem:[#allocation2 + $0x18] sm:$0xf]
        %v1419 = vld [vmem:[#allocation2 + $0x1c] sm:$0xf]
        %v1420 = vld [vmem:[#allocation2 + $0x24] sm:$0xf]
        %v1421 = vld [vmem:[#allocation2 + $0x28] sm:$0xf]
        %v1422 = vld [vmem:[#allocation2 + $0x30] sm:$0xf]
        %v1423 = vld [vmem:[#allocation2 + $0x34] sm:$0xf]
        %v1424 = vld [vmem:[#allocation2 + $0x3c] sm:$0xf]
        %v1425 = vld [vmem:[#allocation2 + $0x40] sm:$0xf]
        %v1426 = vld [vmem:[#allocation2 + $0x48] sm:$0xf]
        %v1427 = vld [vmem:[#allocation2 + $0x4c] sm:$0xf]
        %v1428 = vld [vmem:[#allocation2 + $0x54] sm:$0xf]
        %v1429 = vld [vmem:[#allocation2 + $0x58] sm:$0xf]
        %v1430 = vld [vmem:[#allocation2 + $0x60] sm:$0xf]
        %v1431 = vld [vmem:[#allocation2 + $0x64] sm:$0xf]
        %v1432 = vld [vmem:[#allocation2 + $0x6c] sm:$0xf]
        %v1433 = vld [vmem:[#allocation2 + $0x70] sm:$0xf]
        %v1434 = vld [vmem:[#allocation2 + $0x78] sm:$0xf]
        %v1435 = vld [vmem:[#allocation2 + $0x7c] sm:$0xf]
        %v1436 = vld [vmem:[#allocation2 + $0x84] sm:$0xf]
        %v1437 = vld [vmem:[#allocation2 + $0x88] sm:$0xf]
        %v1438 = vld [vmem:[#allocation2 + $0x90] sm:$0xf]
        %v1439 = vld [vmem:[#allocation2 + $0x94] sm:$0xf]
        %v1440 = vld [vmem:[#allocation2 + $0x9c] sm:$0xf]
        %v1441 = vld [vmem:[#allocation2 + $0xa0] sm:$0xf]
        %v1442 = vld [vmem:[#allocation2 + $0xa8] sm:$0xf]
        %v1443 = vld [vmem:[#allocation2 + $0xac] sm:$0xf]
        %v1444 = vld [vmem:[#allocation2 + $0xb4] sm:$0xf]
        %v1445 = vld [vmem:[#allocation2 + $0xb8] sm:$0xf]
        %v1446 = vld [vmem:[#allocation2 + $0x8] sm:$0x1]
        %v1447 = vld [vmem:[#allocation2 + $0x14] sm:$0x1]
        %v1448 = vld [vmem:[#allocation2 + $0x20] sm:$0x1]
        %v1449 = vld [vmem:[#allocation2 + $0x2c] sm:$0x1]
        %v1450 = vld [vmem:[#allocation2 + $0x38] sm:$0x1]
        %v1451 = vld [vmem:[#allocation2 + $0x44] sm:$0x1]
        %v1452 = vld [vmem:[#allocation2 + $0x50] sm:$0x1]
        %v1453 = vld [vmem:[#allocation2 + $0x5c] sm:$0x1]
        %v1454 = vld [vmem:[#allocation2 + $0x68] sm:$0x1]
        %v1455 = vld [vmem:[#allocation2 + $0x74] sm:$0x1]
        %v1456 = vld [vmem:[#allocation2 + $0x80] sm:$0x1]
        %v1457 = vld [vmem:[#allocation2 + $0x8c] sm:$0x1]
        %v1458 = vld [vmem:[#allocation2 + $0x98] sm:$0x1]
        %v1459 = vld [vmem:[#allocation2 + $0xa4] sm:$0x1]
        %v1460 = vld [vmem:[#allocation2 + $0xb0] sm:$0x1]
        %v1461 = vld [vmem:[#allocation2 + $0xbc] sm:$0x1]
        %v1462 = vld [vmem:[#allocation2] sm:$0xe]
        %v1463 = vld [vmem:[#allocation2 + $0xc] sm:$0xe]
        %v1464 = vld [vmem:[#allocation2 + $0x18] sm:$0xe]
        %v1465 = vld [vmem:[#allocation2 + $0x24] sm:$0xe]
        %v1466 = vld [vmem:[#allocation2 + $0x30] sm:$0xe]
        %v1467 = vld [vmem:[#allocation2 + $0x3c] sm:$0xe]
        %v1468 = vld [vmem:[#allocation2 + $0x48] sm:$0xe]
        %v1469 = vld [vmem:[#allocation2 + $0x54] sm:$0xe]
        %v1470 = vld [vmem:[#allocation2 + $0x60] sm:$0xe]
        %v1471 = vld [vmem:[#allocation2 + $0x6c] sm:$0xe]
        %v1472 = vld [vmem:[#allocation2 + $0x78] sm:$0xe]
        %v1473 = vld [vmem:[#allocation2 + $0x84] sm:$0xe]
        %v1474 = vld [vmem:[#allocation2 + $0x90] sm:$0xe]
        %v1475 = vld [vmem:[#allocation2 + $0x9c] sm:$0xe]
        %v1476 = vld [vmem:[#allocation2 + $0xa8] sm:$0xe]
        %v1477 = vld [vmem:[#allocation2 + $0xb4] sm:$0xe]
        %v1478 = vld [vmem:[%s1250] sm:$0xf]
        %v1479 = vld [vmem:[%s1250 + $0x4] sm:$0xf]
        %v1480 = vld [vmem:[%s1250 + $0xc] sm:$0xf]
        %v1481 = vld [vmem:[%s1250 + $0x10] sm:$0xf]
        %v1482 = vld [vmem:[%s1250 + $0x18] sm:$0xf]
        %v1483 = vld [vmem:[%s1250 + $0x1c] sm:$0xf]
        %v1484 = vld [vmem:[%s1250 + $0x24] sm:$0xf]
        %v1485 = vld [vmem:[%s1250 + $0x28] sm:$0xf]
        %v1486 = vld [vmem:[%s1250 + $0x30] sm:$0xf]
        %v1487 = vld [vmem:[%s1250 + $0x34] sm:$0xf]
        %v1488 = vld [vmem:[%s1250 + $0x3c] sm:$0xf]
        %v1489 = vld [vmem:[%s1250 + $0x40] sm:$0xf]
        %v1490 = vld [vmem:[%s1250 + $0x48] sm:$0xf]
        %v1491 = vld [vmem:[%s1250 + $0x4c] sm:$0xf]
        %v1492 = vld [vmem:[%s1250 + $0x54] sm:$0xf]
        %v1493 = vld [vmem:[%s1250 + $0x58] sm:$0xf]
        %v1494 = vld [vmem:[%s1250 + $0x60] sm:$0xf]
        %v1495 = vld [vmem:[%s1250 + $0x64] sm:$0xf]
        %v1496 = vld [vmem:[%s1250 + $0x6c] sm:$0xf]
        %v1497 = vld [vmem:[%s1250 + $0x70] sm:$0xf]
        %v1498 = vld [vmem:[%s1250 + $0x78] sm:$0xf]
        %v1499 = vld [vmem:[%s1250 + $0x7c] sm:$0xf]
        %v1500 = vld [vmem:[%s1250 + $0x84] sm:$0xf]
        %v1501 = vld [vmem:[%s1250 + $0x88] sm:$0xf]
        %v1502 = vld [vmem:[%s1250 + $0x90] sm:$0xf]
        %v1503 = vld [vmem:[%s1250 + $0x94] sm:$0xf]
        %v1504 = vld [vmem:[%s1250 + $0x9c] sm:$0xf]
        %v1505 = vld [vmem:[%s1250 + $0xa0] sm:$0xf]
        %v1506 = vld [vmem:[%s1250 + $0xa8] sm:$0xf]
        %v1507 = vld [vmem:[%s1250 + $0xac] sm:$0xf]
        %v1508 = vld [vmem:[%s1250 + $0xb4] sm:$0xf]
        %v1509 = vld [vmem:[%s1250 + $0xb8] sm:$0xf]
        %v1510 = vld [vmem:[%s1250 + $0x8] sm:$0x1]
        %v1511 = vld [vmem:[%s1250 + $0x14] sm:$0x1]
        %v1512 = vld [vmem:[%s1250 + $0x20] sm:$0x1]
        %v1513 = vld [vmem:[%s1250 + $0x2c] sm:$0x1]
        %v1514 = vld [vmem:[%s1250 + $0x38] sm:$0x1]
        %v1515 = vld [vmem:[%s1250 + $0x44] sm:$0x1]
        %v1516 = vld [vmem:[%s1250 + $0x50] sm:$0x1]
        %v1517 = vld [vmem:[%s1250 + $0x5c] sm:$0x1]
        %v1518 = vld [vmem:[%s1250 + $0x68] sm:$0x1]
        %v1519 = vld [vmem:[%s1250 + $0x74] sm:$0x1]
        %v1520 = vld [vmem:[%s1250 + $0x80] sm:$0x1]
        %v1521 = vld [vmem:[%s1250 + $0x8c] sm:$0x1]
        %v1522 = vld [vmem:[%s1250 + $0x98] sm:$0x1]
        %v1523 = vld [vmem:[%s1250 + $0xa4] sm:$0x1]
        %v1524 = vld [vmem:[%s1250 + $0xb0] sm:$0x1]
        %v1525 = vld [vmem:[%s1250 + $0xbc] sm:$0x1]
        %v1526 = vld [vmem:[%s1250] sm:$0xe]
        %v1527 = vld [vmem:[%s1250 + $0xc] sm:$0xe]
        %v1528 = vld [vmem:[%s1250 + $0x18] sm:$0xe]
        %v1529 = vld [vmem:[%s1250 + $0x24] sm:$0xe]
        %v1530 = vld [vmem:[%s1250 + $0x30] sm:$0xe]
        %v1531 = vld [vmem:[%s1250 + $0x3c] sm:$0xe]
        %v1532 = vld [vmem:[%s1250 + $0x48] sm:$0xe]
        %v1533 = vld [vmem:[%s1250 + $0x54] sm:$0xe]
        %v1534 = vld [vmem:[%s1250 + $0x60] sm:$0xe]
        %v1535 = vld [vmem:[%s1250 + $0x6c] sm:$0xe]
        %v1536 = vld [vmem:[%s1250 + $0x78] sm:$0xe]
        %v1537 = vld [vmem:[%s1250 + $0x84] sm:$0xe]
        %v1538 = vld [vmem:[%s1250 + $0x90] sm:$0xe]
        %v1539 = vld [vmem:[%s1250 + $0x9c] sm:$0xe]
        %v1540 = vld [vmem:[%s1250 + $0xa8] sm:$0xe]
        %v1541 = vld [vmem:[%s1250 + $0xb4] sm:$0xe]
        %s1542 = scalar_lea.vmem [#allocation2], 24
        %v1543 = vld [vmem:[%s1542] sm:$0xf]
        %v1544 = vld [vmem:[%s1542 + $0x4] sm:$0xf]
        %v1545 = vld [vmem:[%s1542 + $0xc] sm:$0xf]
        %v1546 = vld [vmem:[%s1542 + $0x10] sm:$0xf]
        %v1547 = vld [vmem:[%s1542 + $0x18] sm:$0xf]
        %v1548 = vld [vmem:[%s1542 + $0x1c] sm:$0xf]
        %v1549 = vld [vmem:[%s1542 + $0x24] sm:$0xf]
        %v1550 = vld [vmem:[%s1542 + $0x28] sm:$0xf]
        %v1551 = vld [vmem:[%s1542 + $0x30] sm:$0xf]
        %v1552 = vld [vmem:[%s1542 + $0x34] sm:$0xf]
        %v1553 = vld [vmem:[%s1542 + $0x3c] sm:$0xf]
        %v1554 = vld [vmem:[%s1542 + $0x40] sm:$0xf]
        %v1555 = vld [vmem:[%s1542 + $0x48] sm:$0xf]
        %v1556 = vld [vmem:[%s1542 + $0x4c] sm:$0xf]
        %v1557 = vld [vmem:[%s1542 + $0x54] sm:$0xf]
        %v1558 = vld [vmem:[%s1542 + $0x58] sm:$0xf]
        %v1559 = vld [vmem:[%s1542 + $0x60] sm:$0xf]
        %v1560 = vld [vmem:[%s1542 + $0x64] sm:$0xf]
        %v1561 = vld [vmem:[%s1542 + $0x6c] sm:$0xf]
        %v1562 = vld [vmem:[%s1542 + $0x70] sm:$0xf]
        %v1563 = vld [vmem:[%s1542 + $0x78] sm:$0xf]
        %v1564 = vld [vmem:[%s1542 + $0x7c] sm:$0xf]
        %v1565 = vld [vmem:[%s1542 + $0x84] sm:$0xf]
        %v1566 = vld [vmem:[%s1542 + $0x88] sm:$0xf]
        %v1567 = vld [vmem:[%s1542 + $0x90] sm:$0xf]
        %v1568 = vld [vmem:[%s1542 + $0x94] sm:$0xf]
        %v1569 = vld [vmem:[%s1542 + $0x9c] sm:$0xf]
        %v1570 = vld [vmem:[%s1542 + $0xa0] sm:$0xf]
        %v1571 = vld [vmem:[%s1542 + $0xa8] sm:$0xf]
        %v1572 = vld [vmem:[%s1542 + $0xac] sm:$0xf]
        %v1573 = vld [vmem:[%s1542 + $0xb4] sm:$0xf]
        %v1574 = vld [vmem:[%s1542 + $0xb8] sm:$0xf]
        %v1575 = vld [vmem:[%s1542 + $0x8] sm:$0x1]
        %v1576 = vld [vmem:[%s1542 + $0x14] sm:$0x1]
        %v1577 = vld [vmem:[%s1542 + $0x20] sm:$0x1]
        %v1578 = vld [vmem:[%s1542 + $0x2c] sm:$0x1]
        %v1579 = vld [vmem:[%s1542 + $0x38] sm:$0x1]
        %v1580 = vld [vmem:[%s1542 + $0x44] sm:$0x1]
        %v1581 = vld [vmem:[%s1542 + $0x50] sm:$0x1]
        %v1582 = vld [vmem:[%s1542 + $0x5c] sm:$0x1]
        %v1583 = vld [vmem:[%s1542 + $0x68] sm:$0x1]
        %v1584 = vld [vmem:[%s1542 + $0x74] sm:$0x1]
        %v1585 = vld [vmem:[%s1542 + $0x80] sm:$0x1]
        %v1586 = vld [vmem:[%s1542 + $0x8c] sm:$0x1]
        %v1587 = vld [vmem:[%s1542 + $0x98] sm:$0x1]
        %v1588 = vld [vmem:[%s1542 + $0xa4] sm:$0x1]
        %v1589 = vld [vmem:[%s1542 + $0xb0] sm:$0x1]
        %v1590 = vld [vmem:[%s1542 + $0xbc] sm:$0x1]
        %v1591 = vld [vmem:[%s1542] sm:$0xe]
        %v1592 = vld [vmem:[%s1542 + $0xc] sm:$0xe]
        %v1593 = vld [vmem:[%s1542 + $0x18] sm:$0xe]
        %v1594 = vld [vmem:[%s1542 + $0x24] sm:$0xe]
        %v1595 = vld [vmem:[%s1542 + $0x30] sm:$0xe]
        %v1596 = vld [vmem:[%s1542 + $0x3c] sm:$0xe]
        %v1597 = vld [vmem:[%s1542 + $0x48] sm:$0xe]
        %v1598 = vld [vmem:[%s1542 + $0x54] sm:$0xe]
        %v1599 = vld [vmem:[%s1542 + $0x60] sm:$0xe]
        %v1600 = vld [vmem:[%s1542 + $0x6c] sm:$0xe]
        %v1601 = vld [vmem:[%s1542 + $0x78] sm:$0xe]
        %v1602 = vld [vmem:[%s1542 + $0x84] sm:$0xe]
        %v1603 = vld [vmem:[%s1542 + $0x90] sm:$0xe]
        %v1604 = vld [vmem:[%s1542 + $0x9c] sm:$0xe]
        %v1605 = vld [vmem:[%s1542 + $0xa8] sm:$0xe]
        %v1606 = vld [vmem:[%s1542 + $0xb4] sm:$0xe]
        %v1639 = vunpack.c.l.b16 %v1414
        %v1640 = vunpack.c.l.b16 %v1415
        %v1641 = vunpack.c.l.b16 %v1416
        %v1642 = vunpack.c.l.b16 %v1417
        %v1643 = vunpack.c.l.b16 %v1418
        %v1644 = vunpack.c.l.b16 %v1419
        %v1645 = vunpack.c.l.b16 %v1420
        %v1646 = vunpack.c.l.b16 %v1421
        %v1647 = vunpack.c.l.b16 %v1422
        %v1648 = vunpack.c.l.b16 %v1423
        %v1649 = vunpack.c.l.b16 %v1424
        %v1650 = vunpack.c.l.b16 %v1425
        %v1651 = vunpack.c.l.b16 %v1426
        %v1652 = vunpack.c.l.b16 %v1427
        %v1653 = vunpack.c.l.b16 %v1428
        %v1654 = vunpack.c.l.b16 %v1429
        %v1655 = vunpack.c.l.b16 %v1430
        %v1656 = vunpack.c.l.b16 %v1431
        %v1657 = vunpack.c.l.b16 %v1432
        %v1658 = vunpack.c.l.b16 %v1433
        %v1659 = vunpack.c.l.b16 %v1434
        %v1660 = vunpack.c.l.b16 %v1435
        %v1661 = vunpack.c.l.b16 %v1436
        %v1662 = vunpack.c.l.b16 %v1437
        %v1663 = vunpack.c.l.b16 %v1438
        %v1664 = vunpack.c.l.b16 %v1439
        %v1665 = vunpack.c.l.b16 %v1440
        %v1666 = vunpack.c.l.b16 %v1441
        %v1667 = vunpack.c.l.b16 %v1442
        %v1668 = vunpack.c.l.b16 %v1443
        %v1669 = vunpack.c.l.b16 %v1444
        %v1670 = vunpack.c.l.b16 %v1445
        %v1671 = vpack.c.b16 %v1640, %v1639
        %v1672 = vpack.c.b16 %v1642, %v1641
        %v1673 = vpack.c.b16 %v1644, %v1643
        %v1674 = vpack.c.b16 %v1646, %v1645
        %v1675 = vpack.c.b16 %v1648, %v1647
        %v1676 = vpack.c.b16 %v1650, %v1649
        %v1677 = vpack.c.b16 %v1652, %v1651
        %v1678 = vpack.c.b16 %v1654, %v1653
        %v1679 = vpack.c.b16 %v1656, %v1655
        %v1680 = vpack.c.b16 %v1658, %v1657
        %v1681 = vpack.c.b16 %v1660, %v1659
        %v1682 = vpack.c.b16 %v1662, %v1661
        %v1683 = vpack.c.b16 %v1664, %v1663
        %v1684 = vpack.c.b16 %v1666, %v1665
        %v1685 = vpack.c.b16 %v1668, %v1667
        %v1686 = vpack.c.b16 %v1670, %v1669
        %v1703 = vunpack.c.l.b16 %v1446
        %v1704 = vunpack.c.l.b16 %v1447
        %v1705 = vunpack.c.l.b16 %v1448
        %v1706 = vunpack.c.l.b16 %v1449
        %v1707 = vunpack.c.l.b16 %v1450
        %v1708 = vunpack.c.l.b16 %v1451
        %v1709 = vunpack.c.l.b16 %v1452
        %v1710 = vunpack.c.l.b16 %v1453
        %v1711 = vunpack.c.l.b16 %v1454
        %v1712 = vunpack.c.l.b16 %v1455
        %v1713 = vunpack.c.l.b16 %v1456
        %v1714 = vunpack.c.l.b16 %v1457
        %v1715 = vunpack.c.l.b16 %v1458
        %v1716 = vunpack.c.l.b16 %v1459
        %v1717 = vunpack.c.l.b16 %v1460
        %v1718 = vunpack.c.l.b16 %v1461
        %v1719 = vpack.c.b16 %v1703, %v1703
        %v1720 = vpack.c.b16 %v1704, %v1704
        %v1721 = vpack.c.b16 %v1705, %v1705
        %v1722 = vpack.c.b16 %v1706, %v1706
        %v1723 = vpack.c.b16 %v1707, %v1707
        %v1724 = vpack.c.b16 %v1708, %v1708
        %v1725 = vpack.c.b16 %v1709, %v1709
        %v1726 = vpack.c.b16 %v1710, %v1710
        %v1727 = vpack.c.b16 %v1711, %v1711
        %v1728 = vpack.c.b16 %v1712, %v1712
        %v1729 = vpack.c.b16 %v1713, %v1713
        %v1730 = vpack.c.b16 %v1714, %v1714
        %v1731 = vpack.c.b16 %v1715, %v1715
        %v1732 = vpack.c.b16 %v1716, %v1716
        %v1733 = vpack.c.b16 %v1717, %v1717
        %v1734 = vpack.c.b16 %v1718, %v1718
        %vm1735 = vsmask.f32 7424
        %v1737 = vshrl.u32 %v1671, 16
        %v1739 = vshll.u32 %v1671, 16
        %v1741 = vrot.slane %v1739, 1
        %v1742 = vor.u32 %v1737, %v1741
        %v1744 = vshll.u32 %v1719, 16
        %v1746 = vrot.slane %v1744, 1
        %v1747 = vsel %vm1735, %v1742, %v1746
        %v1749 = vshrl.u32 %v1672, 16
        %v1751 = vshll.u32 %v1672, 16
        %v1753 = vrot.slane %v1751, 1
        %v1754 = vor.u32 %v1749, %v1753
        %v1756 = vshll.u32 %v1720, 16
        %v1758 = vrot.slane %v1756, 1
        %v1759 = vsel %vm1735, %v1754, %v1758
        %v1761 = vshrl.u32 %v1673, 16
        %v1763 = vshll.u32 %v1673, 16
        %v1765 = vrot.slane %v1763, 1
        %v1766 = vor.u32 %v1761, %v1765
        %v1768 = vshll.u32 %v1721, 16
        %v1770 = vrot.slane %v1768, 1
        %v1771 = vsel %vm1735, %v1766, %v1770
        %v1773 = vshrl.u32 %v1674, 16
        %v1775 = vshll.u32 %v1674, 16
        %v1777 = vrot.slane %v1775, 1
        %v1778 = vor.u32 %v1773, %v1777
        %v1780 = vshll.u32 %v1722, 16
        %v1782 = vrot.slane %v1780, 1
        %v1783 = vsel %vm1735, %v1778, %v1782
        %v1785 = vshrl.u32 %v1675, 16
        %v1787 = vshll.u32 %v1675, 16
        %v1789 = vrot.slane %v1787, 1
        %v1790 = vor.u32 %v1785, %v1789
        %v1792 = vshll.u32 %v1723, 16
        %v1794 = vrot.slane %v1792, 1
        %v1795 = vsel %vm1735, %v1790, %v1794
        %v1797 = vshrl.u32 %v1676, 16
        %v1799 = vshll.u32 %v1676, 16
        %v1801 = vrot.slane %v1799, 1
        %v1802 = vor.u32 %v1797, %v1801
        %v1804 = vshll.u32 %v1724, 16
        %v1806 = vrot.slane %v1804, 1
        %v1807 = vsel %vm1735, %v1802, %v1806
        %v1809 = vshrl.u32 %v1677, 16
        %v1811 = vshll.u32 %v1677, 16
        %v1813 = vrot.slane %v1811, 1
        %v1814 = vor.u32 %v1809, %v1813
        %v1816 = vshll.u32 %v1725, 16
        %v1818 = vrot.slane %v1816, 1
        %v1819 = vsel %vm1735, %v1814, %v1818
        %v1821 = vshrl.u32 %v1678, 16
        %v1823 = vshll.u32 %v1678, 16
        %v1825 = vrot.slane %v1823, 1
        %v1826 = vor.u32 %v1821, %v1825
        %v1828 = vshll.u32 %v1726, 16
        %v1830 = vrot.slane %v1828, 1
        %v1831 = vsel %vm1735, %v1826, %v1830
        %v1833 = vshrl.u32 %v1679, 16
        %v1835 = vshll.u32 %v1679, 16
        %v1837 = vrot.slane %v1835, 1
        %v1838 = vor.u32 %v1833, %v1837
        %v1840 = vshll.u32 %v1727, 16
        %v1842 = vrot.slane %v1840, 1
        %v1843 = vsel %vm1735, %v1838, %v1842
        %v1845 = vshrl.u32 %v1680, 16
        %v1847 = vshll.u32 %v1680, 16
        %v1849 = vrot.slane %v1847, 1
        %v1850 = vor.u32 %v1845, %v1849
        %v1852 = vshll.u32 %v1728, 16
        %v1854 = vrot.slane %v1852, 1
        %v1855 = vsel %vm1735, %v1850, %v1854
        %v1857 = vshrl.u32 %v1681, 16
        %v1859 = vshll.u32 %v1681, 16
        %v1861 = vrot.slane %v1859, 1
        %v1862 = vor.u32 %v1857, %v1861
        %v1864 = vshll.u32 %v1729, 16
        %v1866 = vrot.slane %v1864, 1
        %v1867 = vsel %vm1735, %v1862, %v1866
        %v1869 = vshrl.u32 %v1682, 16
        %v1871 = vshll.u32 %v1682, 16
        %v1873 = vrot.slane %v1871, 1
        %v1874 = vor.u32 %v1869, %v1873
        %v1876 = vshll.u32 %v1730, 16
        %v1878 = vrot.slane %v1876, 1
        %v1879 = vsel %vm1735, %v1874, %v1878
        %v1881 = vshrl.u32 %v1683, 16
        %v1883 = vshll.u32 %v1683, 16
        %v1885 = vrot.slane %v1883, 1
        %v1886 = vor.u32 %v1881, %v1885
        %v1888 = vshll.u32 %v1731, 16
        %v1890 = vrot.slane %v1888, 1
        %v1891 = vsel %vm1735, %v1886, %v1890
        %v1893 = vshrl.u32 %v1684, 16
        %v1895 = vshll.u32 %v1684, 16
        %v1897 = vrot.slane %v1895, 1
        %v1898 = vor.u32 %v1893, %v1897
        %v1900 = vshll.u32 %v1732, 16
        %v1902 = vrot.slane %v1900, 1
        %v1903 = vsel %vm1735, %v1898, %v1902
        %v1905 = vshrl.u32 %v1685, 16
        %v1907 = vshll.u32 %v1685, 16
        %v1909 = vrot.slane %v1907, 1
        %v1910 = vor.u32 %v1905, %v1909
        %v1912 = vshll.u32 %v1733, 16
        %v1914 = vrot.slane %v1912, 1
        %v1915 = vsel %vm1735, %v1910, %v1914
        %v1917 = vshrl.u32 %v1686, 16
        %v1919 = vshll.u32 %v1686, 16
        %v1921 = vrot.slane %v1919, 1
        %v1922 = vor.u32 %v1917, %v1921
        %v1924 = vshll.u32 %v1734, 16
        %v1926 = vrot.slane %v1924, 1
        %v1927 = vsel %vm1735, %v1922, %v1926
        %1928 = vrot.lane.b32.xlu0 %v1747, 32
        %v1929 = vpop.permute.xlu0 %1928
        %1930 = vrot.lane.b32.xlu0 %v1759, 32
        %v1931 = vpop.permute.xlu0 %1930
        %1932 = vrot.lane.b32.xlu0 %v1771, 32
        %v1933 = vpop.permute.xlu0 %1932
        %1934 = vrot.lane.b32.xlu0 %v1783, 32
        %v1935 = vpop.permute.xlu0 %1934
        %1936 = vrot.lane.b32.xlu0 %v1795, 32
        %v1937 = vpop.permute.xlu0 %1936
        %1938 = vrot.lane.b32.xlu0 %v1807, 32
        %v1939 = vpop.permute.xlu0 %1938
        %1940 = vrot.lane.b32.xlu0 %v1819, 32
        %v1941 = vpop.permute.xlu0 %1940
        %1942 = vrot.lane.b32.xlu0 %v1831, 32
        %v1943 = vpop.permute.xlu0 %1942
        %1944 = vrot.lane.b32.xlu0 %v1843, 32
        %v1945 = vpop.permute.xlu0 %1944
        %1946 = vrot.lane.b32.xlu0 %v1855, 32
        %v1947 = vpop.permute.xlu0 %1946
        %1948 = vrot.lane.b32.xlu0 %v1867, 32
        %v1949 = vpop.permute.xlu0 %1948
        %1950 = vrot.lane.b32.xlu0 %v1879, 32
        %v1951 = vpop.permute.xlu0 %1950
        %1952 = vrot.lane.b32.xlu0 %v1891, 32
        %v1953 = vpop.permute.xlu0 %1952
        %1954 = vrot.lane.b32.xlu0 %v1903, 32
        %v1955 = vpop.permute.xlu0 %1954
        %1956 = vrot.lane.b32.xlu0 %v1915, 32
        %v1957 = vpop.permute.xlu0 %1956
        %1958 = vrot.lane.b32.xlu0 %v1927, 32
        %v1959 = vpop.permute.xlu0 %1958
        %v1976 = vunpack.c.l.b16 %v1462
        %v1977 = vunpack.c.l.b16 %v1463
        %v1978 = vunpack.c.l.b16 %v1464
        %v1979 = vunpack.c.l.b16 %v1465
        %v1980 = vunpack.c.l.b16 %v1466
        %v1981 = vunpack.c.l.b16 %v1467
        %v1982 = vunpack.c.l.b16 %v1468
        %v1983 = vunpack.c.l.b16 %v1469
        %v1984 = vunpack.c.l.b16 %v1470
        %v1985 = vunpack.c.l.b16 %v1471
        %v1986 = vunpack.c.l.b16 %v1472
        %v1987 = vunpack.c.l.b16 %v1473
        %v1988 = vunpack.c.l.b16 %v1474
        %v1989 = vunpack.c.l.b16 %v1475
        %v1990 = vunpack.c.l.b16 %v1476
        %v1991 = vunpack.c.l.b16 %v1477
        %v1992 = vpack.c.b16 %v1640, %v1976
        %v1993 = vpack.c.b16 %v1642, %v1977
        %v1994 = vpack.c.b16 %v1644, %v1978
        %v1995 = vpack.c.b16 %v1646, %v1979
        %v1996 = vpack.c.b16 %v1648, %v1980
        %v1997 = vpack.c.b16 %v1650, %v1981
        %v1998 = vpack.c.b16 %v1652, %v1982
        %v1999 = vpack.c.b16 %v1654, %v1983
        %v2000 = vpack.c.b16 %v1656, %v1984
        %v2001 = vpack.c.b16 %v1658, %v1985
        %v2002 = vpack.c.b16 %v1660, %v1986
        %v2003 = vpack.c.b16 %v1662, %v1987
        %v2004 = vpack.c.b16 %v1664, %v1988
        %v2005 = vpack.c.b16 %v1666, %v1989
        %v2006 = vpack.c.b16 %v1668, %v1990
        %v2007 = vpack.c.b16 %v1670, %v1991
        %vm2008 = vcmask 1046528
        %v2009 = vrot.slane %v1992, 1
        %v2010 = vrot.slane %v1719, 1
        %v2011 = vsel %vm2008, %v2009, %v2010
        %v2012 = vrot.slane %v1993, 1
        %v2013 = vrot.slane %v1720, 1
        %v2014 = vsel %vm2008, %v2012, %v2013
        %v2015 = vrot.slane %v1994, 1
        %v2016 = vrot.slane %v1721, 1
        %v2017 = vsel %vm2008, %v2015, %v2016
        %v2018 = vrot.slane %v1995, 1
        %v2019 = vrot.slane %v1722, 1
        %v2020 = vsel %vm2008, %v2018, %v2019
        %v2021 = vrot.slane %v1996, 1
        %v2022 = vrot.slane %v1723, 1
        %v2023 = vsel %vm2008, %v2021, %v2022
        %v2024 = vrot.slane %v1997, 1
        %v2025 = vrot.slane %v1724, 1
        %v2026 = vsel %vm2008, %v2024, %v2025
        %v2027 = vrot.slane %v1998, 1
        %v2028 = vrot.slane %v1725, 1
        %v2029 = vsel %vm2008, %v2027, %v2028
        %v2030 = vrot.slane %v1999, 1
        %v2031 = vrot.slane %v1726, 1
        %v2032 = vsel %vm2008, %v2030, %v2031
        %v2033 = vrot.slane %v2000, 1
        %v2034 = vrot.slane %v1727, 1
        %v2035 = vsel %vm2008, %v2033, %v2034
        %v2036 = vrot.slane %v2001, 1
        %v2037 = vrot.slane %v1728, 1
        %v2038 = vsel %vm2008, %v2036, %v2037
        %v2039 = vrot.slane %v2002, 1
        %v2040 = vrot.slane %v1729, 1
        %v2041 = vsel %vm2008, %v2039, %v2040
        %v2042 = vrot.slane %v2003, 1
        %v2043 = vrot.slane %v1730, 1
        %v2044 = vsel %vm2008, %v2042, %v2043
        %v2045 = vrot.slane %v2004, 1
        %v2046 = vrot.slane %v1731, 1
        %v2047 = vsel %vm2008, %v2045, %v2046
        %v2048 = vrot.slane %v2005, 1
        %v2049 = vrot.slane %v1732, 1
        %v2050 = vsel %vm2008, %v2048, %v2049
        %v2051 = vrot.slane %v2006, 1
        %v2052 = vrot.slane %v1733, 1
        %v2053 = vsel %vm2008, %v2051, %v2052
        %v2054 = vrot.slane %v2007, 1
        %v2055 = vrot.slane %v1734, 1
        %v2056 = vsel %vm2008, %v2054, %v2055
        %2057 = vrot.lane.b32.xlu0 %v2011, 64
        %v2058 = vpop.permute.xlu0 %2057
        %2059 = vrot.lane.b32.xlu0 %v2014, 64
        %v2060 = vpop.permute.xlu0 %2059
        %2061 = vrot.lane.b32.xlu0 %v2017, 64
        %v2062 = vpop.permute.xlu0 %2061
        %2063 = vrot.lane.b32.xlu0 %v2020, 64
        %v2064 = vpop.permute.xlu0 %2063
        %2065 = vrot.lane.b32.xlu0 %v2023, 64
        %v2066 = vpop.permute.xlu0 %2065
        %2067 = vrot.lane.b32.xlu0 %v2026, 64
        %v2068 = vpop.permute.xlu0 %2067
        %2069 = vrot.lane.b32.xlu0 %v2029, 64
        %v2070 = vpop.permute.xlu0 %2069
        %2071 = vrot.lane.b32.xlu0 %v2032, 64
        %v2072 = vpop.permute.xlu0 %2071
        %2073 = vrot.lane.b32.xlu0 %v2035, 64
        %v2074 = vpop.permute.xlu0 %2073
        %2075 = vrot.lane.b32.xlu0 %v2038, 64
        %v2076 = vpop.permute.xlu0 %2075
        %2077 = vrot.lane.b32.xlu0 %v2041, 64
        %v2078 = vpop.permute.xlu0 %2077
        %2079 = vrot.lane.b32.xlu0 %v2044, 64
        %v2080 = vpop.permute.xlu0 %2079
        %2081 = vrot.lane.b32.xlu0 %v2047, 64
        %v2082 = vpop.permute.xlu0 %2081
        %2083 = vrot.lane.b32.xlu0 %v2050, 64
        %v2084 = vpop.permute.xlu0 %2083
        %2085 = vrot.lane.b32.xlu0 %v2053, 64
        %v2086 = vpop.permute.xlu0 %2085
        %2087 = vrot.lane.b32.xlu0 %v2056, 64
        %v2088 = vpop.permute.xlu0 %2087
        %v2121 = vunpack.c.l.b16 %v1478
        %v2122 = vunpack.c.l.b16 %v1479
        %v2123 = vunpack.c.l.b16 %v1480
        %v2124 = vunpack.c.l.b16 %v1481
        %v2125 = vunpack.c.l.b16 %v1482
        %v2126 = vunpack.c.l.b16 %v1483
        %v2127 = vunpack.c.l.b16 %v1484
        %v2128 = vunpack.c.l.b16 %v1485
        %v2129 = vunpack.c.l.b16 %v1486
        %v2130 = vunpack.c.l.b16 %v1487
        %v2131 = vunpack.c.l.b16 %v1488
        %v2132 = vunpack.c.l.b16 %v1489
        %v2133 = vunpack.c.l.b16 %v1490
        %v2134 = vunpack.c.l.b16 %v1491
        %v2135 = vunpack.c.l.b16 %v1492
        %v2136 = vunpack.c.l.b16 %v1493
        %v2137 = vunpack.c.l.b16 %v1494
        %v2138 = vunpack.c.l.b16 %v1495
        %v2139 = vunpack.c.l.b16 %v1496
        %v2140 = vunpack.c.l.b16 %v1497
        %v2141 = vunpack.c.l.b16 %v1498
        %v2142 = vunpack.c.l.b16 %v1499
        %v2143 = vunpack.c.l.b16 %v1500
        %v2144 = vunpack.c.l.b16 %v1501
        %v2145 = vunpack.c.l.b16 %v1502
        %v2146 = vunpack.c.l.b16 %v1503
        %v2147 = vunpack.c.l.b16 %v1504
        %v2148 = vunpack.c.l.b16 %v1505
        %v2149 = vunpack.c.l.b16 %v1506
        %v2150 = vunpack.c.l.b16 %v1507
        %v2151 = vunpack.c.l.b16 %v1508
        %v2152 = vunpack.c.l.b16 %v1509
        %v2153 = vpack.c.b16 %v2122, %v2121
        %v2154 = vpack.c.b16 %v2124, %v2123
        %v2155 = vpack.c.b16 %v2126, %v2125
        %v2156 = vpack.c.b16 %v2128, %v2127
        %v2157 = vpack.c.b16 %v2130, %v2129
        %v2158 = vpack.c.b16 %v2132, %v2131
        %v2159 = vpack.c.b16 %v2134, %v2133
        %v2160 = vpack.c.b16 %v2136, %v2135
        %v2161 = vpack.c.b16 %v2138, %v2137
        %v2162 = vpack.c.b16 %v2140, %v2139
        %v2163 = vpack.c.b16 %v2142, %v2141
        %v2164 = vpack.c.b16 %v2144, %v2143
        %v2165 = vpack.c.b16 %v2146, %v2145
        %v2166 = vpack.c.b16 %v2148, %v2147
        %v2167 = vpack.c.b16 %v2150, %v2149
        %v2168 = vpack.c.b16 %v2152, %v2151
        %2169 = vrot.lane.b32.xlu0 %v2153, 96
        %v2170 = vpop.permute.xlu0 %2169
        %2171 = vrot.lane.b32.xlu0 %v2154, 96
        %v2172 = vpop.permute.xlu0 %2171
        %2173 = vrot.lane.b32.xlu0 %v2155, 96
        %v2174 = vpop.permute.xlu0 %2173
        %2175 = vrot.lane.b32.xlu0 %v2156, 96
        %v2176 = vpop.permute.xlu0 %2175
        %2177 = vrot.lane.b32.xlu0 %v2157, 96
        %v2178 = vpop.permute.xlu0 %2177
        %2179 = vrot.lane.b32.xlu0 %v2158, 96
        %v2180 = vpop.permute.xlu0 %2179
        %2181 = vrot.lane.b32.xlu0 %v2159, 96
        %v2182 = vpop.permute.xlu0 %2181
        %2183 = vrot.lane.b32.xlu0 %v2160, 96
        %v2184 = vpop.permute.xlu0 %2183
        %2185 = vrot.lane.b32.xlu0 %v2161, 96
        %v2186 = vpop.permute.xlu0 %2185
        %2187 = vrot.lane.b32.xlu0 %v2162, 96
        %v2188 = vpop.permute.xlu0 %2187
        %2189 = vrot.lane.b32.xlu0 %v2163, 96
        %v2190 = vpop.permute.xlu0 %2189
        %2191 = vrot.lane.b32.xlu0 %v2164, 96
        %v2192 = vpop.permute.xlu0 %2191
        %2193 = vrot.lane.b32.xlu0 %v2165, 96
        %v2194 = vpop.permute.xlu0 %2193
        %2195 = vrot.lane.b32.xlu0 %v2166, 96
        %v2196 = vpop.permute.xlu0 %2195
        %2197 = vrot.lane.b32.xlu0 %v2167, 96
        %v2198 = vpop.permute.xlu0 %2197
        %2199 = vrot.lane.b32.xlu0 %v2168, 96
        %v2200 = vpop.permute.xlu0 %2199
        %v2217 = vunpack.c.l.b16 %v1510
        %v2218 = vunpack.c.l.b16 %v1511
        %v2219 = vunpack.c.l.b16 %v1512
        %v2220 = vunpack.c.l.b16 %v1513
        %v2221 = vunpack.c.l.b16 %v1514
        %v2222 = vunpack.c.l.b16 %v1515
        %v2223 = vunpack.c.l.b16 %v1516
        %v2224 = vunpack.c.l.b16 %v1517
        %v2225 = vunpack.c.l.b16 %v1518
        %v2226 = vunpack.c.l.b16 %v1519
        %v2227 = vunpack.c.l.b16 %v1520
        %v2228 = vunpack.c.l.b16 %v1521
        %v2229 = vunpack.c.l.b16 %v1522
        %v2230 = vunpack.c.l.b16 %v1523
        %v2231 = vunpack.c.l.b16 %v1524
        %v2232 = vunpack.c.l.b16 %v1525
        %v2233 = vpack.c.b16 %v2217, %v2217
        %v2234 = vpack.c.b16 %v2218, %v2218
        %v2235 = vpack.c.b16 %v2219, %v2219
        %v2236 = vpack.c.b16 %v2220, %v2220
        %v2237 = vpack.c.b16 %v2221, %v2221
        %v2238 = vpack.c.b16 %v2222, %v2222
        %v2239 = vpack.c.b16 %v2223, %v2223
        %v2240 = vpack.c.b16 %v2224, %v2224
        %v2241 = vpack.c.b16 %v2225, %v2225
        %v2242 = vpack.c.b16 %v2226, %v2226
        %v2243 = vpack.c.b16 %v2227, %v2227
        %v2244 = vpack.c.b16 %v2228, %v2228
        %v2245 = vpack.c.b16 %v2229, %v2229
        %v2246 = vpack.c.b16 %v2230, %v2230
        %v2247 = vpack.c.b16 %v2231, %v2231
        %v2248 = vpack.c.b16 %v2232, %v2232
        %v2250 = vshrl.u32 %v2153, 16
        %v2252 = vshll.u32 %v2153, 16
        %v2254 = vrot.slane %v2252, 1
        %v2255 = vor.u32 %v2250, %v2254
        %v2257 = vshll.u32 %v2233, 16
        %v2259 = vrot.slane %v2257, 1
        %v2260 = vsel %vm1735, %v2255, %v2259
        %v2262 = vshrl.u32 %v2154, 16
        %v2264 = vshll.u32 %v2154, 16
        %v2266 = vrot.slane %v2264, 1
        %v2267 = vor.u32 %v2262, %v2266
        %v2269 = vshll.u32 %v2234, 16
        %v2271 = vrot.slane %v2269, 1
        %v2272 = vsel %vm1735, %v2267, %v2271
        %v2274 = vshrl.u32 %v2155, 16
        %v2276 = vshll.u32 %v2155, 16
        %v2278 = vrot.slane %v2276, 1
        %v2279 = vor.u32 %v2274, %v2278
        %v2281 = vshll.u32 %v2235, 16
        %v2283 = vrot.slane %v2281, 1
        %v2284 = vsel %vm1735, %v2279, %v2283
        %v2286 = vshrl.u32 %v2156, 16
        %v2288 = vshll.u32 %v2156, 16
        %v2290 = vrot.slane %v2288, 1
        %v2291 = vor.u32 %v2286, %v2290
        %v2293 = vshll.u32 %v2236, 16
        %v2295 = vrot.slane %v2293, 1
        %v2296 = vsel %vm1735, %v2291, %v2295
        %v2298 = vshrl.u32 %v2157, 16
        %v2300 = vshll.u32 %v2157, 16
        %v2302 = vrot.slane %v2300, 1
        %v2303 = vor.u32 %v2298, %v2302
        %v2305 = vshll.u32 %v2237, 16
        %v2307 = vrot.slane %v2305, 1
        %v2308 = vsel %vm1735, %v2303, %v2307
        %v2310 = vshrl.u32 %v2158, 16
        %v2312 = vshll.u32 %v2158, 16
        %v2314 = vrot.slane %v2312, 1
        %v2315 = vor.u32 %v2310, %v2314
        %v2317 = vshll.u32 %v2238, 16
        %v2319 = vrot.slane %v2317, 1
        %v2320 = vsel %vm1735, %v2315, %v2319
        %v2322 = vshrl.u32 %v2159, 16
        %v2324 = vshll.u32 %v2159, 16
        %v2326 = vrot.slane %v2324, 1
        %v2327 = vor.u32 %v2322, %v2326
        %v2329 = vshll.u32 %v2239, 16
        %v2331 = vrot.slane %v2329, 1
        %v2332 = vsel %vm1735, %v2327, %v2331
        %v2334 = vshrl.u32 %v2160, 16
        %v2336 = vshll.u32 %v2160, 16
        %v2338 = vrot.slane %v2336, 1
        %v2339 = vor.u32 %v2334, %v2338
        %v2341 = vshll.u32 %v2240, 16
        %v2343 = vrot.slane %v2341, 1
        %v2344 = vsel %vm1735, %v2339, %v2343
        %v2346 = vshrl.u32 %v2161, 16
        %v2348 = vshll.u32 %v2161, 16
        %v2350 = vrot.slane %v2348, 1
        %v2351 = vor.u32 %v2346, %v2350
        %v2353 = vshll.u32 %v2241, 16
        %v2355 = vrot.slane %v2353, 1
        %v2356 = vsel %vm1735, %v2351, %v2355
        %v2358 = vshrl.u32 %v2162, 16
        %v2360 = vshll.u32 %v2162, 16
        %v2362 = vrot.slane %v2360, 1
        %v2363 = vor.u32 %v2358, %v2362
        %v2365 = vshll.u32 %v2242, 16
        %v2367 = vrot.slane %v2365, 1
        %v2368 = vsel %vm1735, %v2363, %v2367
        %v2370 = vshrl.u32 %v2163, 16
        %v2372 = vshll.u32 %v2163, 16
        %v2374 = vrot.slane %v2372, 1
        %v2375 = vor.u32 %v2370, %v2374
        %v2377 = vshll.u32 %v2243, 16
        %v2379 = vrot.slane %v2377, 1
        %v2380 = vsel %vm1735, %v2375, %v2379
        %v2382 = vshrl.u32 %v2164, 16
        %v2384 = vshll.u32 %v2164, 16
        %v2386 = vrot.slane %v2384, 1
        %v2387 = vor.u32 %v2382, %v2386
        %v2389 = vshll.u32 %v2244, 16
        %v2391 = vrot.slane %v2389, 1
        %v2392 = vsel %vm1735, %v2387, %v2391
        %v2394 = vshrl.u32 %v2165, 16
        %v2396 = vshll.u32 %v2165, 16
        %v2398 = vrot.slane %v2396, 1
        %v2399 = vor.u32 %v2394, %v2398
        %v2401 = vshll.u32 %v2245, 16
        %v2403 = vrot.slane %v2401, 1
        %v2404 = vsel %vm1735, %v2399, %v2403
        %v2406 = vshrl.u32 %v2166, 16
        %v2408 = vshll.u32 %v2166, 16
        %v2410 = vrot.slane %v2408, 1
        %v2411 = vor.u32 %v2406, %v2410
        %v2413 = vshll.u32 %v2246, 16
        %v2415 = vrot.slane %v2413, 1
        %v2416 = vsel %vm1735, %v2411, %v2415
        %v2418 = vshrl.u32 %v2167, 16
        %v2420 = vshll.u32 %v2167, 16
        %v2422 = vrot.slane %v2420, 1
        %v2423 = vor.u32 %v2418, %v2422
        %v2425 = vshll.u32 %v2247, 16
        %v2427 = vrot.slane %v2425, 1
        %v2428 = vsel %vm1735, %v2423, %v2427
        %v2430 = vshrl.u32 %v2168, 16
        %v2432 = vshll.u32 %v2168, 16
        %v2434 = vrot.slane %v2432, 1
        %v2435 = vor.u32 %v2430, %v2434
        %v2437 = vshll.u32 %v2248, 16
        %v2439 = vrot.slane %v2437, 1
        %v2440 = vsel %vm1735, %v2435, %v2439
        %v2457 = vunpack.c.l.b16 %v1526
        %v2458 = vunpack.c.l.b16 %v1527
        %v2459 = vunpack.c.l.b16 %v1528
        %v2460 = vunpack.c.l.b16 %v1529
        %v2461 = vunpack.c.l.b16 %v1530
        %v2462 = vunpack.c.l.b16 %v1531
        %v2463 = vunpack.c.l.b16 %v1532
        %v2464 = vunpack.c.l.b16 %v1533
        %v2465 = vunpack.c.l.b16 %v1534
        %v2466 = vunpack.c.l.b16 %v1535
        %v2467 = vunpack.c.l.b16 %v1536
        %v2468 = vunpack.c.l.b16 %v1537
        %v2469 = vunpack.c.l.b16 %v1538
        %v2470 = vunpack.c.l.b16 %v1539
        %v2471 = vunpack.c.l.b16 %v1540
        %v2472 = vunpack.c.l.b16 %v1541
        %v2473 = vpack.c.b16 %v2122, %v2457
        %v2474 = vpack.c.b16 %v2124, %v2458
        %v2475 = vpack.c.b16 %v2126, %v2459
        %v2476 = vpack.c.b16 %v2128, %v2460
        %v2477 = vpack.c.b16 %v2130, %v2461
        %v2478 = vpack.c.b16 %v2132, %v2462
        %v2479 = vpack.c.b16 %v2134, %v2463
        %v2480 = vpack.c.b16 %v2136, %v2464
        %v2481 = vpack.c.b16 %v2138, %v2465
        %v2482 = vpack.c.b16 %v2140, %v2466
        %v2483 = vpack.c.b16 %v2142, %v2467
        %v2484 = vpack.c.b16 %v2144, %v2468
        %v2485 = vpack.c.b16 %v2146, %v2469
        %v2486 = vpack.c.b16 %v2148, %v2470
        %v2487 = vpack.c.b16 %v2150, %v2471
        %v2488 = vpack.c.b16 %v2152, %v2472
        %v2489 = vrot.slane %v2473, 1
        %v2490 = vrot.slane %v2233, 1
        %v2491 = vsel %vm2008, %v2489, %v2490
        %v2492 = vrot.slane %v2474, 1
        %v2493 = vrot.slane %v2234, 1
        %v2494 = vsel %vm2008, %v2492, %v2493
        %v2495 = vrot.slane %v2475, 1
        %v2496 = vrot.slane %v2235, 1
        %v2497 = vsel %vm2008, %v2495, %v2496
        %v2498 = vrot.slane %v2476, 1
        %v2499 = vrot.slane %v2236, 1
        %v2500 = vsel %vm2008, %v2498, %v2499
        %v2501 = vrot.slane %v2477, 1
        %v2502 = vrot.slane %v2237, 1
        %v2503 = vsel %vm2008, %v2501, %v2502
        %v2504 = vrot.slane %v2478, 1
        %v2505 = vrot.slane %v2238, 1
        %v2506 = vsel %vm2008, %v2504, %v2505
        %v2507 = vrot.slane %v2479, 1
        %v2508 = vrot.slane %v2239, 1
        %v2509 = vsel %vm2008, %v2507, %v2508
        %v2510 = vrot.slane %v2480, 1
        %v2511 = vrot.slane %v2240, 1
        %v2512 = vsel %vm2008, %v2510, %v2511
        %v2513 = vrot.slane %v2481, 1
        %v2514 = vrot.slane %v2241, 1
        %v2515 = vsel %vm2008, %v2513, %v2514
        %v2516 = vrot.slane %v2482, 1
        %v2517 = vrot.slane %v2242, 1
        %v2518 = vsel %vm2008, %v2516, %v2517
        %v2519 = vrot.slane %v2483, 1
        %v2520 = vrot.slane %v2243, 1
        %v2521 = vsel %vm2008, %v2519, %v2520
        %v2522 = vrot.slane %v2484, 1
        %v2523 = vrot.slane %v2244, 1
        %v2524 = vsel %vm2008, %v2522, %v2523
        %v2525 = vrot.slane %v2485, 1
        %v2526 = vrot.slane %v2245, 1
        %v2527 = vsel %vm2008, %v2525, %v2526
        %v2528 = vrot.slane %v2486, 1
        %v2529 = vrot.slane %v2246, 1
        %v2530 = vsel %vm2008, %v2528, %v2529
        %v2531 = vrot.slane %v2487, 1
        %v2532 = vrot.slane %v2247, 1
        %v2533 = vsel %vm2008, %v2531, %v2532
        %v2534 = vrot.slane %v2488, 1
        %v2535 = vrot.slane %v2248, 1
        %v2536 = vsel %vm2008, %v2534, %v2535
        %2537 = vrot.lane.b32.xlu0 %v2491, 32
        %v2538 = vpop.permute.xlu0 %2537
        %2539 = vrot.lane.b32.xlu0 %v2494, 32
        %v2540 = vpop.permute.xlu0 %2539
        %2541 = vrot.lane.b32.xlu0 %v2497, 32
        %v2542 = vpop.permute.xlu0 %2541
        %2543 = vrot.lane.b32.xlu0 %v2500, 32
        %v2544 = vpop.permute.xlu0 %2543
        %2545 = vrot.lane.b32.xlu0 %v2503, 32
        %v2546 = vpop.permute.xlu0 %2545
        %2547 = vrot.lane.b32.xlu0 %v2506, 32
        %v2548 = vpop.permute.xlu0 %2547
        %2549 = vrot.lane.b32.xlu0 %v2509, 32
        %v2550 = vpop.permute.xlu0 %2549
        %2551 = vrot.lane.b32.xlu0 %v2512, 32
        %v2552 = vpop.permute.xlu0 %2551
        %2553 = vrot.lane.b32.xlu0 %v2515, 32
        %v2554 = vpop.permute.xlu0 %2553
        %2555 = vrot.lane.b32.xlu0 %v2518, 32
        %v2556 = vpop.permute.xlu0 %2555
        %2557 = vrot.lane.b32.xlu0 %v2521, 32
        %v2558 = vpop.permute.xlu0 %2557
        %2559 = vrot.lane.b32.xlu0 %v2524, 32
        %v2560 = vpop.permute.xlu0 %2559
        %2561 = vrot.lane.b32.xlu0 %v2527, 32
        %v2562 = vpop.permute.xlu0 %2561
        %2563 = vrot.lane.b32.xlu0 %v2530, 32
        %v2564 = vpop.permute.xlu0 %2563
        %2565 = vrot.lane.b32.xlu0 %v2533, 32
        %v2566 = vpop.permute.xlu0 %2565
        %2567 = vrot.lane.b32.xlu0 %v2536, 32
        %v2568 = vpop.permute.xlu0 %2567
        %v2601 = vunpack.c.l.b16 %v1543
        %v2602 = vunpack.c.l.b16 %v1544
        %v2603 = vunpack.c.l.b16 %v1545
        %v2604 = vunpack.c.l.b16 %v1546
        %v2605 = vunpack.c.l.b16 %v1547
        %v2606 = vunpack.c.l.b16 %v1548
        %v2607 = vunpack.c.l.b16 %v1549
        %v2608 = vunpack.c.l.b16 %v1550
        %v2609 = vunpack.c.l.b16 %v1551
        %v2610 = vunpack.c.l.b16 %v1552
        %v2611 = vunpack.c.l.b16 %v1553
        %v2612 = vunpack.c.l.b16 %v1554
        %v2613 = vunpack.c.l.b16 %v1555
        %v2614 = vunpack.c.l.b16 %v1556
        %v2615 = vunpack.c.l.b16 %v1557
        %v2616 = vunpack.c.l.b16 %v1558
        %v2617 = vunpack.c.l.b16 %v1559
        %v2618 = vunpack.c.l.b16 %v1560
        %v2619 = vunpack.c.l.b16 %v1561
        %v2620 = vunpack.c.l.b16 %v1562
        %v2621 = vunpack.c.l.b16 %v1563
        %v2622 = vunpack.c.l.b16 %v1564
        %v2623 = vunpack.c.l.b16 %v1565
        %v2624 = vunpack.c.l.b16 %v1566
        %v2625 = vunpack.c.l.b16 %v1567
        %v2626 = vunpack.c.l.b16 %v1568
        %v2627 = vunpack.c.l.b16 %v1569
        %v2628 = vunpack.c.l.b16 %v1570
        %v2629 = vunpack.c.l.b16 %v1571
        %v2630 = vunpack.c.l.b16 %v1572
        %v2631 = vunpack.c.l.b16 %v1573
        %v2632 = vunpack.c.l.b16 %v1574
        %v2633 = vpack.c.b16 %v2602, %v2601
        %v2634 = vpack.c.b16 %v2604, %v2603
        %v2635 = vpack.c.b16 %v2606, %v2605
        %v2636 = vpack.c.b16 %v2608, %v2607
        %v2637 = vpack.c.b16 %v2610, %v2609
        %v2638 = vpack.c.b16 %v2612, %v2611
        %v2639 = vpack.c.b16 %v2614, %v2613
        %v2640 = vpack.c.b16 %v2616, %v2615
        %v2641 = vpack.c.b16 %v2618, %v2617
        %v2642 = vpack.c.b16 %v2620, %v2619
        %v2643 = vpack.c.b16 %v2622, %v2621
        %v2644 = vpack.c.b16 %v2624, %v2623
        %v2645 = vpack.c.b16 %v2626, %v2625
        %v2646 = vpack.c.b16 %v2628, %v2627
        %v2647 = vpack.c.b16 %v2630, %v2629
        %v2648 = vpack.c.b16 %v2632, %v2631
        %2649 = vrot.lane.b32.xlu0 %v2633, 64
        %v2650 = vpop.permute.xlu0 %2649
        %2651 = vrot.lane.b32.xlu0 %v2634, 64
        %v2652 = vpop.permute.xlu0 %2651
        %2653 = vrot.lane.b32.xlu0 %v2635, 64
        %v2654 = vpop.permute.xlu0 %2653
        %2655 = vrot.lane.b32.xlu0 %v2636, 64
        %v2656 = vpop.permute.xlu0 %2655
        %2657 = vrot.lane.b32.xlu0 %v2637, 64
        %v2658 = vpop.permute.xlu0 %2657
        %2659 = vrot.lane.b32.xlu0 %v2638, 64
        %v2660 = vpop.permute.xlu0 %2659
        %2661 = vrot.lane.b32.xlu0 %v2639, 64
        %v2662 = vpop.permute.xlu0 %2661
        %2663 = vrot.lane.b32.xlu0 %v2640, 64
        %v2664 = vpop.permute.xlu0 %2663
        %2665 = vrot.lane.b32.xlu0 %v2641, 64
        %v2666 = vpop.permute.xlu0 %2665
        %2667 = vrot.lane.b32.xlu0 %v2642, 64
        %v2668 = vpop.permute.xlu0 %2667
        %2669 = vrot.lane.b32.xlu0 %v2643, 64
        %v2670 = vpop.permute.xlu0 %2669
        %2671 = vrot.lane.b32.xlu0 %v2644, 64
        %v2672 = vpop.permute.xlu0 %2671
        %2673 = vrot.lane.b32.xlu0 %v2645, 64
        %v2674 = vpop.permute.xlu0 %2673
        %2675 = vrot.lane.b32.xlu0 %v2646, 64
        %v2676 = vpop.permute.xlu0 %2675
        %2677 = vrot.lane.b32.xlu0 %v2647, 64
        %v2678 = vpop.permute.xlu0 %2677
        %2679 = vrot.lane.b32.xlu0 %v2648, 64
        %v2680 = vpop.permute.xlu0 %2679
        %v2697 = vunpack.c.l.b16 %v1575
        %v2698 = vunpack.c.l.b16 %v1576
        %v2699 = vunpack.c.l.b16 %v1577
        %v2700 = vunpack.c.l.b16 %v1578
        %v2701 = vunpack.c.l.b16 %v1579
        %v2702 = vunpack.c.l.b16 %v1580
        %v2703 = vunpack.c.l.b16 %v1581
        %v2704 = vunpack.c.l.b16 %v1582
        %v2705 = vunpack.c.l.b16 %v1583
        %v2706 = vunpack.c.l.b16 %v1584
        %v2707 = vunpack.c.l.b16 %v1585
        %v2708 = vunpack.c.l.b16 %v1586
        %v2709 = vunpack.c.l.b16 %v1587
        %v2710 = vunpack.c.l.b16 %v1588
        %v2711 = vunpack.c.l.b16 %v1589
        %v2712 = vunpack.c.l.b16 %v1590
        %v2713 = vpack.c.b16 %v2697, %v2697
        %v2714 = vpack.c.b16 %v2698, %v2698
        %v2715 = vpack.c.b16 %v2699, %v2699
        %v2716 = vpack.c.b16 %v2700, %v2700
        %v2717 = vpack.c.b16 %v2701, %v2701
        %v2718 = vpack.c.b16 %v2702, %v2702
        %v2719 = vpack.c.b16 %v2703, %v2703
        %v2720 = vpack.c.b16 %v2704, %v2704
        %v2721 = vpack.c.b16 %v2705, %v2705
        %v2722 = vpack.c.b16 %v2706, %v2706
        %v2723 = vpack.c.b16 %v2707, %v2707
        %v2724 = vpack.c.b16 %v2708, %v2708
        %v2725 = vpack.c.b16 %v2709, %v2709
        %v2726 = vpack.c.b16 %v2710, %v2710
        %v2727 = vpack.c.b16 %v2711, %v2711
        %v2728 = vpack.c.b16 %v2712, %v2712
        %v2730 = vshrl.u32 %v2633, 16
        %v2732 = vshll.u32 %v2633, 16
        %v2734 = vrot.slane %v2732, 1
        %v2735 = vor.u32 %v2730, %v2734
        %v2737 = vshll.u32 %v2713, 16
        %v2739 = vrot.slane %v2737, 1
        %v2740 = vsel %vm1735, %v2735, %v2739
        %v2742 = vshrl.u32 %v2634, 16
        %v2744 = vshll.u32 %v2634, 16
        %v2746 = vrot.slane %v2744, 1
        %v2747 = vor.u32 %v2742, %v2746
        %v2749 = vshll.u32 %v2714, 16
        %v2751 = vrot.slane %v2749, 1
        %v2752 = vsel %vm1735, %v2747, %v2751
        %v2754 = vshrl.u32 %v2635, 16
        %v2756 = vshll.u32 %v2635, 16
        %v2758 = vrot.slane %v2756, 1
        %v2759 = vor.u32 %v2754, %v2758
        %v2761 = vshll.u32 %v2715, 16
        %v2763 = vrot.slane %v2761, 1
        %v2764 = vsel %vm1735, %v2759, %v2763
        %v2766 = vshrl.u32 %v2636, 16
        %v2768 = vshll.u32 %v2636, 16
        %v2770 = vrot.slane %v2768, 1
        %v2771 = vor.u32 %v2766, %v2770
        %v2773 = vshll.u32 %v2716, 16
        %v2775 = vrot.slane %v2773, 1
        %v2776 = vsel %vm1735, %v2771, %v2775
        %v2778 = vshrl.u32 %v2637, 16
        %v2780 = vshll.u32 %v2637, 16
        %v2782 = vrot.slane %v2780, 1
        %v2783 = vor.u32 %v2778, %v2782
        %v2785 = vshll.u32 %v2717, 16
        %v2787 = vrot.slane %v2785, 1
        %v2788 = vsel %vm1735, %v2783, %v2787
        %v2790 = vshrl.u32 %v2638, 16
        %v2792 = vshll.u32 %v2638, 16
        %v2794 = vrot.slane %v2792, 1
        %v2795 = vor.u32 %v2790, %v2794
        %v2797 = vshll.u32 %v2718, 16
        %v2799 = vrot.slane %v2797, 1
        %v2800 = vsel %vm1735, %v2795, %v2799
        %v2802 = vshrl.u32 %v2639, 16
        %v2804 = vshll.u32 %v2639, 16
        %v2806 = vrot.slane %v2804, 1
        %v2807 = vor.u32 %v2802, %v2806
        %v2809 = vshll.u32 %v2719, 16
        %v2811 = vrot.slane %v2809, 1
        %v2812 = vsel %vm1735, %v2807, %v2811
        %v2814 = vshrl.u32 %v2640, 16
        %v2816 = vshll.u32 %v2640, 16
        %v2818 = vrot.slane %v2816, 1
        %v2819 = vor.u32 %v2814, %v2818
        %v2821 = vshll.u32 %v2720, 16
        %v2823 = vrot.slane %v2821, 1
        %v2824 = vsel %vm1735, %v2819, %v2823
        %v2826 = vshrl.u32 %v2641, 16
        %v2828 = vshll.u32 %v2641, 16
        %v2830 = vrot.slane %v2828, 1
        %v2831 = vor.u32 %v2826, %v2830
        %v2833 = vshll.u32 %v2721, 16
        %v2835 = vrot.slane %v2833, 1
        %v2836 = vsel %vm1735, %v2831, %v2835
        %v2838 = vshrl.u32 %v2642, 16
        %v2840 = vshll.u32 %v2642, 16
        %v2842 = vrot.slane %v2840, 1
        %v2843 = vor.u32 %v2838, %v2842
        %v2845 = vshll.u32 %v2722, 16
        %v2847 = vrot.slane %v2845, 1
        %v2848 = vsel %vm1735, %v2843, %v2847
        %v2850 = vshrl.u32 %v2643, 16
        %v2852 = vshll.u32 %v2643, 16
        %v2854 = vrot.slane %v2852, 1
        %v2855 = vor.u32 %v2850, %v2854
        %v2857 = vshll.u32 %v2723, 16
        %v2859 = vrot.slane %v2857, 1
        %v2860 = vsel %vm1735, %v2855, %v2859
        %v2862 = vshrl.u32 %v2644, 16
        %v2864 = vshll.u32 %v2644, 16
        %v2866 = vrot.slane %v2864, 1
        %v2867 = vor.u32 %v2862, %v2866
        %v2869 = vshll.u32 %v2724, 16
        %v2871 = vrot.slane %v2869, 1
        %v2872 = vsel %vm1735, %v2867, %v2871
        %v2874 = vshrl.u32 %v2645, 16
        %v2876 = vshll.u32 %v2645, 16
        %v2878 = vrot.slane %v2876, 1
        %v2879 = vor.u32 %v2874, %v2878
        %v2881 = vshll.u32 %v2725, 16
        %v2883 = vrot.slane %v2881, 1
        %v2884 = vsel %vm1735, %v2879, %v2883
        %v2886 = vshrl.u32 %v2646, 16
        %v2888 = vshll.u32 %v2646, 16
        %v2890 = vrot.slane %v2888, 1
        %v2891 = vor.u32 %v2886, %v2890
        %v2893 = vshll.u32 %v2726, 16
        %v2895 = vrot.slane %v2893, 1
        %v2896 = vsel %vm1735, %v2891, %v2895
        %v2898 = vshrl.u32 %v2647, 16
        %v2900 = vshll.u32 %v2647, 16
        %v2902 = vrot.slane %v2900, 1
        %v2903 = vor.u32 %v2898, %v2902
        %v2905 = vshll.u32 %v2727, 16
        %v2907 = vrot.slane %v2905, 1
        %v2908 = vsel %vm1735, %v2903, %v2907
        %v2910 = vshrl.u32 %v2648, 16
        %v2912 = vshll.u32 %v2648, 16
        %v2914 = vrot.slane %v2912, 1
        %v2915 = vor.u32 %v2910, %v2914
        %v2917 = vshll.u32 %v2728, 16
        %v2919 = vrot.slane %v2917, 1
        %v2920 = vsel %vm1735, %v2915, %v2919
        %2921 = vrot.lane.b32.xlu0 %v2740, 96
        %v2922 = vpop.permute.xlu0 %2921
        %2923 = vrot.lane.b32.xlu0 %v2752, 96
        %v2924 = vpop.permute.xlu0 %2923
        %2925 = vrot.lane.b32.xlu0 %v2764, 96
        %v2926 = vpop.permute.xlu0 %2925
        %2927 = vrot.lane.b32.xlu0 %v2776, 96
        %v2928 = vpop.permute.xlu0 %2927
        %2929 = vrot.lane.b32.xlu0 %v2788, 96
        %v2930 = vpop.permute.xlu0 %2929
        %2931 = vrot.lane.b32.xlu0 %v2800, 96
        %v2932 = vpop.permute.xlu0 %2931
        %2933 = vrot.lane.b32.xlu0 %v2812, 96
        %v2934 = vpop.permute.xlu0 %2933
        %2935 = vrot.lane.b32.xlu0 %v2824, 96
        %v2936 = vpop.permute.xlu0 %2935
        %2937 = vrot.lane.b32.xlu0 %v2836, 96
        %v2938 = vpop.permute.xlu0 %2937
        %2939 = vrot.lane.b32.xlu0 %v2848, 96
        %v2940 = vpop.permute.xlu0 %2939
        %2941 = vrot.lane.b32.xlu0 %v2860, 96
        %v2942 = vpop.permute.xlu0 %2941
        %2943 = vrot.lane.b32.xlu0 %v2872, 96
        %v2944 = vpop.permute.xlu0 %2943
        %2945 = vrot.lane.b32.xlu0 %v2884, 96
        %v2946 = vpop.permute.xlu0 %2945
        %2947 = vrot.lane.b32.xlu0 %v2896, 96
        %v2948 = vpop.permute.xlu0 %2947
        %2949 = vrot.lane.b32.xlu0 %v2908, 96
        %v2950 = vpop.permute.xlu0 %2949
        %2951 = vrot.lane.b32.xlu0 %v2920, 96
        %v2952 = vpop.permute.xlu0 %2951
        %v2969 = vunpack.c.l.b16 %v1591
        %v2970 = vunpack.c.l.b16 %v1592
        %v2971 = vunpack.c.l.b16 %v1593
        %v2972 = vunpack.c.l.b16 %v1594
        %v2973 = vunpack.c.l.b16 %v1595
        %v2974 = vunpack.c.l.b16 %v1596
        %v2975 = vunpack.c.l.b16 %v1597
        %v2976 = vunpack.c.l.b16 %v1598
        %v2977 = vunpack.c.l.b16 %v1599
        %v2978 = vunpack.c.l.b16 %v1600
        %v2979 = vunpack.c.l.b16 %v1601
        %v2980 = vunpack.c.l.b16 %v1602
        %v2981 = vunpack.c.l.b16 %v1603
        %v2982 = vunpack.c.l.b16 %v1604
        %v2983 = vunpack.c.l.b16 %v1605
        %v2984 = vunpack.c.l.b16 %v1606
        %v2985 = vpack.c.b16 %v2602, %v2969
        %v2986 = vpack.c.b16 %v2604, %v2970
        %v2987 = vpack.c.b16 %v2606, %v2971
        %v2988 = vpack.c.b16 %v2608, %v2972
        %v2989 = vpack.c.b16 %v2610, %v2973
        %v2990 = vpack.c.b16 %v2612, %v2974
        %v2991 = vpack.c.b16 %v2614, %v2975
        %v2992 = vpack.c.b16 %v2616, %v2976
        %v2993 = vpack.c.b16 %v2618, %v2977
        %v2994 = vpack.c.b16 %v2620, %v2978
        %v2995 = vpack.c.b16 %v2622, %v2979
        %v2996 = vpack.c.b16 %v2624, %v2980
        %v2997 = vpack.c.b16 %v2626, %v2981
        %v2998 = vpack.c.b16 %v2628, %v2982
        %v2999 = vpack.c.b16 %v2630, %v2983
        %v3000 = vpack.c.b16 %v2632, %v2984
        %v3001 = vrot.slane %v2985, 1
        %v3002 = vrot.slane %v2713, 1
        %v3003 = vsel %vm2008, %v3001, %v3002
        %v3004 = vrot.slane %v2986, 1
        %v3005 = vrot.slane %v2714, 1
        %v3006 = vsel %vm2008, %v3004, %v3005
        %v3007 = vrot.slane %v2987, 1
        %v3008 = vrot.slane %v2715, 1
        %v3009 = vsel %vm2008, %v3007, %v3008
        %v3010 = vrot.slane %v2988, 1
        %v3011 = vrot.slane %v2716, 1
        %v3012 = vsel %vm2008, %v3010, %v3011
        %v3013 = vrot.slane %v2989, 1
        %v3014 = vrot.slane %v2717, 1
        %v3015 = vsel %vm2008, %v3013, %v3014
        %v3016 = vrot.slane %v2990, 1
        %v3017 = vrot.slane %v2718, 1
        %v3018 = vsel %vm2008, %v3016, %v3017
        %v3019 = vrot.slane %v2991, 1
        %v3020 = vrot.slane %v2719, 1
        %v3021 = vsel %vm2008, %v3019, %v3020
        %v3022 = vrot.slane %v2992, 1
        %v3023 = vrot.slane %v2720, 1
        %v3024 = vsel %vm2008, %v3022, %v3023
        %v3025 = vrot.slane %v2993, 1
        %v3026 = vrot.slane %v2721, 1
        %v3027 = vsel %vm2008, %v3025, %v3026
        %v3028 = vrot.slane %v2994, 1
        %v3029 = vrot.slane %v2722, 1
        %v3030 = vsel %vm2008, %v3028, %v3029
        %v3031 = vrot.slane %v2995, 1
        %v3032 = vrot.slane %v2723, 1
        %v3033 = vsel %vm2008, %v3031, %v3032
        %v3034 = vrot.slane %v2996, 1
        %v3035 = vrot.slane %v2724, 1
        %v3036 = vsel %vm2008, %v3034, %v3035
        %v3037 = vrot.slane %v2997, 1
        %v3038 = vrot.slane %v2725, 1
        %v3039 = vsel %vm2008, %v3037, %v3038
        %v3040 = vrot.slane %v2998, 1
        %v3041 = vrot.slane %v2726, 1
        %v3042 = vsel %vm2008, %v3040, %v3041
        %v3043 = vrot.slane %v2999, 1
        %v3044 = vrot.slane %v2727, 1
        %v3045 = vsel %vm2008, %v3043, %v3044
        %v3046 = vrot.slane %v3000, 1
        %v3047 = vrot.slane %v2728, 1
        %v3048 = vsel %vm2008, %v3046, %v3047
        %vm3049 = vcmask 261120
        %v3051 = vsel %vm3049, %v1671, %v1929
        %v3053 = vsel %vm3049, %v1672, %v1931
        %v3055 = vsel %vm3049, %v1673, %v1933
        %v3057 = vsel %vm3049, %v1674, %v1935
        %v3059 = vsel %vm3049, %v1675, %v1937
        %v3061 = vsel %vm3049, %v1676, %v1939
        %v3063 = vsel %vm3049, %v1677, %v1941
        %v3065 = vsel %vm3049, %v1678, %v1943
        %v3067 = vsel %vm3049, %v1679, %v1945
        %v3069 = vsel %vm3049, %v1680, %v1947
        %v3071 = vsel %vm3049, %v1681, %v1949
        %v3073 = vsel %vm3049, %v1682, %v1951
        %v3075 = vsel %vm3049, %v1683, %v1953
        %v3077 = vsel %vm3049, %v1684, %v1955
        %v3079 = vsel %vm3049, %v1685, %v1957
        %v3081 = vsel %vm3049, %v1686, %v1959
        %vm3082 = vcmask 523264
        %v3084 = vsel %vm3082, %v3051, %v2058
        %v3086 = vsel %vm3082, %v3053, %v2060
        %v3088 = vsel %vm3082, %v3055, %v2062
        %v3090 = vsel %vm3082, %v3057, %v2064
        %v3092 = vsel %vm3082, %v3059, %v2066
        %v3094 = vsel %vm3082, %v3061, %v2068
        %v3096 = vsel %vm3082, %v3063, %v2070
        %v3098 = vsel %vm3082, %v3065, %v2072
        %v3100 = vsel %vm3082, %v3067, %v2074
        %v3102 = vsel %vm3082, %v3069, %v2076
        %v3104 = vsel %vm3082, %v3071, %v2078
        %v3106 = vsel %vm3082, %v3073, %v2080
        %v3108 = vsel %vm3082, %v3075, %v2082
        %v3110 = vsel %vm3082, %v3077, %v2084
        %v3112 = vsel %vm3082, %v3079, %v2086
        %v3114 = vsel %vm3082, %v3081, %v2088
        %vm3115 = vcmask 785408
        %v3117 = vsel %vm3115, %v3084, %v2170
        %v3120 = vsel %vm3115, %v3086, %v2172
        %v3123 = vsel %vm3115, %v3088, %v2174
        %v3126 = vsel %vm3115, %v3090, %v2176
        %v3129 = vsel %vm3115, %v3092, %v2178
        %v3132 = vsel %vm3115, %v3094, %v2180
        %v3135 = vsel %vm3115, %v3096, %v2182
        %v3138 = vsel %vm3115, %v3098, %v2184
        %v3141 = vsel %vm3115, %v3100, %v2186
        %v3144 = vsel %vm3115, %v3102, %v2188
        %v3147 = vsel %vm3115, %v3104, %v2190
        %v3150 = vsel %vm3115, %v3106, %v2192
        %v3153 = vsel %vm3115, %v3108, %v2194
        %v3156 = vsel %vm3115, %v3110, %v2196
        %v3159 = vsel %vm3115, %v3112, %v2198
        %v3162 = vsel %vm3115, %v3114, %v2200
        %v3166 = vsel %vm3049, %v2260, %v2538
        %v3169 = vsel %vm3049, %v2272, %v2540
        %v3172 = vsel %vm3049, %v2284, %v2542
        %v3175 = vsel %vm3049, %v2296, %v2544
        %v3178 = vsel %vm3049, %v2308, %v2546
        %v3181 = vsel %vm3049, %v2320, %v2548
        %v3184 = vsel %vm3049, %v2332, %v2550
        %v3187 = vsel %vm3049, %v2344, %v2552
        %v3190 = vsel %vm3049, %v2356, %v2554
        %v3193 = vsel %vm3049, %v2368, %v2556
        %v3196 = vsel %vm3049, %v2380, %v2558
        %v3199 = vsel %vm3049, %v2392, %v2560
        %v3202 = vsel %vm3049, %v2404, %v2562
        %v3205 = vsel %vm3049, %v2416, %v2564
        %v3208 = vsel %vm3049, %v2428, %v2566
        %v3211 = vsel %vm3049, %v2440, %v2568
        %v3213 = vsel %vm3082, %v3166, %v2650
        %v3215 = vsel %vm3082, %v3169, %v2652
        %v3217 = vsel %vm3082, %v3172, %v2654
        %v3219 = vsel %vm3082, %v3175, %v2656
        %v3221 = vsel %vm3082, %v3178, %v2658
        %v3223 = vsel %vm3082, %v3181, %v2660
        %v3225 = vsel %vm3082, %v3184, %v2662
        %v3227 = vsel %vm3082, %v3187, %v2664
        %v3229 = vsel %vm3082, %v3190, %v2666
        %v3231 = vsel %vm3082, %v3193, %v2668
        %v3233 = vsel %vm3082, %v3196, %v2670
        %v3235 = vsel %vm3082, %v3199, %v2672
        %v3237 = vsel %vm3082, %v3202, %v2674
        %v3239 = vsel %vm3082, %v3205, %v2676
        %v3241 = vsel %vm3082, %v3208, %v2678
        %v3243 = vsel %vm3082, %v3211, %v2680
        %v3245 = vsel %vm3115, %v3213, %v2922
        %v3248 = vsel %vm3115, %v3215, %v2924
        %v3251 = vsel %vm3115, %v3217, %v2926
        %v3254 = vsel %vm3115, %v3219, %v2928
        %v3257 = vsel %vm3115, %v3221, %v2930
        %v3260 = vsel %vm3115, %v3223, %v2932
        %v3263 = vsel %vm3115, %v3225, %v2934
        %v3266 = vsel %vm3115, %v3227, %v2936
        %v3269 = vsel %vm3115, %v3229, %v2938
        %v3272 = vsel %vm3115, %v3231, %v2940
        %v3275 = vsel %vm3115, %v3233, %v2942
        %v3278 = vsel %vm3115, %v3235, %v2944
        %v3281 = vsel %vm3115, %v3237, %v2946
        %v3284 = vsel %vm3115, %v3239, %v2948
        %v3287 = vsel %vm3115, %v3241, %v2950
        %v3290 = vsel %vm3115, %v3243, %v2952
        %v3292 = vld [vmem:[%s3] sm:$0xf]
        %v3293 = vld [vmem:[%s3 + $0x4] sm:$0xf]
        %v3294 = vld [vmem:[%s3 + $0x8] sm:$0xf]
        %v3295 = vld [vmem:[%s3 + $0xc] sm:$0xf]
        %v3296 = vld [vmem:[%s3 + $0x10] sm:$0xf]
        %v3297 = vld [vmem:[%s3 + $0x14] sm:$0xf]
        %v3298 = vld [vmem:[%s3 + $0x18] sm:$0xf]
        %v3299 = vld [vmem:[%s3 + $0x1c] sm:$0xf]
        %v3300 = vld [vmem:[%s3 + $0x20] sm:$0xf]
        %v3301 = vld [vmem:[%s3 + $0x24] sm:$0xf]
        %v3302 = vld [vmem:[%s3 + $0x28] sm:$0xf]
        %v3303 = vld [vmem:[%s3 + $0x2c] sm:$0xf]
        %v3304 = vld [vmem:[%s3 + $0x30] sm:$0xf]
        %v3305 = vld [vmem:[%s3 + $0x34] sm:$0xf]
        %v3306 = vld [vmem:[%s3 + $0x38] sm:$0xf]
        %v3307 = vld [vmem:[%s3 + $0x3c] sm:$0xf]
        %v3308 = vld [vmem:[%s3 + $0x40] sm:$0xf]
        %v3309 = vld [vmem:[%s3 + $0x44] sm:$0xf]
        %v3310 = vld [vmem:[%s3 + $0x48] sm:$0xf]
        %v3311 = vld [vmem:[%s3 + $0x4c] sm:$0xf]
        %v3312 = vld [vmem:[%s3 + $0x50] sm:$0xf]
        %v3313 = vld [vmem:[%s3 + $0x54] sm:$0xf]
        %v3314 = vld [vmem:[%s3 + $0x58] sm:$0xf]
        %v3315 = vld [vmem:[%s3 + $0x5c] sm:$0xf]
        %v3316 = vld [vmem:[%s3 + $0x60] sm:$0xf]
        %v3317 = vld [vmem:[%s3 + $0x64] sm:$0xf]
        %v3318 = vld [vmem:[%s3 + $0x68] sm:$0xf]
        %v3319 = vld [vmem:[%s3 + $0x6c] sm:$0xf]
        %v3320 = vld [vmem:[%s3 + $0x70] sm:$0xf]
        %v3321 = vld [vmem:[%s3 + $0x74] sm:$0xf]
        %v3322 = vld [vmem:[%s3 + $0x78] sm:$0xf]
        %v3323 = vld [vmem:[%s3 + $0x7c] sm:$0xf]
        %v3324 = vld [vmem:[%s3 + $0x80] sm:$0xf]
        %v3325 = vld [vmem:[%s3 + $0x84] sm:$0xf]
        %v3326 = vld [vmem:[%s3 + $0x88] sm:$0xf]
        %v3327 = vld [vmem:[%s3 + $0x8c] sm:$0xf]
        %v3328 = vld [vmem:[%s4] sm:$0x1]
        %v3330 = vlaneseq
        %v3331 = vshrl.u32 %v3330, 7
        %v3332 = vsub.s32 0, %v3331
        %v3333 = vrot.slane %v3328, %v3332
        %v3371 = vunpack.c.l.b16 %v3292
        %v3372 = vunpack.c.l.b16 %v3293
        %v3373 = vunpack.c.l.b16 %v3294
        %v3374 = vunpack.c.l.b16 %v3295
        %v3375 = vunpack.c.l.b16 %v3296
        %v3376 = vunpack.c.l.b16 %v3297
        %v3377 = vunpack.c.l.b16 %v3298
        %v3378 = vunpack.c.l.b16 %v3299
        %v3379 = vunpack.c.l.b16 %v3300
        %v3380 = vunpack.c.l.b16 %v3301
        %v3381 = vunpack.c.l.b16 %v3302
        %v3382 = vunpack.c.l.b16 %v3303
        %v3383 = vunpack.c.l.b16 %v3304
        %v3384 = vunpack.c.l.b16 %v3305
        %v3385 = vunpack.c.l.b16 %v3306
        %v3386 = vunpack.c.l.b16 %v3307
        %v3387 = vunpack.c.l.b16 %v3308
        %v3388 = vunpack.c.l.b16 %v3309
        %v3389 = vunpack.c.l.b16 %v3310
        %v3390 = vunpack.c.l.b16 %v3311
        %v3391 = vunpack.c.l.b16 %v3312
        %v3392 = vunpack.c.l.b16 %v3313
        %v3393 = vunpack.c.l.b16 %v3314
        %v3394 = vunpack.c.l.b16 %v3315
        %v3395 = vunpack.c.l.b16 %v3316
        %v3396 = vunpack.c.l.b16 %v3317
        %v3397 = vunpack.c.l.b16 %v3318
        %v3398 = vunpack.c.l.b16 %v3319
        %v3399 = vunpack.c.l.b16 %v3320
        %v3400 = vunpack.c.l.b16 %v3321
        %v3401 = vunpack.c.l.b16 %v3322
        %v3402 = vunpack.c.l.b16 %v3323
        %v3403 = vunpack.c.l.b16 %v3324
        %v3404 = vunpack.c.l.b16 %v3325
        %v3405 = vunpack.c.l.b16 %v3326
        %v3406 = vunpack.c.l.b16 %v3327
        %v3407 = vpack.c.b16 %v3372, %v3371
        %v3408 = vpack.c.b16 %v3374, %v3373
        %v3409 = vpack.c.b16 %v3376, %v3375
        %v3410 = vpack.c.b16 %v3378, %v3377
        %v3411 = vpack.c.b16 %v3380, %v3379
        %v3412 = vpack.c.b16 %v3382, %v3381
        %v3413 = vpack.c.b16 %v3384, %v3383
        %v3414 = vpack.c.b16 %v3386, %v3385
        %v3415 = vpack.c.b16 %v3388, %v3387
        %v3416 = vpack.c.b16 %v3390, %v3389
        %v3417 = vpack.c.b16 %v3392, %v3391
        %v3418 = vpack.c.b16 %v3394, %v3393
        %v3419 = vpack.c.b16 %v3396, %v3395
        %v3420 = vpack.c.b16 %v3398, %v3397
        %v3421 = vpack.c.b16 %v3400, %v3399
        %v3422 = vpack.c.b16 %v3402, %v3401
        %v3423 = vpack.c.b16 %v3404, %v3403
        %v3424 = vpack.c.b16 %v3406, %v3405
        %v3444 = vsel %vm3049, %v3003, 0
        %v3447 = vsel %vm3049, %v3006, 0
        %v3450 = vsel %vm3049, %v3009, 0
        %v3453 = vsel %vm3049, %v3012, 0
        %v3456 = vsel %vm3049, %v3015, 0
        %v3459 = vsel %vm3049, %v3018, 0
        %v3462 = vsel %vm3049, %v3021, 0
        %v3465 = vsel %vm3049, %v3024, 0
        %v3468 = vsel %vm3049, %v3027, 0
        %v3471 = vsel %vm3049, %v3030, 0
        %v3474 = vsel %vm3049, %v3033, 0
        %v3477 = vsel %vm3049, %v3036, 0
        %v3480 = vsel %vm3049, %v3039, 0
        %v3483 = vsel %vm3049, %v3042, 0
        %v3486 = vsel %vm3049, %v3045, 0
        %v3489 = vsel %vm3049, %v3048, 0
        %3491 = vmatprep.subr.bf16.mxu0 0
        %3492 = vmatpush1.bf16.msra.mxu0 %v3407
        %3493 = vmatprep.subr.bf16.mxu0 0
        %3494 = vmatpush1.bf16.msra.mxu0 %v3408
        %3495 = vmatprep.subr.bf16.mxu0 0
        %3496 = vmatpush1.bf16.msra.mxu0 %v3409
        %3497 = vmatprep.subr.bf16.mxu0 0
        %3498 = vmatpush1.bf16.msra.mxu0 %v3410
        %3499 = vmatprep.subr.bf16.mxu0 0
        %3500 = vmatpush1.bf16.msra.mxu0 %v3411
        %3501 = vmatprep.subr.bf16.mxu0 0
        %3502 = vmatpush1.bf16.msra.mxu0 %v3412
        %3503 = vmatprep.subr.bf16.mxu0 0
        %3504 = vmatpush1.bf16.msra.mxu0 %v3413
        %3505 = vmatprep.subr.bf16.mxu0 0
        %3506 = vmatpush1.bf16.msra.mxu0 %v3414
        %3507 = vmatprep.subr.bf16.mxu0 0
        %3508 = vmatpush1.bf16.msra.mxu0 %v3415
        %3509 = vmatprep.subr.bf16.mxu0 0
        %3510 = vmatpush1.bf16.msra.mxu0 %v3416
        %3511 = vmatprep.subr.bf16.mxu0 0
        %3512 = vmatpush1.bf16.msra.mxu0 %v3417
        %3513 = vmatprep.subr.bf16.mxu0 0
        %3514 = vmatpush1.bf16.msra.mxu0 %v3418
        %3515 = vmatprep.subr.bf16.mxu0 0
        %3516 = vmatpush1.bf16.msra.mxu0 %v3419
        %3517 = vmatprep.subr.bf16.mxu0 0
        %3518 = vmatpush1.bf16.msra.mxu0 %v3420
        %3519 = vmatprep.subr.bf16.mxu0 0
        %3520 = vmatpush1.bf16.msra.mxu0 %v3421
        %3521 = vmatprep.subr.bf16.mxu0 0
        %3522 = vmatpush1.bf16.msra.mxu0 %v3422
        %3523 = vmatprep.mubr.bf16.mxu0 %v3245
        %3524 = vmatmul.mubr.bf16.gmra.mrb[0].mxu0 %v3117
        %v3525 = vpop.f32.mrb[0].mxu0
        %v3526 = vadd.f32 %v3333, %v3525
        %v3527 = vpop.f32.mrb[0].mxu0
        %v3528 = vpop.f32.mrb[0].mxu0
        %v3529 = vadd.f32 %v3333, %v3528
        %v3530 = vpop.f32.mrb[0].mxu0
        %3531 = vmatprep.mubr.bf16.mxu0 %v3248
        %3532 = vmatmul.mubr.bf16.gmra.mrb[0].mxu0 %v3120
        %v3533 = vpop.f32.mrb[0].mxu0
        %v3534 = vadd.f32 %v3333, %v3533
        %v3535 = vpop.f32.mrb[0].mxu0
        %v3536 = vpop.f32.mrb[0].mxu0
        %v3537 = vadd.f32 %v3333, %v3536
        %v3538 = vpop.f32.mrb[0].mxu0
        %3539 = vmatprep.mubr.bf16.mxu0 %v3251
        %3540 = vmatmul.mubr.bf16.gmra.mrb[0].mxu0 %v3123
        %v3541 = vpop.f32.mrb[0].mxu0
        %v3542 = vadd.f32 %v3333, %v3541
        %v3543 = vpop.f32.mrb[0].mxu0
        %v3544 = vpop.f32.mrb[0].mxu0
        %v3545 = vadd.f32 %v3333, %v3544
        %v3546 = vpop.f32.mrb[0].mxu0
        %3547 = vmatprep.mubr.bf16.mxu0 %v3254
        %3548 = vmatmul.mubr.bf16.gmra.mrb[0].mxu0 %v3126
        %v3549 = vpop.f32.mrb[0].mxu0
        %v3550 = vadd.f32 %v3333, %v3549
        %v3551 = vpop.f32.mrb[0].mxu0
        %v3552 = vpop.f32.mrb[0].mxu0
        %v3553 = vadd.f32 %v3333, %v3552
        %v3554 = vpop.f32.mrb[0].mxu0
        %3555 = vmatprep.mubr.bf16.mxu0 %v3257
        %3556 = vmatmul.mubr.bf16.gmra.mrb[0].mxu0 %v3129
        %v3557 = vpop.f32.mrb[0].mxu0
        %v3558 = vadd.f32 %v3333, %v3557
        %v3559 = vpop.f32.mrb[0].mxu0
        %v3560 = vpop.f32.mrb[0].mxu0
        %v3561 = vadd.f32 %v3333, %v3560
        %v3562 = vpop.f32.mrb[0].mxu0
        %3563 = vmatprep.mubr.bf16.mxu0 %v3260
        %3564 = vmatmul.mubr.bf16.gmra.mrb[0].mxu0 %v3132
        %v3565 = vpop.f32.mrb[0].mxu0
        %v3566 = vadd.f32 %v3333, %v3565
        %v3567 = vpop.f32.mrb[0].mxu0
        %v3568 = vpop.f32.mrb[0].mxu0
        %v3569 = vadd.f32 %v3333, %v3568
        %v3570 = vpop.f32.mrb[0].mxu0
        %3571 = vmatprep.mubr.bf16.mxu0 %v3263
        %3572 = vmatmul.mubr.bf16.gmra.mrb[0].mxu0 %v3135
        %v3573 = vpop.f32.mrb[0].mxu0
        %v3574 = vadd.f32 %v3333, %v3573
        %v3575 = vpop.f32.mrb[0].mxu0
        %v3576 = vpop.f32.mrb[0].mxu0
        %v3577 = vadd.f32 %v3333, %v3576
        %v3578 = vpop.f32.mrb[0].mxu0
        %3579 = vmatprep.mubr.bf16.mxu0 %v3266
        %3580 = vmatmul.mubr.bf16.gmra.mrb[0].mxu0 %v3138
        %v3581 = vpop.f32.mrb[0].mxu0
        %v3582 = vadd.f32 %v3333, %v3581
        %v3583 = vpop.f32.mrb[0].mxu0
        %v3584 = vpop.f32.mrb[0].mxu0
        %v3585 = vadd.f32 %v3333, %v3584
        %v3586 = vpop.f32.mrb[0].mxu0
        %3587 = vmatprep.mubr.bf16.mxu0 %v3269
        %3588 = vmatmul.mubr.bf16.gmra.mrb[0].mxu0 %v3141
        %v3589 = vpop.f32.mrb[0].mxu0
        %v3590 = vadd.f32 %v3333, %v3589
        %v3591 = vpop.f32.mrb[0].mxu0
        %v3592 = vpop.f32.mrb[0].mxu0
        %v3593 = vadd.f32 %v3333, %v3592
        %v3594 = vpop.f32.mrb[0].mxu0
        %3595 = vmatprep.mubr.bf16.mxu0 %v3272
        %3596 = vmatmul.mubr.bf16.gmra.mrb[0].mxu0 %v3144
        %v3597 = vpop.f32.mrb[0].mxu0
        %v3598 = vadd.f32 %v3333, %v3597
        %v3599 = vpop.f32.mrb[0].mxu0
        %v3600 = vpop.f32.mrb[0].mxu0
        %v3601 = vadd.f32 %v3333, %v3600
        %v3602 = vpop.f32.mrb[0].mxu0
        %3603 = vmatprep.mubr.bf16.mxu0 %v3275
        %3604 = vmatmul.mubr.bf16.gmra.mrb[0].mxu0 %v3147
        %v3605 = vpop.f32.mrb[0].mxu0
        %v3606 = vadd.f32 %v3333, %v3605
        %v3607 = vpop.f32.mrb[0].mxu0
        %v3608 = vpop.f32.mrb[0].mxu0
        %v3609 = vadd.f32 %v3333, %v3608
        %v3610 = vpop.f32.mrb[0].mxu0
        %3611 = vmatprep.mubr.bf16.mxu0 %v3278
        %3612 = vmatmul.mubr.bf16.gmra.mrb[0].mxu0 %v3150
        %v3613 = vpop.f32.mrb[0].mxu0
        %v3614 = vadd.f32 %v3333, %v3613
        %v3615 = vpop.f32.mrb[0].mxu0
        %v3616 = vpop.f32.mrb[0].mxu0
        %v3617 = vadd.f32 %v3333, %v3616
        %v3618 = vpop.f32.mrb[0].mxu0
        %3619 = vmatprep.mubr.bf16.mxu0 %v3281
        %3620 = vmatmul.mubr.bf16.gmra.mrb[0].mxu0 %v3153
        %v3621 = vpop.f32.mrb[0].mxu0
        %v3622 = vadd.f32 %v3333, %v3621
        %v3623 = vpop.f32.mrb[0].mxu0
        %v3624 = vpop.f32.mrb[0].mxu0
        %v3625 = vadd.f32 %v3333, %v3624
        %v3626 = vpop.f32.mrb[0].mxu0
        %3627 = vmatprep.mubr.bf16.mxu0 %v3284
        %3628 = vmatmul.mubr.bf16.gmra.mrb[0].mxu0 %v3156
        %v3629 = vpop.f32.mrb[0].mxu0
        %v3630 = vadd.f32 %v3333, %v3629
        %v3631 = vpop.f32.mrb[0].mxu0
        %v3632 = vpop.f32.mrb[0].mxu0
        %v3633 = vadd.f32 %v3333, %v3632
        %v3634 = vpop.f32.mrb[0].mxu0
        %3635 = vmatprep.mubr.bf16.mxu0 %v3287
        %3636 = vmatmul.mubr.bf16.gmra.mrb[0].mxu0 %v3159
        %v3637 = vpop.f32.mrb[0].mxu0
        %v3638 = vadd.f32 %v3333, %v3637
        %v3639 = vpop.f32.mrb[0].mxu0
        %v3640 = vpop.f32.mrb[0].mxu0
        %v3641 = vadd.f32 %v3333, %v3640
        %v3642 = vpop.f32.mrb[0].mxu0
        %3643 = vmatprep.mubr.bf16.mxu0 %v3290
        %3644 = vmatmul.mubr.bf16.gmra.mrb[0].mxu0 %v3162
        %v3645 = vpop.f32.mrb[0].mxu0
        %v3646 = vadd.f32 %v3333, %v3645
        %v3647 = vpop.f32.mrb[0].mxu0
        %v3648 = vpop.f32.mrb[0].mxu0
        %v3649 = vadd.f32 %v3333, %v3648
        %v3650 = vpop.f32.mrb[0].mxu0
        %3651 = vdwg.mxu0
        %3652 = vmatprep.subr.bf16.mxu0 0
        %3653 = vmatpush1.bf16.msra.mxu0 %v3423
        %3654 = vmatprep.subr.bf16.mxu0 0
        %3655 = vmatpush1.bf16.msra.mxu0 %v3424
        %3656 = vmatprep.subr.bf16.mxu0 0
        %3657 = vmatpush1.bf16.msra.mxu0 0
        %3658 = vmatprep.subr.bf16.mxu0 0
        %3659 = vmatpush1.bf16.msra.mxu0 0
        %3660 = vmatprep.subr.bf16.mxu0 0
        %3661 = vmatpush1.bf16.msra.mxu0 0
        %3662 = vmatprep.subr.bf16.mxu0 0
        %3663 = vmatpush1.bf16.msra.mxu0 0
        %3664 = vmatprep.subr.bf16.mxu0 0
        %3665 = vmatpush1.bf16.msra.mxu0 0
        %3666 = vmatprep.subr.bf16.mxu0 0
        %3667 = vmatpush1.bf16.msra.mxu0 0
        %3668 = vmatprep.subr.bf16.mxu0 0
        %3669 = vmatpush1.bf16.msra.mxu0 0
        %3670 = vmatprep.subr.bf16.mxu0 0
        %3671 = vmatpush1.bf16.msra.mxu0 0
        %3672 = vmatprep.subr.bf16.mxu0 0
        %3673 = vmatpush1.bf16.msra.mxu0 0
        %3674 = vmatprep.subr.bf16.mxu0 0
        %3675 = vmatpush1.bf16.msra.mxu0 0
        %3676 = vmatprep.subr.bf16.mxu0 0
        %3677 = vmatpush1.bf16.msra.mxu0 0
        %3678 = vmatprep.subr.bf16.mxu0 0
        %3679 = vmatpush1.bf16.msra.mxu0 0
        %3680 = vmatprep.subr.bf16.mxu0 0
        %3681 = vmatpush1.bf16.msra.mxu0 0
        %3682 = vmatprep.subr.bf16.mxu0 0
        %3683 = vmatpush1.bf16.msra.mxu0 0
        %3684 = vmatprep.mubr.bf16.mxu0 0
        %3685 = vmatmul.mubr.bf16.gmra.mrb[0].mxu0 %v3444
        %v3686 = vpop.f32.mrb[0].mxu0
        %v3687 = vadd.f32 %v3526, %v3686
        %v3688 = vpop.f32.mrb[0].mxu0
        %v3689 = vpop.f32.mrb[0].mxu0
        %v3690 = vadd.f32 %v3529, %v3689
        %v3691 = vpop.f32.mrb[0].mxu0
        %3692 = vmatprep.mubr.bf16.mxu0 0
        %3693 = vmatmul.mubr.bf16.gmra.mrb[0].mxu0 %v3447
        %v3694 = vpop.f32.mrb[0].mxu0
        %v3695 = vadd.f32 %v3534, %v3694
        %v3696 = vpop.f32.mrb[0].mxu0
        %v3697 = vpop.f32.mrb[0].mxu0
        %v3698 = vadd.f32 %v3537, %v3697
        %v3699 = vpop.f32.mrb[0].mxu0
        %3700 = vmatprep.mubr.bf16.mxu0 0
        %3701 = vmatmul.mubr.bf16.gmra.mrb[0].mxu0 %v3450
        %v3702 = vpop.f32.mrb[0].mxu0
        %v3703 = vadd.f32 %v3542, %v3702
        %v3704 = vpop.f32.mrb[0].mxu0
        %v3705 = vpop.f32.mrb[0].mxu0
        %v3706 = vadd.f32 %v3545, %v3705
        %v3707 = vpop.f32.mrb[0].mxu0
        %3708 = vmatprep.mubr.bf16.mxu0 0
        %3709 = vmatmul.mubr.bf16.gmra.mrb[0].mxu0 %v3453
        %v3710 = vpop.f32.mrb[0].mxu0
        %v3711 = vadd.f32 %v3550, %v3710
        %v3712 = vpop.f32.mrb[0].mxu0
        %v3713 = vpop.f32.mrb[0].mxu0
        %v3714 = vadd.f32 %v3553, %v3713
        %v3715 = vpop.f32.mrb[0].mxu0
        %3716 = vmatprep.mubr.bf16.mxu0 0
        %3717 = vmatmul.mubr.bf16.gmra.mrb[0].mxu0 %v3456
        %v3718 = vpop.f32.mrb[0].mxu0
        %v3719 = vadd.f32 %v3558, %v3718
        %v3720 = vpop.f32.mrb[0].mxu0
        %v3721 = vpop.f32.mrb[0].mxu0
        %v3722 = vadd.f32 %v3561, %v3721
        %v3723 = vpop.f32.mrb[0].mxu0
        %3724 = vmatprep.mubr.bf16.mxu0 0
        %3725 = vmatmul.mubr.bf16.gmra.mrb[0].mxu0 %v3459
        %v3726 = vpop.f32.mrb[0].mxu0
        %v3727 = vadd.f32 %v3566, %v3726
        %v3728 = vpop.f32.mrb[0].mxu0
        %v3729 = vpop.f32.mrb[0].mxu0
        %v3730 = vadd.f32 %v3569, %v3729
        %v3731 = vpop.f32.mrb[0].mxu0
        %3732 = vmatprep.mubr.bf16.mxu0 0
        %3733 = vmatmul.mubr.bf16.gmra.mrb[0].mxu0 %v3462
        %v3734 = vpop.f32.mrb[0].mxu0
        %v3735 = vadd.f32 %v3574, %v3734
        %v3736 = vpop.f32.mrb[0].mxu0
        %v3737 = vpop.f32.mrb[0].mxu0
        %v3738 = vadd.f32 %v3577, %v3737
        %v3739 = vpop.f32.mrb[0].mxu0
        %3740 = vmatprep.mubr.bf16.mxu0 0
        %3741 = vmatmul.mubr.bf16.gmra.mrb[0].mxu0 %v3465
        %v3742 = vpop.f32.mrb[0].mxu0
        %v3743 = vadd.f32 %v3582, %v3742
        %v3744 = vpop.f32.mrb[0].mxu0
        %v3745 = vpop.f32.mrb[0].mxu0
        %v3746 = vadd.f32 %v3585, %v3745
        %v3747 = vpop.f32.mrb[0].mxu0
        %3748 = vmatprep.mubr.bf16.mxu0 0
        %3749 = vmatmul.mubr.bf16.gmra.mrb[0].mxu0 %v3468
        %v3750 = vpop.f32.mrb[0].mxu0
        %v3751 = vadd.f32 %v3590, %v3750
        %v3752 = vpop.f32.mrb[0].mxu0
        %v3753 = vpop.f32.mrb[0].mxu0
        %v3754 = vadd.f32 %v3593, %v3753
        %v3755 = vpop.f32.mrb[0].mxu0
        %3756 = vmatprep.mubr.bf16.mxu0 0
        %3757 = vmatmul.mubr.bf16.gmra.mrb[0].mxu0 %v3471
        %v3758 = vpop.f32.mrb[0].mxu0
        %v3759 = vadd.f32 %v3598, %v3758
        %v3760 = vpop.f32.mrb[0].mxu0
        %v3761 = vpop.f32.mrb[0].mxu0
        %v3762 = vadd.f32 %v3601, %v3761
        %v3763 = vpop.f32.mrb[0].mxu0
        %3764 = vmatprep.mubr.bf16.mxu0 0
        %3765 = vmatmul.mubr.bf16.gmra.mrb[0].mxu0 %v3474
        %v3766 = vpop.f32.mrb[0].mxu0
        %v3767 = vadd.f32 %v3606, %v3766
        %v3768 = vpop.f32.mrb[0].mxu0
        %v3769 = vpop.f32.mrb[0].mxu0
        %v3770 = vadd.f32 %v3609, %v3769
        %v3771 = vpop.f32.mrb[0].mxu0
        %3772 = vmatprep.mubr.bf16.mxu0 0
        %3773 = vmatmul.mubr.bf16.gmra.mrb[0].mxu0 %v3477
        %v3774 = vpop.f32.mrb[0].mxu0
        %v3775 = vadd.f32 %v3614, %v3774
        %v3776 = vpop.f32.mrb[0].mxu0
        %v3777 = vpop.f32.mrb[0].mxu0
        %v3778 = vadd.f32 %v3617, %v3777
        %v3779 = vpop.f32.mrb[0].mxu0
        %3780 = vmatprep.mubr.bf16.mxu0 0
        %3781 = vmatmul.mubr.bf16.gmra.mrb[0].mxu0 %v3480
        %v3782 = vpop.f32.mrb[0].mxu0
        %v3783 = vadd.f32 %v3622, %v3782
        %v3784 = vpop.f32.mrb[0].mxu0
        %v3785 = vpop.f32.mrb[0].mxu0
        %v3786 = vadd.f32 %v3625, %v3785
        %v3787 = vpop.f32.mrb[0].mxu0
        %3788 = vmatprep.mubr.bf16.mxu0 0
        %3789 = vmatmul.mubr.bf16.gmra.mrb[0].mxu0 %v3483
        %v3790 = vpop.f32.mrb[0].mxu0
        %v3791 = vadd.f32 %v3630, %v3790
        %v3792 = vpop.f32.mrb[0].mxu0
        %v3793 = vpop.f32.mrb[0].mxu0
        %v3794 = vadd.f32 %v3633, %v3793
        %v3795 = vpop.f32.mrb[0].mxu0
        %3796 = vmatprep.mubr.bf16.mxu0 0
        %3797 = vmatmul.mubr.bf16.gmra.mrb[0].mxu0 %v3486
        %v3798 = vpop.f32.mrb[0].mxu0
        %v3799 = vadd.f32 %v3638, %v3798
        %v3800 = vpop.f32.mrb[0].mxu0
        %v3801 = vpop.f32.mrb[0].mxu0
        %v3802 = vadd.f32 %v3641, %v3801
        %v3803 = vpop.f32.mrb[0].mxu0
        %3804 = vmatprep.mubr.bf16.mxu0 0
        %3805 = vmatmul.mubr.bf16.gmra.mrb[0].mxu0 %v3489
        %v3806 = vpop.f32.mrb[0].mxu0
        %v3807 = vadd.f32 %v3646, %v3806
        %v3808 = vpop.f32.mrb[0].mxu0
        %v3809 = vpop.f32.mrb[0].mxu0
        %v3810 = vadd.f32 %v3649, %v3809
        %v3811 = vpop.f32.mrb[0].mxu0
        %3812 = vdwg.mxu0
        %v3813 = vmax.f32 %v3687, 0.0
        %v3814 = vmax.f32 %v3690, 0.0
        %v3815 = vmax.f32 %v3695, 0.0
        %v3816 = vmax.f32 %v3698, 0.0
        %v3817 = vmax.f32 %v3703, 0.0
        %v3818 = vmax.f32 %v3706, 0.0
        %v3819 = vmax.f32 %v3711, 0.0
        %v3820 = vmax.f32 %v3714, 0.0
        %v3821 = vmax.f32 %v3719, 0.0
        %v3822 = vmax.f32 %v3722, 0.0
        %v3823 = vmax.f32 %v3727, 0.0
        %v3824 = vmax.f32 %v3730, 0.0
        %v3825 = vmax.f32 %v3735, 0.0
        %v3826 = vmax.f32 %v3738, 0.0
        %v3827 = vmax.f32 %v3743, 0.0
        %v3828 = vmax.f32 %v3746, 0.0
        %v3829 = vmax.f32 %v3751, 0.0
        %v3830 = vmax.f32 %v3754, 0.0
        %v3831 = vmax.f32 %v3759, 0.0
        %v3832 = vmax.f32 %v3762, 0.0
        %v3833 = vmax.f32 %v3767, 0.0
        %v3834 = vmax.f32 %v3770, 0.0
        %v3835 = vmax.f32 %v3775, 0.0
        %v3836 = vmax.f32 %v3778, 0.0
        %v3837 = vmax.f32 %v3783, 0.0
        %v3838 = vmax.f32 %v3786, 0.0
        %v3839 = vmax.f32 %v3791, 0.0
        %v3840 = vmax.f32 %v3794, 0.0
        %v3841 = vmax.f32 %v3799, 0.0
        %v3842 = vmax.f32 %v3802, 0.0
        %v3843 = vmax.f32 %v3807, 0.0
        %v3844 = vmax.f32 %v3810, 0.0
        %v3845 = vpack.c.bf16 %v3814, %v3813
        %v3846 = vpack.c.bf16 %v3816, %v3815
        %v3847 = vpack.c.bf16 %v3818, %v3817
        %v3848 = vpack.c.bf16 %v3820, %v3819
        %v3849 = vpack.c.bf16 %v3822, %v3821
        %v3850 = vpack.c.bf16 %v3824, %v3823
        %v3851 = vpack.c.bf16 %v3826, %v3825
        %v3852 = vpack.c.bf16 %v3828, %v3827
        %v3853 = vpack.c.bf16 %v3830, %v3829
        %v3854 = vpack.c.bf16 %v3832, %v3831
        %v3855 = vpack.c.bf16 %v3834, %v3833
        %v3856 = vpack.c.bf16 %v3836, %v3835
        %v3857 = vpack.c.bf16 %v3838, %v3837
        %v3858 = vpack.c.bf16 %v3840, %v3839
        %v3859 = vpack.c.bf16 %v3842, %v3841
        %v3860 = vpack.c.bf16 %v3844, %v3843
        %v3861 = vld [vmem:[%s5] sm:$0xf]
        %v3862 = vld [vmem:[%s5 + $0x4] sm:$0xf]
        %v3863 = vld [vmem:[%s5 + $0x8] sm:$0xf]
        %v3864 = vld [vmem:[%s5 + $0xc] sm:$0xf]
        %v3865 = vld [vmem:[%s6] sm:$0x1]
        %v3867 = vlaneseq
        %v3868 = vshrl.u32 %v3867, 7
        %v3869 = vsub.s32 0, %v3868
        %v3870 = vrot.slane %v3865, %v3869
        %v3876 = vunpack.c.l.b16 %v3861
        %v3877 = vunpack.c.l.b16 %v3862
        %v3878 = vunpack.c.l.b16 %v3863
        %v3879 = vunpack.c.l.b16 %v3864
        %v3880 = vpack.c.b16 %v3877, %v3876
        %v3881 = vpack.c.b16 %v3879, %v3878
        %v3885 = vsel %vm3049, %v3845, 0
        %v3888 = vsel %vm3049, %v3846, 0
        %v3891 = vsel %vm3049, %v3847, 0
        %v3894 = vsel %vm3049, %v3848, 0
        %v3897 = vsel %vm3049, %v3849, 0
        %v3900 = vsel %vm3049, %v3850, 0
        %v3903 = vsel %vm3049, %v3851, 0
        %v3906 = vsel %vm3049, %v3852, 0
        %v3909 = vsel %vm3049, %v3853, 0
        %v3912 = vsel %vm3049, %v3854, 0
        %v3915 = vsel %vm3049, %v3855, 0
        %v3918 = vsel %vm3049, %v3856, 0
        %v3921 = vsel %vm3049, %v3857, 0
        %v3924 = vsel %vm3049, %v3858, 0
        %v3927 = vsel %vm3049, %v3859, 0
        %v3930 = vsel %vm3049, %v3860, 0
        %3932 = vmatprep.subr.bf16.mxu0 0
        %3933 = vmatpush1.bf16.msra.mxu0 %v3880
        %3934 = vmatprep.subr.bf16.mxu0 0
        %3935 = vmatpush1.bf16.msra.mxu0 %v3881
        %3936 = vmatprep.subr.bf16.mxu0 0
        %3937 = vmatpush1.bf16.msra.mxu0 0
        %3938 = vmatprep.subr.bf16.mxu0 0
        %3939 = vmatpush1.bf16.msra.mxu0 0
        %3940 = vmatprep.subr.bf16.mxu0 0
        %3941 = vmatpush1.bf16.msra.mxu0 0
        %3942 = vmatprep.subr.bf16.mxu0 0
        %3943 = vmatpush1.bf16.msra.mxu0 0
        %3944 = vmatprep.subr.bf16.mxu0 0
        %3945 = vmatpush1.bf16.msra.mxu0 0
        %3946 = vmatprep.subr.bf16.mxu0 0
        %3947 = vmatpush1.bf16.msra.mxu0 0
        %3948 = vmatprep.subr.bf16.mxu0 0
        %3949 = vmatpush1.bf16.msra.mxu0 0
        %3950 = vmatprep.subr.bf16.mxu0 0
        %3951 = vmatpush1.bf16.msra.mxu0 0
        %3952 = vmatprep.subr.bf16.mxu0 0
        %3953 = vmatpush1.bf16.msra.mxu0 0
        %3954 = vmatprep.subr.bf16.mxu0 0
        %3955 = vmatpush1.bf16.msra.mxu0 0
        %3956 = vmatprep.subr.bf16.mxu0 0
        %3957 = vmatpush1.bf16.msra.mxu0 0
        %3958 = vmatprep.subr.bf16.mxu0 0
        %3959 = vmatpush1.bf16.msra.mxu0 0
        %3960 = vmatprep.subr.bf16.mxu0 0
        %3961 = vmatpush1.bf16.msra.mxu0 0
        %3962 = vmatprep.subr.bf16.mxu0 0
        %3963 = vmatpush1.bf16.msra.mxu0 0
        %3964 = vmatprep.mubr.bf16.mxu0 0
        %3965 = vmatmul.mubr.bf16.gmra.mrb[0].mxu0 %v3885
        %v3966 = vpop.f32.mrb[0].mxu0
        %v3967 = vadd.f32 %v3870, %v3966
        %v3968 = vpop.f32.mrb[0].mxu0
        %v3969 = vpop.f32.mrb[0].mxu0
        %v3970 = vadd.f32 %v3870, %v3969
        %v3971 = vpop.f32.mrb[0].mxu0
        %3972 = vmatprep.mubr.bf16.mxu0 0
        %3973 = vmatmul.mubr.bf16.gmra.mrb[0].mxu0 %v3888
        %v3974 = vpop.f32.mrb[0].mxu0
        %v3975 = vadd.f32 %v3870, %v3974
        %v3976 = vpop.f32.mrb[0].mxu0
        %v3977 = vpop.f32.mrb[0].mxu0
        %v3978 = vadd.f32 %v3870, %v3977
        %v3979 = vpop.f32.mrb[0].mxu0
        %3980 = vmatprep.mubr.bf16.mxu0 0
        %3981 = vmatmul.mubr.bf16.gmra.mrb[0].mxu0 %v3891
        %v3982 = vpop.f32.mrb[0].mxu0
        %v3983 = vadd.f32 %v3870, %v3982
        %v3984 = vpop.f32.mrb[0].mxu0
        %v3985 = vpop.f32.mrb[0].mxu0
        %v3986 = vadd.f32 %v3870, %v3985
        %v3987 = vpop.f32.mrb[0].mxu0
        %3988 = vmatprep.mubr.bf16.mxu0 0
        %3989 = vmatmul.mubr.bf16.gmra.mrb[0].mxu0 %v3894
        %v3990 = vpop.f32.mrb[0].mxu0
        %v3991 = vadd.f32 %v3870, %v3990
        %v3992 = vpop.f32.mrb[0].mxu0
        %v3993 = vpop.f32.mrb[0].mxu0
        %v3994 = vadd.f32 %v3870, %v3993
        %v3995 = vpop.f32.mrb[0].mxu0
        %3996 = vmatprep.mubr.bf16.mxu0 0
        %3997 = vmatmul.mubr.bf16.gmra.mrb[0].mxu0 %v3897
        %v3998 = vpop.f32.mrb[0].mxu0
        %v3999 = vadd.f32 %v3870, %v3998
        %v4000 = vpop.f32.mrb[0].mxu0
        %v4001 = vpop.f32.mrb[0].mxu0
        %v4002 = vadd.f32 %v3870, %v4001
        %v4003 = vpop.f32.mrb[0].mxu0
        %4004 = vmatprep.mubr.bf16.mxu0 0
        %4005 = vmatmul.mubr.bf16.gmra.mrb[0].mxu0 %v3900
        %v4006 = vpop.f32.mrb[0].mxu0
        %v4007 = vadd.f32 %v3870, %v4006
        %v4008 = vpop.f32.mrb[0].mxu0
        %v4009 = vpop.f32.mrb[0].mxu0
        %v4010 = vadd.f32 %v3870, %v4009
        %v4011 = vpop.f32.mrb[0].mxu0
        %4012 = vmatprep.mubr.bf16.mxu0 0
        %4013 = vmatmul.mubr.bf16.gmra.mrb[0].mxu0 %v3903
        %v4014 = vpop.f32.mrb[0].mxu0
        %v4015 = vadd.f32 %v3870, %v4014
        %v4016 = vpop.f32.mrb[0].mxu0
        %v4017 = vpop.f32.mrb[0].mxu0
        %v4018 = vadd.f32 %v3870, %v4017
        %v4019 = vpop.f32.mrb[0].mxu0
        %4020 = vmatprep.mubr.bf16.mxu0 0
        %4021 = vmatmul.mubr.bf16.gmra.mrb[0].mxu0 %v3906
        %v4022 = vpop.f32.mrb[0].mxu0
        %v4023 = vadd.f32 %v3870, %v4022
        %v4024 = vpop.f32.mrb[0].mxu0
        %v4025 = vpop.f32.mrb[0].mxu0
        %v4026 = vadd.f32 %v3870, %v4025
        %v4027 = vpop.f32.mrb[0].mxu0
        %4028 = vmatprep.mubr.bf16.mxu0 0
        %4029 = vmatmul.mubr.bf16.gmra.mrb[0].mxu0 %v3909
        %v4030 = vpop.f32.mrb[0].mxu0
        %v4031 = vadd.f32 %v3870, %v4030
        %v4032 = vpop.f32.mrb[0].mxu0
        %v4033 = vpop.f32.mrb[0].mxu0
        %v4034 = vadd.f32 %v3870, %v4033
        %v4035 = vpop.f32.mrb[0].mxu0
        %4036 = vmatprep.mubr.bf16.mxu0 0
        %4037 = vmatmul.mubr.bf16.gmra.mrb[0].mxu0 %v3912
        %v4038 = vpop.f32.mrb[0].mxu0
        %v4039 = vadd.f32 %v3870, %v4038
        %v4040 = vpop.f32.mrb[0].mxu0
        %v4041 = vpop.f32.mrb[0].mxu0
        %v4042 = vadd.f32 %v3870, %v4041
        %v4043 = vpop.f32.mrb[0].mxu0
        %4044 = vmatprep.mubr.bf16.mxu0 0
        %4045 = vmatmul.mubr.bf16.gmra.mrb[0].mxu0 %v3915
        %v4046 = vpop.f32.mrb[0].mxu0
        %v4047 = vadd.f32 %v3870, %v4046
        %v4048 = vpop.f32.mrb[0].mxu0
        %v4049 = vpop.f32.mrb[0].mxu0
        %v4050 = vadd.f32 %v3870, %v4049
        %v4051 = vpop.f32.mrb[0].mxu0
        %4052 = vmatprep.mubr.bf16.mxu0 0
        %4053 = vmatmul.mubr.bf16.gmra.mrb[0].mxu0 %v3918
        %v4054 = vpop.f32.mrb[0].mxu0
        %v4055 = vadd.f32 %v3870, %v4054
        %v4056 = vpop.f32.mrb[0].mxu0
        %v4057 = vpop.f32.mrb[0].mxu0
        %v4058 = vadd.f32 %v3870, %v4057
        %v4059 = vpop.f32.mrb[0].mxu0
        %4060 = vmatprep.mubr.bf16.mxu0 0
        %4061 = vmatmul.mubr.bf16.gmra.mrb[0].mxu0 %v3921
        %v4062 = vpop.f32.mrb[0].mxu0
        %v4063 = vadd.f32 %v3870, %v4062
        %v4064 = vpop.f32.mrb[0].mxu0
        %v4065 = vpop.f32.mrb[0].mxu0
        %v4066 = vadd.f32 %v3870, %v4065
        %v4067 = vpop.f32.mrb[0].mxu0
        %4068 = vmatprep.mubr.bf16.mxu0 0
        %4069 = vmatmul.mubr.bf16.gmra.mrb[0].mxu0 %v3924
        %v4070 = vpop.f32.mrb[0].mxu0
        %v4071 = vadd.f32 %v3870, %v4070
        %v4072 = vpop.f32.mrb[0].mxu0
        %v4073 = vpop.f32.mrb[0].mxu0
        %v4074 = vadd.f32 %v3870, %v4073
        %v4075 = vpop.f32.mrb[0].mxu0
        %4076 = vmatprep.mubr.bf16.mxu0 0
        %4077 = vmatmul.mubr.bf16.gmra.mrb[0].mxu0 %v3927
        %v4078 = vpop.f32.mrb[0].mxu0
        %v4079 = vadd.f32 %v3870, %v4078
        %v4080 = vpop.f32.mrb[0].mxu0
        %v4081 = vpop.f32.mrb[0].mxu0
        %v4082 = vadd.f32 %v3870, %v4081
        %v4083 = vpop.f32.mrb[0].mxu0
        %4084 = vmatprep.mubr.bf16.mxu0 0
        %4085 = vmatmul.mubr.bf16.gmra.mrb[0].mxu0 %v3930
        %v4086 = vpop.f32.mrb[0].mxu0
        %v4087 = vadd.f32 %v3870, %v4086
        %v4088 = vpop.f32.mrb[0].mxu0
        %v4089 = vpop.f32.mrb[0].mxu0
        %v4090 = vadd.f32 %v3870, %v4089
        %v4091 = vpop.f32.mrb[0].mxu0
        %4092 = vdwg.mxu0
        %v4093 = vadd.f32 %v3967, %v323
        %v4094 = vadd.f32 %v3970, %v324
        %v4095 = vadd.f32 %v3975, %v325
        %v4096 = vadd.f32 %v3978, %v326
        %v4097 = vadd.f32 %v3983, %v327
        %v4098 = vadd.f32 %v3986, %v328
        %v4099 = vadd.f32 %v3991, %v329
        %v4100 = vadd.f32 %v3994, %v330
        %v4101 = vadd.f32 %v3999, %v331
        %v4102 = vadd.f32 %v4002, %v332
        %v4103 = vadd.f32 %v4007, %v333
        %v4104 = vadd.f32 %v4010, %v334
        %v4105 = vadd.f32 %v4015, %v335
        %v4106 = vadd.f32 %v4018, %v336
        %v4107 = vadd.f32 %v4023, %v337
        %v4108 = vadd.f32 %v4026, %v338
        %v4109 = vadd.f32 %v4031, %v339
        %v4110 = vadd.f32 %v4034, %v340
        %v4111 = vadd.f32 %v4039, %v341
        %v4112 = vadd.f32 %v4042, %v342
        %v4113 = vadd.f32 %v4047, %v343
        %v4114 = vadd.f32 %v4050, %v344
        %v4115 = vadd.f32 %v4055, %v345
        %v4116 = vadd.f32 %v4058, %v346
        %v4117 = vadd.f32 %v4063, %v347
        %v4118 = vadd.f32 %v4066, %v348
        %v4119 = vadd.f32 %v4071, %v349
        %v4120 = vadd.f32 %v4074, %v350
        %v4121 = vadd.f32 %v4079, %v351
        %v4122 = vadd.f32 %v4082, %v352
        %v4123 = vadd.f32 %v4087, %v353
        %v4124 = vadd.f32 %v4090, %v354
        %v4125 = vmax.f32 %v4093, 0.0
        %v4126 = vmax.f32 %v4094, 0.0
        %v4127 = vmax.f32 %v4095, 0.0
        %v4128 = vmax.f32 %v4096, 0.0
        %v4129 = vmax.f32 %v4097, 0.0
        %v4130 = vmax.f32 %v4098, 0.0
        %v4131 = vmax.f32 %v4099, 0.0
        %v4132 = vmax.f32 %v4100, 0.0
        %v4133 = vmax.f32 %v4101, 0.0
        %v4134 = vmax.f32 %v4102, 0.0
        %v4135 = vmax.f32 %v4103, 0.0
        %v4136 = vmax.f32 %v4104, 0.0
        %v4137 = vmax.f32 %v4105, 0.0
        %v4138 = vmax.f32 %v4106, 0.0
        %v4139 = vmax.f32 %v4107, 0.0
        %v4140 = vmax.f32 %v4108, 0.0
        %v4141 = vmax.f32 %v4109, 0.0
        %v4142 = vmax.f32 %v4110, 0.0
        %v4143 = vmax.f32 %v4111, 0.0
        %v4144 = vmax.f32 %v4112, 0.0
        %v4145 = vmax.f32 %v4113, 0.0
        %v4146 = vmax.f32 %v4114, 0.0
        %v4147 = vmax.f32 %v4115, 0.0
        %v4148 = vmax.f32 %v4116, 0.0
        %v4149 = vmax.f32 %v4117, 0.0
        %v4150 = vmax.f32 %v4118, 0.0
        %v4151 = vmax.f32 %v4119, 0.0
        %v4152 = vmax.f32 %v4120, 0.0
        %v4153 = vmax.f32 %v4121, 0.0
        %v4154 = vmax.f32 %v4122, 0.0
        %v4155 = vmax.f32 %v4123, 0.0
        %v4156 = vmax.f32 %v4124, 0.0
        %4157 = vst [vmem:[%s310] sm:$0xff] %v4125
        %4158 = vst [vmem:[%s310 + $0x8] sm:$0xff] %v4126
        %4159 = vst [vmem:[%s310 + $0x10] sm:$0xff] %v4127
        %4160 = vst [vmem:[%s310 + $0x18] sm:$0xff] %v4128
        %4161 = vst [vmem:[%s310 + $0x20] sm:$0xff] %v4129
        %4162 = vst [vmem:[%s310 + $0x28] sm:$0xff] %v4130
        %4163 = vst [vmem:[%s310 + $0x30] sm:$0xff] %v4131
        %4164 = vst [vmem:[%s310 + $0x38] sm:$0xff] %v4132
        %4165 = vst [vmem:[%s310 + $0x40] sm:$0xff] %v4133
        %4166 = vst [vmem:[%s310 + $0x48] sm:$0xff] %v4134
        %4167 = vst [vmem:[%s310 + $0x50] sm:$0xff] %v4135
        %4168 = vst [vmem:[%s310 + $0x58] sm:$0xff] %v4136
        %4169 = vst [vmem:[%s310 + $0x60] sm:$0xff] %v4137
        %4170 = vst [vmem:[%s310 + $0x68] sm:$0xff] %v4138
        %4171 = vst [vmem:[%s310 + $0x70] sm:$0xff] %v4139
        %4172 = vst [vmem:[%s310 + $0x78] sm:$0xff] %v4140
        %4173 = vst [vmem:[%s310 + $0x80] sm:$0xff] %v4141
        %4174 = vst [vmem:[%s310 + $0x88] sm:$0xff] %v4142
        %4175 = vst [vmem:[%s310 + $0x90] sm:$0xff] %v4143
        %4176 = vst [vmem:[%s310 + $0x98] sm:$0xff] %v4144
        %4177 = vst [vmem:[%s310 + $0xa0] sm:$0xff] %v4145
        %4178 = vst [vmem:[%s310 + $0xa8] sm:$0xff] %v4146
        %4179 = vst [vmem:[%s310 + $0xb0] sm:$0xff] %v4147
        %4180 = vst [vmem:[%s310 + $0xb8] sm:$0xff] %v4148
        %4181 = vst [vmem:[%s310 + $0xc0] sm:$0xff] %v4149
        %4182 = vst [vmem:[%s310 + $0xc8] sm:$0xff] %v4150
        %4183 = vst [vmem:[%s310 + $0xd0] sm:$0xff] %v4151
        %4184 = vst [vmem:[%s310 + $0xd8] sm:$0xff] %v4152
        %4185 = vst [vmem:[%s310 + $0xe0] sm:$0xff] %v4153
        %4186 = vst [vmem:[%s310 + $0xe8] sm:$0xff] %v4154
        %4187 = vst [vmem:[%s310 + $0xf0] sm:$0xff] %v4155
        %4188 = vst [vmem:[%s310 + $0xf8] sm:$0xff] %v4156
        %s4189 = sand.u32 %s198, 1
        %s4190 = scalar_lea.sflag [#allocation5], %s4189
        %s4191 = sand.u32 %s198, 1
        %s4192 = smul.addr %s4191, 256
        %s4193 = scalar_lea.vmem [#allocation6], %s4192
        // Predicated region
        $region53: #{tpu_custom_call.1} parent=47 // pred_check
          %p4194 = pneg %p208
        $region54: #{tpu_custom_call.1} parent=47 // pred_check_branch
          %4196 = sbr.rel (%p4194) target = $region56
        $region55: #{tpu_custom_call.1} parent=47 // pred_region
          %s4197 = smul.u32 16, %s29
          %s4199 = ssub.s32 4096, 4096
          %4200 = vsyncadd %s4190, %s4199
          %s4201 = smul.addr %s4197, 2
          %s4202 = smul.addr %s28, 32
          %s4203 = sadd.s32 %s4201, %s4202
          %s4204 = smul.addr %s4203, 128
          %s4205 = scalar_lea.hbm %s7, %s4204
          %s4206 = sshll.u32 %s4193, 4
          %s4207 = int_to_ptr.vmem [resolvable:$true] %s4206
          %4212 = dma.vmem_to_hbm [thread:$0]  %s4207, 4096, %s4205, %s4190, 128, 128, 8
        $region56: #{tpu_custom_call.1} parent=47 // pred_fallthru
          _
      $region48: #{tpu_custom_call.1} parent=5 // pred_fallthru
        _
      %p4213 = scmp.le.s32.totalorder 2, %s19
      // Predicated region
      $region57: #{tpu_custom_call.1} parent=5 // pred_check
        %p4214 = pneg %p4213
      $region58: #{tpu_custom_call.1} parent=5 // pred_check_branch
        %4216 = sbr.rel (%p4214) target = $region60
      $region59: #{tpu_custom_call.1} parent=5 // pred_region
        %s4217 = ssub.s32 %s19, 2
        // Predicated region
        $region61: #{tpu_custom_call.1} parent=59 // pred_check
          %p4218 = pneg %p214
        $region62: #{tpu_custom_call.1} parent=59 // pred_check_branch
          %4220 = sbr.rel (%p4218) target = $region64
        $region63: #{tpu_custom_call.1} parent=59 // pred_region
          %s4221 = sand.u32 %s199, 1
          %s4222 = scalar_lea.sflag [#allocation5], %s4221
          %s4223 = sand.u32 %s199, 1
          %s4224 = smul.addr %s4223, 256
          %s4225 = scalar_lea.vmem [#allocation6], %s4224
          %4226 = dma.done %s4222, 4096
        $region64: #{tpu_custom_call.1} parent=59 // pred_fallthru
          _
      $region60: #{tpu_custom_call.1} parent=5 // pred_fallthru
        _
    $region6: #{tpu_custom_call.1} parent=1 // loop_footer
      %s23 = sadd.s32 1, %s19
    $region7: #{tpu_custom_call.1} parent=1 // loop_footer_branch
      %18 = sbr.rel target = $region3
    $region8: #{tpu_custom_call.1} parent=1 // loop_exit
      _
    %4227 = vsyncpa [#allocation4], 1
    %s4228 = scalar_lea.sflag [#allocation4], 1
    %4229 = vsyncpa %s4228, 1
    %4230 = vsyncpa [#allocation5], 1
    %s4231 = scalar_lea.sflag [#allocation5], 1
    %4232 = vsyncpa %s4231, 1

</llo_original>
